<compile_context>
chip_gen: v7x
topology: tpu7x:2x2x1
jax: 0.10.0
libtpu: 0.0.40
codegen_flags: <defaults>
</compile_context>

<pallas_src>
import jax
import jax.numpy as jnp
from jax.experimental import pallas as pl
from jax.experimental.pallas import tpu as pltpu

# ----------------------------- small config ---------------------------------
B = 2            # batch
S = 8            # seq_len
U = 32           # num_units
M = 8            # memory_size
DIM_TP = 16      # dim_tp
DIM_H = 16       # dim_hidden
NUM_TOPICS = 20
NUM_RESPS = 2
R = 4            # LBKTcell.r
FD = 50          # LBKTcell.factor_dim
K_CONST = 0.3    # Layer1.k
D_CONST = 10.0   # Layer1.d
B_CONST = 0.3    # Layer1.b

RU = R * U       # 128
G3U = 3 * U      # 96
XW = 256         # packed x width (two 128-lane groups)
COL_F = 32       # tf / af / hf columns
COL_CW = 128     # cw block-diag rows start at their own 128-lane group


# --------------------- parameter-slab layouts (static) -----------------------
def _layout(sections):
    """name -> (start_row, n_rows); each section start is 8-sublane aligned."""
    off, cur = {}, 0
    for name, n in sections:
        off[name] = (cur, n)
        cur += ((n + 7) // 8) * 8
    return off, cur


SEC32, ROWS32 = _layout([
    ("h_init", B * M), ("w_in", DIM_TP + DIM_H), ("b_in", 1),
    ("w_out_h", U), ("w_out_tp", DIM_TP), ("b_out", 1),
    ("wf_mat", RU), ("lb_bias", 1),
    ("g3_wh", U), ("g3_wi", U), ("g3_fsum", 3), ("g3_b", 1),
])
SEC384, ROWS384 = _layout([
    ("l1_wh", U), ("l1_wi", U), ("l1_b", 1), ("fw_bd", 3 * U), ("fw_pad", 1),
])


# ------------------------------- kernel -------------------------------------
def lbkt_kernel(x_ref, cwb_ref, p32_ref, p384_ref, preds_ref, ht_ref):
    f32 = jnp.float32
    dot = lambda a, b: jnp.dot(a, b, preferred_element_type=f32)
    BM, SB = B * M, S * B

    def p32(name):
        a, n = SEC32[name]
        return p32_ref[a:a + n, :]

    def p384(name, w):
        a, n = SEC384[name]
        return p384_ref[a:a + n, :w]

    x = x_ref[...]
    topic = x[:, :DIM_TP]
    topic_resps = x[:, :DIM_TP + DIM_H]
    tf = x[:, COL_F:COL_F + 1]
    af = x[:, COL_F + 1:COL_F + 2]
    hf = x[:, COL_F + 2:COL_F + 3]
    cw_bd = x[:, COL_CW:COL_CW + BM]                 # (SB, BM) block-diag rows
    cw_bcast = cwb_ref[...]                          # (S*BM, U) corr broadcast over U

    # -------- h-independent precompute, batched over all S*B rows -----------
    # acts_emb = relu(input_layer(cat([topic_emb, resps_emb], -1)))
    interact = jnp.maximum(dot(topic_resps, p32("w_in")) + p32("b_in"), 0.0)   # (SB, U)
    # topic part of the output layer (h part applied after the loop)
    out_tp = dot(topic, p32("w_out_tp")) + p32("b_out")                        # (SB, U)
    # interact part of the three fused Layer1 gates
    l1_pre = dot(interact, p384("l1_wi", G3U)) + p384("l1_b", G3U)             # (SB, 3U)

    def factor_gate(f):
        return K_CONST + (1.0 - K_CONST) * jax.nn.sigmoid(D_CONST * (f - B_CONST))

    # factor gates hoisted + lane-broadcast ONCE to the fused 3U layout
    gate_slab = jnp.concatenate(
        [jnp.broadcast_to(factor_gate(tf), (SB, U)),
         jnp.broadcast_to(factor_gate(af), (SB, U)),
         jnp.broadcast_to(factor_gate(hf), (SB, U))], axis=1)                  # (SB, 3U)

    # h-independent part of the forget gate; repeated factor blocks collapse
    # to factor * column-sum of the corresponding weight rows
    fsum = p32("g3_fsum")                                                      # (3, U)
    fg_pre = (dot(interact, p32("g3_wi"))
              + tf * fsum[0:1] + af * fsum[1:2] + hf * fsum[2:3]
              + p32("g3_b"))                                                   # (SB, U)
    # replicate each (s,b) row M times -> rows (s,b,m); no rep matrix / matmul
    fg_rep = jnp.concatenate(
        [jnp.broadcast_to(fg_pre[i:i + 1, :], (M, U)) for i in range(SB)],
        axis=0)                                                                # (S*BM, U)

    l1_wh = p384("l1_wh", G3U)          # (U, 3U)
    fw_bd = p384("fw_bd", 3 * RU)       # (3U, 3*R*U) block-diagonal
    fw_pad = p384("fw_pad", 3 * RU)     # (1, 3*R*U)  the "+1" pad rows
    wf_mat = p32("wf_mat")              # (R*U, U)
    lb_bias = p32("lb_bias")            # (1, U)
    g3_wh = p32("g3_wh")                # (U, U)

    def rep_rows(m2):                   # (B, U) -> (B*M, U), row b*M+m = m2[b]
        return jnp.concatenate(
            [jnp.broadcast_to(m2[b:b + 1, :], (M, U)) for b in range(B)], axis=0)

    # ---------------- serial recurrence; h is (B*M, U), row = b*M + m --------
    h = p32("h_init")                                                          # (BM, U) pre-tiled
    for s in range(S):
        r0, r1 = s * B, (s + 1) * B
        q0, q1 = s * BM, (s + 1) * BM

        # h_pre_tilde = squeeze(bmm(cw.unsqueeze(1), h_pre), 1) via block-diag dot
        h_tilde = dot(cw_bd[r0:r1], h)                                         # (B, U)
        ht_ref[r0:r1, :] = h_tilde

        # all three Layer1 gates with one fused matmul + one full-width multiply
        w_all = dot(h_tilde, l1_wh) + l1_pre[r0:r1]                            # (B, 3U)
        g_all = jax.nn.sigmoid(w_all * gate_slab[r0:r1])                       # (B, 3U)

        # fusion: one block-diagonal dot, f blocks at 128-lane offsets
        f_all = dot(g_all, fw_bd) + fw_pad                                     # (B, 3*R*U)
        prod = f_all[:, :RU] * f_all[:, RU:2 * RU] * f_all[:, 2 * RU:]         # (B, R*U)
        lg = jnp.maximum(dot(prod, wf_mat) + lb_bias, 0.0)                     # (B, U)

        # forget gate: h-dependent part is a single dot, rest precomputed
        forget = jax.nn.sigmoid(dot(h, g3_wh) + fg_rep[q0:q1])                 # (BM, U)

        # TODO(synk): nn.Dropout(dropout) on LG omitted (eval-mode identity; no RNG dropout).
        # LG[b*M+m, :] = cw[s,b,m] * lg[b, :] done on the VPU (no MXU dot)
        h = h * forget + cw_bcast[q0:q1] * rep_rows(lg)

    # ---------------- prediction head, batched over S; dense writeback -------
    y = jax.nn.sigmoid(dot(ht_ref[...], p32("w_out_h")) + out_tp)              # (SB, U)
    mean = jnp.sum(y, axis=-1, keepdims=True) * (1.0 / U)                      # (SB, 1)
    preds_ref[...] = jnp.broadcast_to(mean, (SB, 128))                         # lane-dense store


# Grid-less invocation: everything fits VMEM (<1 MiB), 4 input DMAs, one
# output writeback.  (At B=2 there is nothing to split across a second v7x TC;
# a parallel batch grid axis would be added once batch is scaled.)
_lbkt_call = pl.pallas_call(
    lbkt_kernel,
    out_shape=jax.ShapeDtypeStruct((S * B, 128), jnp.float32),
    scratch_shapes=[pltpu.VMEM((S * B, U), jnp.float32)],
)


# ------------------------------ parameters -----------------------------------
def xavier_normal(key, shape):
    fan_in, fan_out = shape[-1], shape[-2]
    std = (2.0 / (fan_in + fan_out)) ** 0.5
    return std * jax.random.normal(key, shape, dtype=jnp.float32)


def init_params(key):
    ks = iter(jax.random.split(key, 32))
    P = {}
    P['emb_topic'] = xavier_normal(next(ks), (NUM_TOPICS + 10, DIM_TP))
    P['emb_resps'] = xavier_normal(next(ks), (NUM_RESPS, DIM_H))
    P['q_matrix'] = jax.nn.softmax(
        jax.random.normal(next(ks), (NUM_TOPICS + 10, M), dtype=jnp.float32), axis=-1)
    P['W_in'] = xavier_normal(next(ks), (U, DIM_TP + DIM_H))
    P['b_in'] = jnp.zeros((U,), jnp.float32)
    P['init_h'] = xavier_normal(next(ks), (M, U))
    P['W_out'] = xavier_normal(next(ks), (U, DIM_TP + U))
    P['b_out'] = jnp.zeros((U,), jnp.float32)
    for nm in ('time', 'attempt', 'hint'):
        P[nm + '_w'] = xavier_normal(next(ks), (2 * U, U))       # Layer1.weight
        P[nm + '_b'] = xavier_normal(next(ks), (1, U))           # Layer1.bias
        P[nm + '_W'] = xavier_normal(next(ks), (R, U + 1, U))    # fusion weight
    P['Wf'] = xavier_normal(next(ks), (1, R))
    P['lb_bias'] = xavier_normal(next(ks), (1, U))
    P['W_g3'] = xavier_normal(next(ks), (U, 2 * U + 3 * FD))
    P['b_g3'] = jnp.zeros((U,), jnp.float32)
    return P


def _pack(layout, total_rows, width, entries):
    slab = jnp.zeros((total_rows, width), jnp.float32)
    for name, arr in entries.items():
        a, n = layout[name]
        arr = jnp.asarray(arr, jnp.float32)
        slab = slab.at[a:a + n, :arr.shape[1]].set(arr)
    return slab


def kernel_params(P):
    """Pre-transpose / pre-pack all LBKT parameters into two f32 DMA slabs."""
    f32 = jnp.float32
    Wt_in = P['W_in'].T                # (32, U)  [topic | resps] rows
    Wt_out = P['W_out'].T              # (U+DIM_TP, U)  [h_tilde | topic] rows
    Wt_g3 = P['W_g3'].T                # (2U+3FD, U)

    # Layer1 gates fused side by side: columns [time | attempt | hint]
    l1_wh = jnp.concatenate([P['time_w'][:U], P['attempt_w'][:U], P['hint_w'][:U]], axis=1)
    l1_wi = jnp.concatenate([P['time_w'][U:], P['attempt_w'][U:], P['hint_w'][U:]], axis=1)
    l1_b = jnp.concatenate([P['time_b'], P['attempt_b'], P['hint_b']], axis=1)

    def fw(Wr):                        # (R, U+1, U) -> (U+1, R*U), column = r*U + u
        return jnp.transpose(Wr, (1, 0, 2)).reshape(U + 1, RU)

    fw_t, fw_a, fw_h = fw(P['time_W']), fw(P['attempt_W']), fw(P['hint_W'])
    # block-diagonal fused fusion weight: gate g rows -> its own 128-lane group
    fw_bd = jnp.zeros((3 * U, 3 * RU), f32)
    fw_bd = fw_bd.at[0:U, 0:RU].set(fw_t[:U])
    fw_bd = fw_bd.at[U:2 * U, RU:2 * RU].set(fw_a[:U])
    fw_bd = fw_bd.at[2 * U:, 2 * RU:].set(fw_h[:U])
    fw_pad = jnp.concatenate([fw_t[U:], fw_a[U:], fw_h[U:]], axis=1)            # (1, 3*R*U)

    wf_mat = jnp.kron(P['Wf'].reshape(R, 1), jnp.eye(U, dtype=f32))             # (R*U, U)
    g3_fsum = jnp.concatenate([
        Wt_g3[2 * U:2 * U + FD].sum(0, keepdims=True),
        Wt_g3[2 * U + FD:2 * U + 2 * FD].sum(0, keepdims=True),
        Wt_g3[2 * U + 2 * FD:].sum(0, keepdims=True)], axis=0)                  # (3, U)

    ent32 = {
        "h_init": jnp.tile(P['init_h'], (B, 1)),            # pre-tiled (B*M, U)
        "w_in": Wt_in, "b_in": P['b_in'][None, :],
        "w_out_h": Wt_out[:U], "w_out_tp": Wt_out[U:], "b_out": P['b_out'][None, :],
        "wf_mat": wf_mat, "lb_bias": P['lb_bias'],
        "g3_wh": Wt_g3[:U], "g3_wi": Wt_g3[U:2 * U],
        "g3_fsum": g3_fsum, "g3_b": P['b_g3'][None, :],
    }
    ent384 = {"l1_wh": l1_wh, "l1_wi": l1_wi, "l1_b": l1_b,
              "fw_bd": fw_bd, "fw_pad": fw_pad}
    return (_pack(SEC32, ROWS32, U, ent32),
            _pack(SEC384, ROWS384, 3 * RU, ent384))


# ----------------------------- pallas wrapper --------------------------------
@jax.jit
def recurrent_forward(P, topics, resps, time_f, attempt_f, hint_f):
    f32 = jnp.float32
    topic_emb = P['emb_topic'][topics]            # (B, S, DIM_TP)
    resps_emb = P['emb_resps'][resps]             # (B, S, DIM_H)
    corr = P['q_matrix'][topics]                  # (B, S, M)

    sm2 = lambda a: jnp.transpose(a, (1, 0, 2)).reshape(S * B, -1)   # (B,S,.) -> (S*B,.)
    topic_f, resps_f = sm2(topic_emb), sm2(resps_emb)
    corr_sm = jnp.transpose(corr, (1, 0, 2))                         # (S, B, M)

    eyeB = jnp.eye(B, dtype=f32)
    # block-diagonal rows: cw_bd[s*B+b, c*M+m] = corr[s,b,m] if c == b else 0
    cw_bd = (corr_sm[:, :, None, :] * eyeB[None, :, :, None]).reshape(S * B, B * M)
    # corr broadcast along U: row s*B*M + b*M + m holds corr[s,b,m] in every lane
    cw_bcast = jnp.broadcast_to(corr_sm.reshape(S * B * M, 1), (S * B * M, U)).astype(f32)

    fcol = lambda f: jnp.transpose(f, (1, 0)).reshape(S * B, 1)
    x = jnp.zeros((S * B, XW), f32)
    x = x.at[:, 0:DIM_TP].set(topic_f)
    x = x.at[:, DIM_TP:DIM_TP + DIM_H].set(resps_f)
    x = x.at[:, COL_F:COL_F + 1].set(fcol(time_f))
    x = x.at[:, COL_F + 1:COL_F + 2].set(fcol(attempt_f))
    x = x.at[:, COL_F + 2:COL_F + 3].set(fcol(hint_f))
    x = x.at[:, COL_CW:COL_CW + B * M].set(cw_bd)

    slab32, slab384 = kernel_params(P)
    out = _lbkt_call(x, cw_bcast, slab32, slab384)    # (S*B, 128) lane-dense
    return out[:, 0].reshape(S, B).T                  # (B, S)


# --------------------------- pure-JAX reference -------------------------------
def _cell_ref(P, interact, cw, topic, tf, af, hf, h_pre):
    h_tilde = jnp.squeeze(jnp.matmul(cw[:, None, :], h_pre), 1)
    preds = jnp.sum(jax.nn.sigmoid(
        jnp.concatenate([h_tilde, topic], -1) @ P['W_out'].T + P['b_out']), -1) / U

    def layer1(nm, factor):
        gate = K_CONST + (1.0 - K_CONST) / (1.0 + jnp.exp(-D_CONST * (factor - B_CONST)))
        w = jnp.concatenate([h_tilde, interact], -1) @ P[nm + '_w'] + P[nm + '_b']
        return jax.nn.sigmoid(w * gate)

    tg, ag, hg = layer1('time', tf), layer1('attempt', af), layer1('hint', hf)
    pad = jnp.ones_like(tf)

    def fuse(g, Wr):
        return jnp.einsum('bi,riu->rbu', jnp.concatenate([g, pad], -1), Wr)

    fusion_all = fuse(tg, P['time_W']) * fuse(ag, P['attempt_W']) * fuse(hg, P['hint_W'])
    fusion_all = jnp.einsum('r,rbu->bu', P['Wf'][0], fusion_all) + P['lb_bias']
    learning_gain = jax.nn.relu(fusion_all)
    LG = cw[..., None] * learning_gain[:, None, :]
    x = jnp.concatenate([
        h_pre,
        jnp.tile(interact[:, None, :], (1, M, 1)),
        jnp.tile(tf[:, None, :], (1, M, FD)),
        jnp.tile(af[:, None, :], (1, M, FD)),
        jnp.tile(hf[:, None, :], (1, M, FD)),
    ], -1)
    forget = jax.nn.sigmoid(x @ P['W_g3'].T + P['b_g3'])
    return preds, h_pre * forget + LG


def reference_forward(P, topics, resps, time_f, attempt_f, hint_f):
    topic_emb = P['emb_topic'][topics]
    resps_emb = P['emb_resps'][resps]
    corr = P['q_matrix'][topics]
    acts = jax.nn.relu(
        jnp.concatenate([topic_emb, resps_emb], -1) @ P['W_in'].T + P['b_in'])
    tf, af, hf = time_f[..., None], attempt_f[..., None], hint_f[..., None]
    h = jnp.broadcast_to(P['init_h'], (topics.shape[0], M, U))
    preds = []
    for t in range(topics.shape[1]):
        p, h = _cell_ref(P, acts[:, t], corr[:, t], topic_emb[:, t],
                         tf[:, t], af[:, t], hf[:, t], h)
        preds.append(p)
    return jnp.stack(preds, axis=1)


# --------------------------------- main --------------------------------------
if __name__ == "__main__":
    key = jax.random.PRNGKey(0)
    kparams, k1, k2, k3, k4, k5 = jax.random.split(key, 6)
    P = init_params(kparams)
    topics = jax.random.randint(k1, (B, S), 0, NUM_TOPICS)
    resps = jax.random.randint(k2, (B, S), 0, NUM_RESPS)
    time_f = jax.random.uniform(k3, (B, S), dtype=jnp.float32)
    attempt_f = jax.random.uniform(k4, (B, S), dtype=jnp.float32)
    hint_f = jax.random.uniform(k5, (B, S), dtype=jnp.float32)

    preds = recurrent_forward(P, topics, resps, time_f, attempt_f, hint_f)
    preds = jax.block_until_ready(preds)
    assert preds.shape == (B, S)

    with jax.default_matmul_precision('float32'):
        ref = reference_forward(P, topics, resps, time_f, attempt_f, hint_f)
    ref = jax.block_until_ready(ref)
    max_err = float(jnp.max(jnp.abs(preds - ref)))
    assert max_err < 2e-3, f"max abs error too large: {max_err}"

    print("KERNEL_OK")
</pallas_src>

<mosaic_0001>
module attributes {stable_mosaic.version = 11 : i64} {
  func.func @lbkt_kernel(%arg0: memref<16x256xf32, #tpu.memory_space<vmem>>, %arg1: memref<128x32xf32, #tpu.memory_space<vmem>>, %arg2: memref<328x32xf32, #tpu.memory_space<vmem>>, %arg3: memref<176x384xf32, #tpu.memory_space<vmem>>, %arg4: memref<16x128xf32, #tpu.memory_space<vmem>>, %arg5: memref<16x32xf32, #tpu.memory_space<vmem>>) attributes {dimension_semantics = [], scalar_prefetch = 0 : i64, scratch_operands = 1 : i64, tpu.core_type = #tpu.core_type<tc>} {
    %c0 = arith.constant 0 : index
    %c0_0 = arith.constant 0 : index
    %0 = vector.load %arg0[%c0, %c0_0] : memref<16x256xf32, #tpu.memory_space<vmem>>, vector<16x256xf32>
    %1 = vector.extract_strided_slice %0 {offsets = [0, 0], sizes = [16, 16], strides = [1, 1]} : vector<16x256xf32> to vector<16x16xf32>
    %2 = vector.extract_strided_slice %0 {offsets = [0, 0], sizes = [16, 32], strides = [1, 1]} : vector<16x256xf32> to vector<16x32xf32>
    %3 = vector.extract_strided_slice %0 {offsets = [0, 32], sizes = [16, 1], strides = [1, 1]} : vector<16x256xf32> to vector<16x1xf32>
    %4 = vector.extract_strided_slice %0 {offsets = [0, 33], sizes = [16, 1], strides = [1, 1]} : vector<16x256xf32> to vector<16x1xf32>
    %5 = vector.extract_strided_slice %0 {offsets = [0, 34], sizes = [16, 1], strides = [1, 1]} : vector<16x256xf32> to vector<16x1xf32>
    %6 = vector.extract_strided_slice %0 {offsets = [0, 128], sizes = [16, 16], strides = [1, 1]} : vector<16x256xf32> to vector<16x16xf32>
    %c0_1 = arith.constant 0 : index
    %c0_2 = arith.constant 0 : index
    %7 = vector.load %arg1[%c0_1, %c0_2] : memref<128x32xf32, #tpu.memory_space<vmem>>, vector<128x32xf32>
    %c16 = arith.constant 16 : index
    %c0_3 = arith.constant 0 : index
    %8 = vector.load %arg2[%c16, %c0_3] : memref<328x32xf32, #tpu.memory_space<vmem>>, vector<32x32xf32>
    %cst = arith.constant dense<0.000000e+00> : vector<16x32xf32>
    %9 = tpu.matmul %2, %8, %cst {dimension_numbers = #tpu.dot_dimension_numbers<[1], [0], [0], [1], [0, 0, 1, 1], [], []>} : vector<16x32xf32>, vector<32x32xf32>, vector<16x32xf32> -> vector<16x32xf32>
    %c48 = arith.constant 48 : index
    %c0_4 = arith.constant 0 : index
    %10 = vector.load %arg2[%c48, %c0_4] : memref<328x32xf32, #tpu.memory_space<vmem>>, vector<1x32xf32>
    %11 = vector.broadcast %10 : vector<1x32xf32> to vector<16x32xf32>
    %12 = arith.addf %9, %11 : vector<16x32xf32>
    %cst_5 = arith.constant 0.000000e+00 : f32
    %13 = vector.broadcast %cst_5 : f32 to vector<16x32xf32>
    %14 = arith.maximumf %12, %13 : vector<16x32xf32>
    %c88 = arith.constant 88 : index
    %c0_6 = arith.constant 0 : index
    %15 = vector.load %arg2[%c88, %c0_6] : memref<328x32xf32, #tpu.memory_space<vmem>>, vector<16x32xf32>
    %cst_7 = arith.constant dense<0.000000e+00> : vector<16x32xf32>
    %16 = tpu.matmul %1, %15, %cst_7 {dimension_numbers = #tpu.dot_dimension_numbers<[1], [0], [0], [1], [0, 0, 1, 1], [], []>} : vector<16x16xf32>, vector<16x32xf32>, vector<16x32xf32> -> vector<16x32xf32>
    %c104 = arith.constant 104 : index
    %c0_8 = arith.constant 0 : index
    %17 = vector.load %arg2[%c104, %c0_8] : memref<328x32xf32, #tpu.memory_space<vmem>>, vector<1x32xf32>
    %18 = vector.broadcast %17 : vector<1x32xf32> to vector<16x32xf32>
    %19 = arith.addf %16, %18 : vector<16x32xf32>
    %c32 = arith.constant 32 : index
    %c0_9 = arith.constant 0 : index
    %20 = vector.load %arg3[%c32, %c0_9] : memref<176x384xf32, #tpu.memory_space<vmem>>, vector<32x96xf32>
    %cst_10 = arith.constant dense<0.000000e+00> : vector<16x96xf32>
    %21 = tpu.matmul %14, %20, %cst_10 {dimension_numbers = #tpu.dot_dimension_numbers<[1], [0], [0], [1], [0, 0, 1, 1], [], []>} : vector<16x32xf32>, vector<32x96xf32>, vector<16x96xf32> -> vector<16x96xf32>
    %c64 = arith.constant 64 : index
    %c0_11 = arith.constant 0 : index
    %22 = vector.load %arg3[%c64, %c0_11] : memref<176x384xf32, #tpu.memory_space<vmem>>, vector<1x96xf32>
    %23 = vector.broadcast %22 : vector<1x96xf32> to vector<16x96xf32>
    %24 = arith.addf %21, %23 : vector<16x96xf32>
    %cst_12 = arith.constant 3.000000e-01 : f32
    %25 = vector.broadcast %cst_12 : f32 to vector<16x1xf32>
    %26 = arith.subf %3, %25 : vector<16x1xf32>
    %cst_13 = arith.constant 1.000000e+01 : f32
    %27 = vector.broadcast %cst_13 : f32 to vector<16x1xf32>
    %28 = arith.mulf %27, %26 : vector<16x1xf32>
    %29 = arith.negf %28 : vector<16x1xf32>
    %30 = math.exp %29 : vector<16x1xf32>
    %cst_14 = arith.constant 1.000000e+00 : f32
    %31 = vector.broadcast %cst_14 : f32 to vector<16x1xf32>
    %32 = arith.addf %31, %30 : vector<16x1xf32>
    %33 = arith.divf %31, %32 : vector<16x1xf32>
    %cst_15 = arith.constant 0.699999988 : f32
    %34 = vector.broadcast %cst_15 : f32 to vector<16x1xf32>
    %35 = arith.mulf %34, %33 : vector<16x1xf32>
    %cst_16 = arith.constant 3.000000e-01 : f32
    %36 = vector.broadcast %cst_16 : f32 to vector<16x1xf32>
    %37 = arith.addf %36, %35 : vector<16x1xf32>
    %38 = vector.shape_cast %37 : vector<16x1xf32> to vector<16x1xf32>
    %39 = vector.broadcast %38 : vector<16x1xf32> to vector<16x32xf32>
    %cst_17 = arith.constant 3.000000e-01 : f32
    %40 = vector.broadcast %cst_17 : f32 to vector<16x1xf32>
    %41 = arith.subf %4, %40 : vector<16x1xf32>
    %cst_18 = arith.constant 1.000000e+01 : f32
    %42 = vector.broadcast %cst_18 : f32 to vector<16x1xf32>
    %43 = arith.mulf %42, %41 : vector<16x1xf32>
    %44 = arith.negf %43 : vector<16x1xf32>
    %45 = math.exp %44 : vector<16x1xf32>
    %cst_19 = arith.constant 1.000000e+00 : f32
    %46 = vector.broadcast %cst_19 : f32 to vector<16x1xf32>
    %47 = arith.addf %46, %45 : vector<16x1xf32>
    %48 = arith.divf %46, %47 : vector<16x1xf32>
    %cst_20 = arith.constant 0.699999988 : f32
    %49 = vector.broadcast %cst_20 : f32 to vector<16x1xf32>
    %50 = arith.mulf %49, %48 : vector<16x1xf32>
    %cst_21 = arith.constant 3.000000e-01 : f32
    %51 = vector.broadcast %cst_21 : f32 to vector<16x1xf32>
    %52 = arith.addf %51, %50 : vector<16x1xf32>
    %53 = vector.shape_cast %52 : vector<16x1xf32> to vector<16x1xf32>
    %54 = vector.broadcast %53 : vector<16x1xf32> to vector<16x32xf32>
    %cst_22 = arith.constant 3.000000e-01 : f32
    %55 = vector.broadcast %cst_22 : f32 to vector<16x1xf32>
    %56 = arith.subf %5, %55 : vector<16x1xf32>
    %cst_23 = arith.constant 1.000000e+01 : f32
    %57 = vector.broadcast %cst_23 : f32 to vector<16x1xf32>
    %58 = arith.mulf %57, %56 : vector<16x1xf32>
    %59 = arith.negf %58 : vector<16x1xf32>
    %60 = math.exp %59 : vector<16x1xf32>
    %cst_24 = arith.constant 1.000000e+00 : f32
    %61 = vector.broadcast %cst_24 : f32 to vector<16x1xf32>
    %62 = arith.addf %61, %60 : vector<16x1xf32>
    %63 = arith.divf %61, %62 : vector<16x1xf32>
    %cst_25 = arith.constant 0.699999988 : f32
    %64 = vector.broadcast %cst_25 : f32 to vector<16x1xf32>
    %65 = arith.mulf %64, %63 : vector<16x1xf32>
    %cst_26 = arith.constant 3.000000e-01 : f32
    %66 = vector.broadcast %cst_26 : f32 to vector<16x1xf32>
    %67 = arith.addf %66, %65 : vector<16x1xf32>
    %68 = vector.shape_cast %67 : vector<16x1xf32> to vector<16x1xf32>
    %69 = vector.broadcast %68 : vector<16x1xf32> to vector<16x32xf32>
    %70 = tpu.concatenate %39, %54, %69 in 1 : vector<16x32xf32>, vector<16x32xf32>, vector<16x32xf32> -> vector<16x96xf32>
    %c312 = arith.constant 312 : index
    %c0_27 = arith.constant 0 : index
    %71 = vector.load %arg2[%c312, %c0_27] : memref<328x32xf32, #tpu.memory_space<vmem>>, vector<3x32xf32>
    %c280 = arith.constant 280 : index
    %c0_28 = arith.constant 0 : index
    %72 = vector.load %arg2[%c280, %c0_28] : memref<328x32xf32, #tpu.memory_space<vmem>>, vector<32x32xf32>
    %cst_29 = arith.constant dense<0.000000e+00> : vector<16x32xf32>
    %73 = tpu.matmul %14, %72, %cst_29 {dimension_numbers = #tpu.dot_dimension_numbers<[1], [0], [0], [1], [0, 0, 1, 1], [], []>} : vector<16x32xf32>, vector<32x32xf32>, vector<16x32xf32> -> vector<16x32xf32>
    %74 = vector.extract_strided_slice %71 {offsets = [0, 0], sizes = [1, 32], strides = [1, 1]} : vector<3x32xf32> to vector<1x32xf32>
    %75 = vector.broadcast %3 : vector<16x1xf32> to vector<16x32xf32>
    %76 = vector.broadcast %74 : vector<1x32xf32> to vector<16x32xf32>
    %77 = arith.mulf %75, %76 : vector<16x32xf32>
    %78 = arith.addf %73, %77 : vector<16x32xf32>
    %79 = vector.extract_strided_slice %71 {offsets = [1, 0], sizes = [1, 32], strides = [1, 1]} : vector<3x32xf32> to vector<1x32xf32>
    %80 = vector.broadcast %4 : vector<16x1xf32> to vector<16x32xf32>
    %81 = vector.broadcast %79 : vector<1x32xf32> to vector<16x32xf32>
    %82 = arith.mulf %80, %81 : vector<16x32xf32>
    %83 = arith.addf %78, %82 : vector<16x32xf32>
    %84 = vector.extract_strided_slice %71 {offsets = [2, 0], sizes = [1, 32], strides = [1, 1]} : vector<3x32xf32> to vector<1x32xf32>
    %85 = vector.broadcast %5 : vector<16x1xf32> to vector<16x32xf32>
    %86 = vector.broadcast %84 : vector<1x32xf32> to vector<16x32xf32>
    %87 = arith.mulf %85, %86 : vector<16x32xf32>
    %88 = arith.addf %83, %87 : vector<16x32xf32>
    %c320 = arith.constant 320 : index
    %c0_30 = arith.constant 0 : index
    %89 = vector.load %arg2[%c320, %c0_30] : memref<328x32xf32, #tpu.memory_space<vmem>>, vector<1x32xf32>
    %90 = vector.broadcast %89 : vector<1x32xf32> to vector<16x32xf32>
    %91 = arith.addf %88, %90 : vector<16x32xf32>
    %92 = vector.extract_strided_slice %91 {offsets = [0, 0], sizes = [1, 32], strides = [1, 1]} : vector<16x32xf32> to vector<1x32xf32>
    %93 = vector.shape_cast %92 : vector<1x32xf32> to vector<1x32xf32>
    %94 = vector.broadcast %93 : vector<1x32xf32> to vector<8x32xf32>
    %95 = vector.extract_strided_slice %91 {offsets = [1, 0], sizes = [1, 32], strides = [1, 1]} : vector<16x32xf32> to vector<1x32xf32>
    %96 = vector.shape_cast %95 : vector<1x32xf32> to vector<1x32xf32>
    %97 = vector.broadcast %96 : vector<1x32xf32> to vector<8x32xf32>
    %98 = vector.extract_strided_slice %91 {offsets = [2, 0], sizes = [1, 32], strides = [1, 1]} : vector<16x32xf32> to vector<1x32xf32>
    %99 = vector.shape_cast %98 : vector<1x32xf32> to vector<1x32xf32>
    %100 = vector.broadcast %99 : vector<1x32xf32> to vector<8x32xf32>
    %101 = vector.extract_strided_slice %91 {offsets = [3, 0], sizes = [1, 32], strides = [1, 1]} : vector<16x32xf32> to vector<1x32xf32>
    %102 = vector.shape_cast %101 : vector<1x32xf32> to vector<1x32xf32>
    %103 = vector.broadcast %102 : vector<1x32xf32> to vector<8x32xf32>
    %104 = vector.extract_strided_slice %91 {offsets = [4, 0], sizes = [1, 32], strides = [1, 1]} : vector<16x32xf32> to vector<1x32xf32>
    %105 = vector.shape_cast %104 : vector<1x32xf32> to vector<1x32xf32>
    %106 = vector.broadcast %105 : vector<1x32xf32> to vector<8x32xf32>
    %107 = vector.extract_strided_slice %91 {offsets = [5, 0], sizes = [1, 32], strides = [1, 1]} : vector<16x32xf32> to vector<1x32xf32>
    %108 = vector.shape_cast %107 : vector<1x32xf32> to vector<1x32xf32>
    %109 = vector.broadcast %108 : vector<1x32xf32> to vector<8x32xf32>
    %110 = vector.extract_strided_slice %91 {offsets = [6, 0], sizes = [1, 32], strides = [1, 1]} : vector<16x32xf32> to vector<1x32xf32>
    %111 = vector.shape_cast %110 : vector<1x32xf32> to vector<1x32xf32>
    %112 = vector.broadcast %111 : vector<1x32xf32> to vector<8x32xf32>
    %113 = vector.extract_strided_slice %91 {offsets = [7, 0], sizes = [1, 32], strides = [1, 1]} : vector<16x32xf32> to vector<1x32xf32>
    %114 = vector.shape_cast %113 : vector<1x32xf32> to vector<1x32xf32>
    %115 = vector.broadcast %114 : vector<1x32xf32> to vector<8x32xf32>
    %116 = vector.extract_strided_slice %91 {offsets = [8, 0], sizes = [1, 32], strides = [1, 1]} : vector<16x32xf32> to vector<1x32xf32>
    %117 = vector.shape_cast %116 : vector<1x32xf32> to vector<1x32xf32>
    %118 = vector.broadcast %117 : vector<1x32xf32> to vector<8x32xf32>
    %119 = vector.extract_strided_slice %91 {offsets = [9, 0], sizes = [1, 32], strides = [1, 1]} : vector<16x32xf32> to vector<1x32xf32>
    %120 = vector.shape_cast %119 : vector<1x32xf32> to vector<1x32xf32>
    %121 = vector.broadcast %120 : vector<1x32xf32> to vector<8x32xf32>
    %122 = vector.extract_strided_slice %91 {offsets = [10, 0], sizes = [1, 32], strides = [1, 1]} : vector<16x32xf32> to vector<1x32xf32>
    %123 = vector.shape_cast %122 : vector<1x32xf32> to vector<1x32xf32>
    %124 = vector.broadcast %123 : vector<1x32xf32> to vector<8x32xf32>
    %125 = vector.extract_strided_slice %91 {offsets = [11, 0], sizes = [1, 32], strides = [1, 1]} : vector<16x32xf32> to vector<1x32xf32>
    %126 = vector.shape_cast %125 : vector<1x32xf32> to vector<1x32xf32>
    %127 = vector.broadcast %126 : vector<1x32xf32> to vector<8x32xf32>
    %128 = vector.extract_strided_slice %91 {offsets = [12, 0], sizes = [1, 32], strides = [1, 1]} : vector<16x32xf32> to vector<1x32xf32>
    %129 = vector.shape_cast %128 : vector<1x32xf32> to vector<1x32xf32>
    %130 = vector.broadcast %129 : vector<1x32xf32> to vector<8x32xf32>
    %131 = vector.extract_strided_slice %91 {offsets = [13, 0], sizes = [1, 32], strides = [1, 1]} : vector<16x32xf32> to vector<1x32xf32>
    %132 = vector.shape_cast %131 : vector<1x32xf32> to vector<1x32xf32>
    %133 = vector.broadcast %132 : vector<1x32xf32> to vector<8x32xf32>
    %134 = vector.extract_strided_slice %91 {offsets = [14, 0], sizes = [1, 32], strides = [1, 1]} : vector<16x32xf32> to vector<1x32xf32>
    %135 = vector.shape_cast %134 : vector<1x32xf32> to vector<1x32xf32>
    %136 = vector.broadcast %135 : vector<1x32xf32> to vector<8x32xf32>
    %137 = vector.extract_strided_slice %91 {offsets = [15, 0], sizes = [1, 32], strides = [1, 1]} : vector<16x32xf32> to vector<1x32xf32>
    %138 = vector.shape_cast %137 : vector<1x32xf32> to vector<1x32xf32>
    %139 = vector.broadcast %138 : vector<1x32xf32> to vector<8x32xf32>
    %140 = tpu.concatenate %94, %97, %100, %103, %106, %109, %112, %115, %118, %121, %124, %127, %130, %133, %136, %139 in 0 : vector<8x32xf32>, vector<8x32xf32>, vector<8x32xf32>, vector<8x32xf32>, vector<8x32xf32>, vector<8x32xf32>, vector<8x32xf32>, vector<8x32xf32>, vector<8x32xf32>, vector<8x32xf32>, vector<8x32xf32>, vector<8x32xf32>, vector<8x32xf32>, vector<8x32xf32>, vector<8x32xf32>, vector<8x32xf32> -> vector<128x32xf32>
    %c0_31 = arith.constant 0 : index
    %c0_32 = arith.constant 0 : index
    %141 = vector.load %arg3[%c0_31, %c0_32] : memref<176x384xf32, #tpu.memory_space<vmem>>, vector<32x96xf32>
    %c72 = arith.constant 72 : index
    %c0_33 = arith.constant 0 : index
    %142 = vector.load %arg3[%c72, %c0_33] : memref<176x384xf32, #tpu.memory_space<vmem>>, vector<96x384xf32>
    %c168 = arith.constant 168 : index
    %c0_34 = arith.constant 0 : index
    %143 = vector.load %arg3[%c168, %c0_34] : memref<176x384xf32, #tpu.memory_space<vmem>>, vector<1x384xf32>
    %c112 = arith.constant 112 : index
    %c0_35 = arith.constant 0 : index
    %144 = vector.load %arg2[%c112, %c0_35] : memref<328x32xf32, #tpu.memory_space<vmem>>, vector<128x32xf32>
    %c240 = arith.constant 240 : index
    %c0_36 = arith.constant 0 : index
    %145 = vector.load %arg2[%c240, %c0_36] : memref<328x32xf32, #tpu.memory_space<vmem>>, vector<1x32xf32>
    %c248 = arith.constant 248 : index
    %c0_37 = arith.constant 0 : index
    %146 = vector.load %arg2[%c248, %c0_37] : memref<328x32xf32, #tpu.memory_space<vmem>>, vector<32x32xf32>
    %c0_38 = arith.constant 0 : index
    %c0_39 = arith.constant 0 : index
    %147 = vector.load %arg2[%c0_38, %c0_39] : memref<328x32xf32, #tpu.memory_space<vmem>>, vector<16x32xf32>
    %148 = vector.extract_strided_slice %6 {offsets = [0, 0], sizes = [2, 16], strides = [1, 1]} : vector<16x16xf32> to vector<2x16xf32>
    %cst_40 = arith.constant dense<0.000000e+00> : vector<2x32xf32>
    %149 = tpu.matmul %148, %147, %cst_40 {dimension_numbers = #tpu.dot_dimension_numbers<[1], [0], [0], [1], [0, 0, 1, 1], [], []>} : vector<2x16xf32>, vector<16x32xf32>, vector<2x32xf32> -> vector<2x32xf32>
    %c0_41 = arith.constant 0 : index
    %c0_42 = arith.constant 0 : index
    %150 = vector.load %arg5[%c0_41, %c0_42] : memref<16x32xf32, #tpu.memory_space<vmem>>, vector<2x32xf32>
    tpu.vector_store %arg5[%c0_41, %c0_42], %149 {strides = array<i32>} : memref<16x32xf32, #tpu.memory_space<vmem>>, vector<2x32xf32>,
    %cst_43 = arith.constant dense<0.000000e+00> : vector<2x96xf32>
    %151 = tpu.matmul %149, %141, %cst_43 {dimension_numbers = #tpu.dot_dimension_numbers<[1], [0], [0], [1], [0, 0, 1, 1], [], []>} : vector<2x32xf32>, vector<32x96xf32>, vector<2x96xf32> -> vector<2x96xf32>
    %152 = vector.extract_strided_slice %24 {offsets = [0, 0], sizes = [2, 96], strides = [1, 1]} : vector<16x96xf32> to vector<2x96xf32>
    %153 = arith.addf %151, %152 : vector<2x96xf32>
    %154 = vector.extract_strided_slice %70 {offsets = [0, 0], sizes = [2, 96], strides = [1, 1]} : vector<16x96xf32> to vector<2x96xf32>
    %155 = arith.mulf %153, %154 : vector<2x96xf32>
    %156 = arith.negf %155 : vector<2x96xf32>
    %157 = math.exp %156 : vector<2x96xf32>
    %cst_44 = arith.constant 1.000000e+00 : f32
    %158 = vector.broadcast %cst_44 : f32 to vector<2x96xf32>
    %159 = arith.addf %158, %157 : vector<2x96xf32>
    %160 = arith.divf %158, %159 : vector<2x96xf32>
    %cst_45 = arith.constant dense<0.000000e+00> : vector<2x384xf32>
    %161 = tpu.matmul %160, %142, %cst_45 {dimension_numbers = #tpu.dot_dimension_numbers<[1], [0], [0], [1], [0, 0, 1, 1], [], []>} : vector<2x96xf32>, vector<96x384xf32>, vector<2x384xf32> -> vector<2x384xf32>
    %162 = vector.broadcast %143 : vector<1x384xf32> to vector<2x384xf32>
    %163 = arith.addf %161, %162 : vector<2x384xf32>
    %164 = vector.extract_strided_slice %163 {offsets = [0, 0], sizes = [2, 128], strides = [1, 1]} : vector<2x384xf32> to vector<2x128xf32>
    %165 = vector.extract_strided_slice %163 {offsets = [0, 128], sizes = [2, 128], strides = [1, 1]} : vector<2x384xf32> to vector<2x128xf32>
    %166 = arith.mulf %164, %165 : vector<2x128xf32>
    %167 = vector.extract_strided_slice %163 {offsets = [0, 256], sizes = [2, 128], strides = [1, 1]} : vector<2x384xf32> to vector<2x128xf32>
    %168 = arith.mulf %166, %167 : vector<2x128xf32>
    %cst_46 = arith.constant dense<0.000000e+00> : vector<2x32xf32>
    %169 = tpu.matmul %168, %144, %cst_46 {dimension_numbers = #tpu.dot_dimension_numbers<[1], [0], [0], [1], [0, 0, 1, 1], [], []>} : vector<2x128xf32>, vector<128x32xf32>, vector<2x32xf32> -> vector<2x32xf32>
    %170 = vector.broadcast %145 : vector<1x32xf32> to vector<2x32xf32>
    %171 = arith.addf %169, %170 : vector<2x32xf32>
    %cst_47 = arith.constant 0.000000e+00 : f32
    %172 = vector.broadcast %cst_47 : f32 to vector<2x32xf32>
    %173 = arith.maximumf %171, %172 : vector<2x32xf32>
    %cst_48 = arith.constant dense<0.000000e+00> : vector<16x32xf32>
    %174 = tpu.matmul %147, %146, %cst_48 {dimension_numbers = #tpu.dot_dimension_numbers<[1], [0], [0], [1], [0, 0, 1, 1], [], []>} : vector<16x32xf32>, vector<32x32xf32>, vector<16x32xf32> -> vector<16x32xf32>
    %175 = vector.extract_strided_slice %140 {offsets = [0, 0], sizes = [16, 32], strides = [1, 1]} : vector<128x32xf32> to vector<16x32xf32>
    %176 = arith.addf %174, %175 : vector<16x32xf32>
    %177 = arith.negf %176 : vector<16x32xf32>
    %178 = math.exp %177 : vector<16x32xf32>
    %cst_49 = arith.constant 1.000000e+00 : f32
    %179 = vector.broadcast %cst_49 : f32 to vector<16x32xf32>
    %180 = arith.addf %179, %178 : vector<16x32xf32>
    %181 = arith.divf %179, %180 : vector<16x32xf32>
    %182 = arith.mulf %147, %181 : vector<16x32xf32>
    %183 = vector.extract_strided_slice %7 {offsets = [0, 0], sizes = [16, 32], strides = [1, 1]} : vector<128x32xf32> to vector<16x32xf32>
    %184 = vector.extract_strided_slice %173 {offsets = [0, 0], sizes = [1, 32], strides = [1, 1]} : vector<2x32xf32> to vector<1x32xf32>
    %185 = vector.shape_cast %184 : vector<1x32xf32> to vector<1x32xf32>
    %186 = vector.broadcast %185 : vector<1x32xf32> to vector<8x32xf32>
    %187 = vector.extract_strided_slice %173 {offsets = [1, 0], sizes = [1, 32], strides = [1, 1]} : vector<2x32xf32> to vector<1x32xf32>
    %188 = vector.shape_cast %187 : vector<1x32xf32> to vector<1x32xf32>
    %189 = vector.broadcast %188 : vector<1x32xf32> to vector<8x32xf32>
    %190 = tpu.concatenate %186, %189 in 0 : vector<8x32xf32>, vector<8x32xf32> -> vector<16x32xf32>
    %191 = arith.mulf %183, %190 : vector<16x32xf32>
    %192 = arith.addf %182, %191 : vector<16x32xf32>
    %193 = vector.extract_strided_slice %6 {offsets = [2, 0], sizes = [2, 16], strides = [1, 1]} : vector<16x16xf32> to vector<2x16xf32>
    %cst_50 = arith.constant dense<0.000000e+00> : vector<2x32xf32>
    %194 = tpu.matmul %193, %192, %cst_50 {dimension_numbers = #tpu.dot_dimension_numbers<[1], [0], [0], [1], [0, 0, 1, 1], [], []>} : vector<2x16xf32>, vector<16x32xf32>, vector<2x32xf32> -> vector<2x32xf32>
    %c2 = arith.constant 2 : index
    %c0_51 = arith.constant 0 : index
    %195 = vector.load %arg5[%c2, %c0_51] : memref<16x32xf32, #tpu.memory_space<vmem>>, vector<2x32xf32>
    tpu.vector_store %arg5[%c2, %c0_51], %194 {strides = array<i32>} : memref<16x32xf32, #tpu.memory_space<vmem>>, vector<2x32xf32>,
    %cst_52 = arith.constant dense<0.000000e+00> : vector<2x96xf32>
    %196 = tpu.matmul %194, %141, %cst_52 {dimension_numbers = #tpu.dot_dimension_numbers<[1], [0], [0], [1], [0, 0, 1, 1], [], []>} : vector<2x32xf32>, vector<32x96xf32>, vector<2x96xf32> -> vector<2x96xf32>
    %197 = vector.extract_strided_slice %24 {offsets = [2, 0], sizes = [2, 96], strides = [1, 1]} : vector<16x96xf32> to vector<2x96xf32>
    %198 = arith.addf %196, %197 : vector<2x96xf32>
    %199 = vector.extract_strided_slice %70 {offsets = [2, 0], sizes = [2, 96], strides = [1, 1]} : vector<16x96xf32> to vector<2x96xf32>
    %200 = arith.mulf %198, %199 : vector<2x96xf32>
    %201 = arith.negf %200 : vector<2x96xf32>
    %202 = math.exp %201 : vector<2x96xf32>
    %cst_53 = arith.constant 1.000000e+00 : f32
    %203 = vector.broadcast %cst_53 : f32 to vector<2x96xf32>
    %204 = arith.addf %203, %202 : vector<2x96xf32>
    %205 = arith.divf %203, %204 : vector<2x96xf32>
    %cst_54 = arith.constant dense<0.000000e+00> : vector<2x384xf32>
    %206 = tpu.matmul %205, %142, %cst_54 {dimension_numbers = #tpu.dot_dimension_numbers<[1], [0], [0], [1], [0, 0, 1, 1], [], []>} : vector<2x96xf32>, vector<96x384xf32>, vector<2x384xf32> -> vector<2x384xf32>
    %207 = vector.broadcast %143 : vector<1x384xf32> to vector<2x384xf32>
    %208 = arith.addf %206, %207 : vector<2x384xf32>
    %209 = vector.extract_strided_slice %208 {offsets = [0, 0], sizes = [2, 128], strides = [1, 1]} : vector<2x384xf32> to vector<2x128xf32>
    %210 = vector.extract_strided_slice %208 {offsets = [0, 128], sizes = [2, 128], strides = [1, 1]} : vector<2x384xf32> to vector<2x128xf32>
    %211 = arith.mulf %209, %210 : vector<2x128xf32>
    %212 = vector.extract_strided_slice %208 {offsets = [0, 256], sizes = [2, 128], strides = [1, 1]} : vector<2x384xf32> to vector<2x128xf32>
    %213 = arith.mulf %211, %212 : vector<2x128xf32>
    %cst_55 = arith.constant dense<0.000000e+00> : vector<2x32xf32>
    %214 = tpu.matmul %213, %144, %cst_55 {dimension_numbers = #tpu.dot_dimension_numbers<[1], [0], [0], [1], [0, 0, 1, 1], [], []>} : vector<2x128xf32>, vector<128x32xf32>, vector<2x32xf32> -> vector<2x32xf32>
    %215 = vector.broadcast %145 : vector<1x32xf32> to vector<2x32xf32>
    %216 = arith.addf %214, %215 : vector<2x32xf32>
    %cst_56 = arith.constant 0.000000e+00 : f32
    %217 = vector.broadcast %cst_56 : f32 to vector<2x32xf32>
    %218 = arith.maximumf %216, %217 : vector<2x32xf32>
    %cst_57 = arith.constant dense<0.000000e+00> : vector<16x32xf32>
    %219 = tpu.matmul %192, %146, %cst_57 {dimension_numbers = #tpu.dot_dimension_numbers<[1], [0], [0], [1], [0, 0, 1, 1], [], []>} : vector<16x32xf32>, vector<32x32xf32>, vector<16x32xf32> -> vector<16x32xf32>
    %220 = vector.extract_strided_slice %140 {offsets = [16, 0], sizes = [16, 32], strides = [1, 1]} : vector<128x32xf32> to vector<16x32xf32>
    %221 = arith.addf %219, %220 : vector<16x32xf32>
    %222 = arith.negf %221 : vector<16x32xf32>
    %223 = math.exp %222 : vector<16x32xf32>
    %cst_58 = arith.constant 1.000000e+00 : f32
    %224 = vector.broadcast %cst_58 : f32 to vector<16x32xf32>
    %225 = arith.addf %224, %223 : vector<16x32xf32>
    %226 = arith.divf %224, %225 : vector<16x32xf32>
    %227 = arith.mulf %192, %226 : vector<16x32xf32>
    %228 = vector.extract_strided_slice %7 {offsets = [16, 0], sizes = [16, 32], strides = [1, 1]} : vector<128x32xf32> to vector<16x32xf32>
    %229 = vector.extract_strided_slice %218 {offsets = [0, 0], sizes = [1, 32], strides = [1, 1]} : vector<2x32xf32> to vector<1x32xf32>
    %230 = vector.shape_cast %229 : vector<1x32xf32> to vector<1x32xf32>
    %231 = vector.broadcast %230 : vector<1x32xf32> to vector<8x32xf32>
    %232 = vector.extract_strided_slice %218 {offsets = [1, 0], sizes = [1, 32], strides = [1, 1]} : vector<2x32xf32> to vector<1x32xf32>
    %233 = vector.shape_cast %232 : vector<1x32xf32> to vector<1x32xf32>
    %234 = vector.broadcast %233 : vector<1x32xf32> to vector<8x32xf32>
    %235 = tpu.concatenate %231, %234 in 0 : vector<8x32xf32>, vector<8x32xf32> -> vector<16x32xf32>
    %236 = arith.mulf %228, %235 : vector<16x32xf32>
    %237 = arith.addf %227, %236 : vector<16x32xf32>
    %238 = vector.extract_strided_slice %6 {offsets = [4, 0], sizes = [2, 16], strides = [1, 1]} : vector<16x16xf32> to vector<2x16xf32>
    %cst_59 = arith.constant dense<0.000000e+00> : vector<2x32xf32>
    %239 = tpu.matmul %238, %237, %cst_59 {dimension_numbers = #tpu.dot_dimension_numbers<[1], [0], [0], [1], [0, 0, 1, 1], [], []>} : vector<2x16xf32>, vector<16x32xf32>, vector<2x32xf32> -> vector<2x32xf32>
    %c4 = arith.constant 4 : index
    %c0_60 = arith.constant 0 : index
    %240 = vector.load %arg5[%c4, %c0_60] : memref<16x32xf32, #tpu.memory_space<vmem>>, vector<2x32xf32>
    tpu.vector_store %arg5[%c4, %c0_60], %239 {strides = array<i32>} : memref<16x32xf32, #tpu.memory_space<vmem>>, vector<2x32xf32>,
    %cst_61 = arith.constant dense<0.000000e+00> : vector<2x96xf32>
    %241 = tpu.matmul %239, %141, %cst_61 {dimension_numbers = #tpu.dot_dimension_numbers<[1], [0], [0], [1], [0, 0, 1, 1], [], []>} : vector<2x32xf32>, vector<32x96xf32>, vector<2x96xf32> -> vector<2x96xf32>
    %242 = vector.extract_strided_slice %24 {offsets = [4, 0], sizes = [2, 96], strides = [1, 1]} : vector<16x96xf32> to vector<2x96xf32>
    %243 = arith.addf %241, %242 : vector<2x96xf32>
    %244 = vector.extract_strided_slice %70 {offsets = [4, 0], sizes = [2, 96], strides = [1, 1]} : vector<16x96xf32> to vector<2x96xf32>
    %245 = arith.mulf %243, %244 : vector<2x96xf32>
    %246 = arith.negf %245 : vector<2x96xf32>
    %247 = math.exp %246 : vector<2x96xf32>
    %cst_62 = arith.constant 1.000000e+00 : f32
    %248 = vector.broadcast %cst_62 : f32 to vector<2x96xf32>
    %249 = arith.addf %248, %247 : vector<2x96xf32>
    %250 = arith.divf %248, %249 : vector<2x96xf32>
    %cst_63 = arith.constant dense<0.000000e+00> : vector<2x384xf32>
    %251 = tpu.matmul %250, %142, %cst_63 {dimension_numbers = #tpu.dot_dimension_numbers<[1], [0], [0], [1], [0, 0, 1, 1], [], []>} : vector<2x96xf32>, vector<96x384xf32>, vector<2x384xf32> -> vector<2x384xf32>
    %252 = vector.broadcast %143 : vector<1x384xf32> to vector<2x384xf32>
    %253 = arith.addf %251, %252 : vector<2x384xf32>
    %254 = vector.extract_strided_slice %253 {offsets = [0, 0], sizes = [2, 128], strides = [1, 1]} : vector<2x384xf32> to vector<2x128xf32>
    %255 = vector.extract_strided_slice %253 {offsets = [0, 128], sizes = [2, 128], strides = [1, 1]} : vector<2x384xf32> to vector<2x128xf32>
    %256 = arith.mulf %254, %255 : vector<2x128xf32>
    %257 = vector.extract_strided_slice %253 {offsets = [0, 256], sizes = [2, 128], strides = [1, 1]} : vector<2x384xf32> to vector<2x128xf32>
    %258 = arith.mulf %256, %257 : vector<2x128xf32>
    %cst_64 = arith.constant dense<0.000000e+00> : vector<2x32xf32>
    %259 = tpu.matmul %258, %144, %cst_64 {dimension_numbers = #tpu.dot_dimension_numbers<[1], [0], [0], [1], [0, 0, 1, 1], [], []>} : vector<2x128xf32>, vector<128x32xf32>, vector<2x32xf32> -> vector<2x32xf32>
    %260 = vector.broadcast %145 : vector<1x32xf32> to vector<2x32xf32>
    %261 = arith.addf %259, %260 : vector<2x32xf32>
    %cst_65 = arith.constant 0.000000e+00 : f32
    %262 = vector.broadcast %cst_65 : f32 to vector<2x32xf32>
    %263 = arith.maximumf %261, %262 : vector<2x32xf32>
    %cst_66 = arith.constant dense<0.000000e+00> : vector<16x32xf32>
    %264 = tpu.matmul %237, %146, %cst_66 {dimension_numbers = #tpu.dot_dimension_numbers<[1], [0], [0], [1], [0, 0, 1, 1], [], []>} : vector<16x32xf32>, vector<32x32xf32>, vector<16x32xf32> -> vector<16x32xf32>
    %265 = vector.extract_strided_slice %140 {offsets = [32, 0], sizes = [16, 32], strides = [1, 1]} : vector<128x32xf32> to vector<16x32xf32>
    %266 = arith.addf %264, %265 : vector<16x32xf32>
    %267 = arith.negf %266 : vector<16x32xf32>
    %268 = math.exp %267 : vector<16x32xf32>
    %cst_67 = arith.constant 1.000000e+00 : f32
    %269 = vector.broadcast %cst_67 : f32 to vector<16x32xf32>
    %270 = arith.addf %269, %268 : vector<16x32xf32>
    %271 = arith.divf %269, %270 : vector<16x32xf32>
    %272 = arith.mulf %237, %271 : vector<16x32xf32>
    %273 = vector.extract_strided_slice %7 {offsets = [32, 0], sizes = [16, 32], strides = [1, 1]} : vector<128x32xf32> to vector<16x32xf32>
    %274 = vector.extract_strided_slice %263 {offsets = [0, 0], sizes = [1, 32], strides = [1, 1]} : vector<2x32xf32> to vector<1x32xf32>
    %275 = vector.shape_cast %274 : vector<1x32xf32> to vector<1x32xf32>
    %276 = vector.broadcast %275 : vector<1x32xf32> to vector<8x32xf32>
    %277 = vector.extract_strided_slice %263 {offsets = [1, 0], sizes = [1, 32], strides = [1, 1]} : vector<2x32xf32> to vector<1x32xf32>
    %278 = vector.shape_cast %277 : vector<1x32xf32> to vector<1x32xf32>
    %279 = vector.broadcast %278 : vector<1x32xf32> to vector<8x32xf32>
    %280 = tpu.concatenate %276, %279 in 0 : vector<8x32xf32>, vector<8x32xf32> -> vector<16x32xf32>
    %281 = arith.mulf %273, %280 : vector<16x32xf32>
    %282 = arith.addf %272, %281 : vector<16x32xf32>
    %283 = vector.extract_strided_slice %6 {offsets = [6, 0], sizes = [2, 16], strides = [1, 1]} : vector<16x16xf32> to vector<2x16xf32>
    %cst_68 = arith.constant dense<0.000000e+00> : vector<2x32xf32>
    %284 = tpu.matmul %283, %282, %cst_68 {dimension_numbers = #tpu.dot_dimension_numbers<[1], [0], [0], [1], [0, 0, 1, 1], [], []>} : vector<2x16xf32>, vector<16x32xf32>, vector<2x32xf32> -> vector<2x32xf32>
    %c6 = arith.constant 6 : index
    %c0_69 = arith.constant 0 : index
    %285 = vector.load %arg5[%c6, %c0_69] : memref<16x32xf32, #tpu.memory_space<vmem>>, vector<2x32xf32>
    tpu.vector_store %arg5[%c6, %c0_69], %284 {strides = array<i32>} : memref<16x32xf32, #tpu.memory_space<vmem>>, vector<2x32xf32>,
    %cst_70 = arith.constant dense<0.000000e+00> : vector<2x96xf32>
    %286 = tpu.matmul %284, %141, %cst_70 {dimension_numbers = #tpu.dot_dimension_numbers<[1], [0], [0], [1], [0, 0, 1, 1], [], []>} : vector<2x32xf32>, vector<32x96xf32>, vector<2x96xf32> -> vector<2x96xf32>
    %287 = vector.extract_strided_slice %24 {offsets = [6, 0], sizes = [2, 96], strides = [1, 1]} : vector<16x96xf32> to vector<2x96xf32>
    %288 = arith.addf %286, %287 : vector<2x96xf32>
    %289 = vector.extract_strided_slice %70 {offsets = [6, 0], sizes = [2, 96], strides = [1, 1]} : vector<16x96xf32> to vector<2x96xf32>
    %290 = arith.mulf %288, %289 : vector<2x96xf32>
    %291 = arith.negf %290 : vector<2x96xf32>
    %292 = math.exp %291 : vector<2x96xf32>
    %cst_71 = arith.constant 1.000000e+00 : f32
    %293 = vector.broadcast %cst_71 : f32 to vector<2x96xf32>
    %294 = arith.addf %293, %292 : vector<2x96xf32>
    %295 = arith.divf %293, %294 : vector<2x96xf32>
    %cst_72 = arith.constant dense<0.000000e+00> : vector<2x384xf32>
    %296 = tpu.matmul %295, %142, %cst_72 {dimension_numbers = #tpu.dot_dimension_numbers<[1], [0], [0], [1], [0, 0, 1, 1], [], []>} : vector<2x96xf32>, vector<96x384xf32>, vector<2x384xf32> -> vector<2x384xf32>
    %297 = vector.broadcast %143 : vector<1x384xf32> to vector<2x384xf32>
    %298 = arith.addf %296, %297 : vector<2x384xf32>
    %299 = vector.extract_strided_slice %298 {offsets = [0, 0], sizes = [2, 128], strides = [1, 1]} : vector<2x384xf32> to vector<2x128xf32>
    %300 = vector.extract_strided_slice %298 {offsets = [0, 128], sizes = [2, 128], strides = [1, 1]} : vector<2x384xf32> to vector<2x128xf32>
    %301 = arith.mulf %299, %300 : vector<2x128xf32>
    %302 = vector.extract_strided_slice %298 {offsets = [0, 256], sizes = [2, 128], strides = [1, 1]} : vector<2x384xf32> to vector<2x128xf32>
    %303 = arith.mulf %301, %302 : vector<2x128xf32>
    %cst_73 = arith.constant dense<0.000000e+00> : vector<2x32xf32>
    %304 = tpu.matmul %303, %144, %cst_73 {dimension_numbers = #tpu.dot_dimension_numbers<[1], [0], [0], [1], [0, 0, 1, 1], [], []>} : vector<2x128xf32>, vector<128x32xf32>, vector<2x32xf32> -> vector<2x32xf32>
    %305 = vector.broadcast %145 : vector<1x32xf32> to vector<2x32xf32>
    %306 = arith.addf %304, %305 : vector<2x32xf32>
    %cst_74 = arith.constant 0.000000e+00 : f32
    %307 = vector.broadcast %cst_74 : f32 to vector<2x32xf32>
    %308 = arith.maximumf %306, %307 : vector<2x32xf32>
    %cst_75 = arith.constant dense<0.000000e+00> : vector<16x32xf32>
    %309 = tpu.matmul %282, %146, %cst_75 {dimension_numbers = #tpu.dot_dimension_numbers<[1], [0], [0], [1], [0, 0, 1, 1], [], []>} : vector<16x32xf32>, vector<32x32xf32>, vector<16x32xf32> -> vector<16x32xf32>
    %310 = vector.extract_strided_slice %140 {offsets = [48, 0], sizes = [16, 32], strides = [1, 1]} : vector<128x32xf32> to vector<16x32xf32>
    %311 = arith.addf %309, %310 : vector<16x32xf32>
    %312 = arith.negf %311 : vector<16x32xf32>
    %313 = math.exp %312 : vector<16x32xf32>
    %cst_76 = arith.constant 1.000000e+00 : f32
    %314 = vector.broadcast %cst_76 : f32 to vector<16x32xf32>
    %315 = arith.addf %314, %313 : vector<16x32xf32>
    %316 = arith.divf %314, %315 : vector<16x32xf32>
    %317 = arith.mulf %282, %316 : vector<16x32xf32>
    %318 = vector.extract_strided_slice %7 {offsets = [48, 0], sizes = [16, 32], strides = [1, 1]} : vector<128x32xf32> to vector<16x32xf32>
    %319 = vector.extract_strided_slice %308 {offsets = [0, 0], sizes = [1, 32], strides = [1, 1]} : vector<2x32xf32> to vector<1x32xf32>
    %320 = vector.shape_cast %319 : vector<1x32xf32> to vector<1x32xf32>
    %321 = vector.broadcast %320 : vector<1x32xf32> to vector<8x32xf32>
    %322 = vector.extract_strided_slice %308 {offsets = [1, 0], sizes = [1, 32], strides = [1, 1]} : vector<2x32xf32> to vector<1x32xf32>
    %323 = vector.shape_cast %322 : vector<1x32xf32> to vector<1x32xf32>
    %324 = vector.broadcast %323 : vector<1x32xf32> to vector<8x32xf32>
    %325 = tpu.concatenate %321, %324 in 0 : vector<8x32xf32>, vector<8x32xf32> -> vector<16x32xf32>
    %326 = arith.mulf %318, %325 : vector<16x32xf32>
    %327 = arith.addf %317, %326 : vector<16x32xf32>
    %328 = vector.extract_strided_slice %6 {offsets = [8, 0], sizes = [2, 16], strides = [1, 1]} : vector<16x16xf32> to vector<2x16xf32>
    %cst_77 = arith.constant dense<0.000000e+00> : vector<2x32xf32>
    %329 = tpu.matmul %328, %327, %cst_77 {dimension_numbers = #tpu.dot_dimension_numbers<[1], [0], [0], [1], [0, 0, 1, 1], [], []>} : vector<2x16xf32>, vector<16x32xf32>, vector<2x32xf32> -> vector<2x32xf32>
    %c8 = arith.constant 8 : index
    %c0_78 = arith.constant 0 : index
    %330 = vector.load %arg5[%c8, %c0_78] : memref<16x32xf32, #tpu.memory_space<vmem>>, vector<2x32xf32>
    tpu.vector_store %arg5[%c8, %c0_78], %329 {strides = array<i32>} : memref<16x32xf32, #tpu.memory_space<vmem>>, vector<2x32xf32>,
    %cst_79 = arith.constant dense<0.000000e+00> : vector<2x96xf32>
    %331 = tpu.matmul %329, %141, %cst_79 {dimension_numbers = #tpu.dot_dimension_numbers<[1], [0], [0], [1], [0, 0, 1, 1], [], []>} : vector<2x32xf32>, vector<32x96xf32>, vector<2x96xf32> -> vector<2x96xf32>
    %332 = vector.extract_strided_slice %24 {offsets = [8, 0], sizes = [2, 96], strides = [1, 1]} : vector<16x96xf32> to vector<2x96xf32>
    %333 = arith.addf %331, %332 : vector<2x96xf32>
    %334 = vector.extract_strided_slice %70 {offsets = [8, 0], sizes = [2, 96], strides = [1, 1]} : vector<16x96xf32> to vector<2x96xf32>
    %335 = arith.mulf %333, %334 : vector<2x96xf32>
    %336 = arith.negf %335 : vector<2x96xf32>
    %337 = math.exp %336 : vector<2x96xf32>
    %cst_80 = arith.constant 1.000000e+00 : f32
    %338 = vector.broadcast %cst_80 : f32 to vector<2x96xf32>
    %339 = arith.addf %338, %337 : vector<2x96xf32>
    %340 = arith.divf %338, %339 : vector<2x96xf32>
    %cst_81 = arith.constant dense<0.000000e+00> : vector<2x384xf32>
    %341 = tpu.matmul %340, %142, %cst_81 {dimension_numbers = #tpu.dot_dimension_numbers<[1], [0], [0], [1], [0, 0, 1, 1], [], []>} : vector<2x96xf32>, vector<96x384xf32>, vector<2x384xf32> -> vector<2x384xf32>
    %342 = vector.broadcast %143 : vector<1x384xf32> to vector<2x384xf32>
    %343 = arith.addf %341, %342 : vector<2x384xf32>
    %344 = vector.extract_strided_slice %343 {offsets = [0, 0], sizes = [2, 128], strides = [1, 1]} : vector<2x384xf32> to vector<2x128xf32>
    %345 = vector.extract_strided_slice %343 {offsets = [0, 128], sizes = [2, 128], strides = [1, 1]} : vector<2x384xf32> to vector<2x128xf32>
    %346 = arith.mulf %344, %345 : vector<2x128xf32>
    %347 = vector.extract_strided_slice %343 {offsets = [0, 256], sizes = [2, 128], strides = [1, 1]} : vector<2x384xf32> to vector<2x128xf32>
    %348 = arith.mulf %346, %347 : vector<2x128xf32>
    %cst_82 = arith.constant dense<0.000000e+00> : vector<2x32xf32>
    %349 = tpu.matmul %348, %144, %cst_82 {dimension_numbers = #tpu.dot_dimension_numbers<[1], [0], [0], [1], [0, 0, 1, 1], [], []>} : vector<2x128xf32>, vector<128x32xf32>, vector<2x32xf32> -> vector<2x32xf32>
    %350 = vector.broadcast %145 : vector<1x32xf32> to vector<2x32xf32>
    %351 = arith.addf %349, %350 : vector<2x32xf32>
    %cst_83 = arith.constant 0.000000e+00 : f32
    %352 = vector.broadcast %cst_83 : f32 to vector<2x32xf32>
    %353 = arith.maximumf %351, %352 : vector<2x32xf32>
    %cst_84 = arith.constant dense<0.000000e+00> : vector<16x32xf32>
    %354 = tpu.matmul %327, %146, %cst_84 {dimension_numbers = #tpu.dot_dimension_numbers<[1], [0], [0], [1], [0, 0, 1, 1], [], []>} : vector<16x32xf32>, vector<32x32xf32>, vector<16x32xf32> -> vector<16x32xf32>
    %355 = vector.extract_strided_slice %140 {offsets = [64, 0], sizes = [16, 32], strides = [1, 1]} : vector<128x32xf32> to vector<16x32xf32>
    %356 = arith.addf %354, %355 : vector<16x32xf32>
    %357 = arith.negf %356 : vector<16x32xf32>
    %358 = math.exp %357 : vector<16x32xf32>
    %cst_85 = arith.constant 1.000000e+00 : f32
    %359 = vector.broadcast %cst_85 : f32 to vector<16x32xf32>
    %360 = arith.addf %359, %358 : vector<16x32xf32>
    %361 = arith.divf %359, %360 : vector<16x32xf32>
    %362 = arith.mulf %327, %361 : vector<16x32xf32>
    %363 = vector.extract_strided_slice %7 {offsets = [64, 0], sizes = [16, 32], strides = [1, 1]} : vector<128x32xf32> to vector<16x32xf32>
    %364 = vector.extract_strided_slice %353 {offsets = [0, 0], sizes = [1, 32], strides = [1, 1]} : vector<2x32xf32> to vector<1x32xf32>
    %365 = vector.shape_cast %364 : vector<1x32xf32> to vector<1x32xf32>
    %366 = vector.broadcast %365 : vector<1x32xf32> to vector<8x32xf32>
    %367 = vector.extract_strided_slice %353 {offsets = [1, 0], sizes = [1, 32], strides = [1, 1]} : vector<2x32xf32> to vector<1x32xf32>
    %368 = vector.shape_cast %367 : vector<1x32xf32> to vector<1x32xf32>
    %369 = vector.broadcast %368 : vector<1x32xf32> to vector<8x32xf32>
    %370 = tpu.concatenate %366, %369 in 0 : vector<8x32xf32>, vector<8x32xf32> -> vector<16x32xf32>
    %371 = arith.mulf %363, %370 : vector<16x32xf32>
    %372 = arith.addf %362, %371 : vector<16x32xf32>
    %373 = vector.extract_strided_slice %6 {offsets = [10, 0], sizes = [2, 16], strides = [1, 1]} : vector<16x16xf32> to vector<2x16xf32>
    %cst_86 = arith.constant dense<0.000000e+00> : vector<2x32xf32>
    %374 = tpu.matmul %373, %372, %cst_86 {dimension_numbers = #tpu.dot_dimension_numbers<[1], [0], [0], [1], [0, 0, 1, 1], [], []>} : vector<2x16xf32>, vector<16x32xf32>, vector<2x32xf32> -> vector<2x32xf32>
    %c10 = arith.constant 10 : index
    %c0_87 = arith.constant 0 : index
    %375 = vector.load %arg5[%c10, %c0_87] : memref<16x32xf32, #tpu.memory_space<vmem>>, vector<2x32xf32>
    tpu.vector_store %arg5[%c10, %c0_87], %374 {strides = array<i32>} : memref<16x32xf32, #tpu.memory_space<vmem>>, vector<2x32xf32>,
    %cst_88 = arith.constant dense<0.000000e+00> : vector<2x96xf32>
    %376 = tpu.matmul %374, %141, %cst_88 {dimension_numbers = #tpu.dot_dimension_numbers<[1], [0], [0], [1], [0, 0, 1, 1], [], []>} : vector<2x32xf32>, vector<32x96xf32>, vector<2x96xf32> -> vector<2x96xf32>
    %377 = vector.extract_strided_slice %24 {offsets = [10, 0], sizes = [2, 96], strides = [1, 1]} : vector<16x96xf32> to vector<2x96xf32>
    %378 = arith.addf %376, %377 : vector<2x96xf32>
    %379 = vector.extract_strided_slice %70 {offsets = [10, 0], sizes = [2, 96], strides = [1, 1]} : vector<16x96xf32> to vector<2x96xf32>
    %380 = arith.mulf %378, %379 : vector<2x96xf32>
    %381 = arith.negf %380 : vector<2x96xf32>
    %382 = math.exp %381 : vector<2x96xf32>
    %cst_89 = arith.constant 1.000000e+00 : f32
    %383 = vector.broadcast %cst_89 : f32 to vector<2x96xf32>
    %384 = arith.addf %383, %382 : vector<2x96xf32>
    %385 = arith.divf %383, %384 : vector<2x96xf32>
    %cst_90 = arith.constant dense<0.000000e+00> : vector<2x384xf32>
    %386 = tpu.matmul %385, %142, %cst_90 {dimension_numbers = #tpu.dot_dimension_numbers<[1], [0], [0], [1], [0, 0, 1, 1], [], []>} : vector<2x96xf32>, vector<96x384xf32>, vector<2x384xf32> -> vector<2x384xf32>
    %387 = vector.broadcast %143 : vector<1x384xf32> to vector<2x384xf32>
    %388 = arith.addf %386, %387 : vector<2x384xf32>
    %389 = vector.extract_strided_slice %388 {offsets = [0, 0], sizes = [2, 128], strides = [1, 1]} : vector<2x384xf32> to vector<2x128xf32>
    %390 = vector.extract_strided_slice %388 {offsets = [0, 128], sizes = [2, 128], strides = [1, 1]} : vector<2x384xf32> to vector<2x128xf32>
    %391 = arith.mulf %389, %390 : vector<2x128xf32>
    %392 = vector.extract_strided_slice %388 {offsets = [0, 256], sizes = [2, 128], strides = [1, 1]} : vector<2x384xf32> to vector<2x128xf32>
    %393 = arith.mulf %391, %392 : vector<2x128xf32>
    %cst_91 = arith.constant dense<0.000000e+00> : vector<2x32xf32>
    %394 = tpu.matmul %393, %144, %cst_91 {dimension_numbers = #tpu.dot_dimension_numbers<[1], [0], [0], [1], [0, 0, 1, 1], [], []>} : vector<2x128xf32>, vector<128x32xf32>, vector<2x32xf32> -> vector<2x32xf32>
    %395 = vector.broadcast %145 : vector<1x32xf32> to vector<2x32xf32>
    %396 = arith.addf %394, %395 : vector<2x32xf32>
    %cst_92 = arith.constant 0.000000e+00 : f32
    %397 = vector.broadcast %cst_92 : f32 to vector<2x32xf32>
    %398 = arith.maximumf %396, %397 : vector<2x32xf32>
    %cst_93 = arith.constant dense<0.000000e+00> : vector<16x32xf32>
    %399 = tpu.matmul %372, %146, %cst_93 {dimension_numbers = #tpu.dot_dimension_numbers<[1], [0], [0], [1], [0, 0, 1, 1], [], []>} : vector<16x32xf32>, vector<32x32xf32>, vector<16x32xf32> -> vector<16x32xf32>
    %400 = vector.extract_strided_slice %140 {offsets = [80, 0], sizes = [16, 32], strides = [1, 1]} : vector<128x32xf32> to vector<16x32xf32>
    %401 = arith.addf %399, %400 : vector<16x32xf32>
    %402 = arith.negf %401 : vector<16x32xf32>
    %403 = math.exp %402 : vector<16x32xf32>
    %cst_94 = arith.constant 1.000000e+00 : f32
    %404 = vector.broadcast %cst_94 : f32 to vector<16x32xf32>
    %405 = arith.addf %404, %403 : vector<16x32xf32>
    %406 = arith.divf %404, %405 : vector<16x32xf32>
    %407 = arith.mulf %372, %406 : vector<16x32xf32>
    %408 = vector.extract_strided_slice %7 {offsets = [80, 0], sizes = [16, 32], strides = [1, 1]} : vector<128x32xf32> to vector<16x32xf32>
    %409 = vector.extract_strided_slice %398 {offsets = [0, 0], sizes = [1, 32], strides = [1, 1]} : vector<2x32xf32> to vector<1x32xf32>
    %410 = vector.shape_cast %409 : vector<1x32xf32> to vector<1x32xf32>
    %411 = vector.broadcast %410 : vector<1x32xf32> to vector<8x32xf32>
    %412 = vector.extract_strided_slice %398 {offsets = [1, 0], sizes = [1, 32], strides = [1, 1]} : vector<2x32xf32> to vector<1x32xf32>
    %413 = vector.shape_cast %412 : vector<1x32xf32> to vector<1x32xf32>
    %414 = vector.broadcast %413 : vector<1x32xf32> to vector<8x32xf32>
    %415 = tpu.concatenate %411, %414 in 0 : vector<8x32xf32>, vector<8x32xf32> -> vector<16x32xf32>
    %416 = arith.mulf %408, %415 : vector<16x32xf32>
    %417 = arith.addf %407, %416 : vector<16x32xf32>
    %418 = vector.extract_strided_slice %6 {offsets = [12, 0], sizes = [2, 16], strides = [1, 1]} : vector<16x16xf32> to vector<2x16xf32>
    %cst_95 = arith.constant dense<0.000000e+00> : vector<2x32xf32>
    %419 = tpu.matmul %418, %417, %cst_95 {dimension_numbers = #tpu.dot_dimension_numbers<[1], [0], [0], [1], [0, 0, 1, 1], [], []>} : vector<2x16xf32>, vector<16x32xf32>, vector<2x32xf32> -> vector<2x32xf32>
    %c12 = arith.constant 12 : index
    %c0_96 = arith.constant 0 : index
    %420 = vector.load %arg5[%c12, %c0_96] : memref<16x32xf32, #tpu.memory_space<vmem>>, vector<2x32xf32>
    tpu.vector_store %arg5[%c12, %c0_96], %419 {strides = array<i32>} : memref<16x32xf32, #tpu.memory_space<vmem>>, vector<2x32xf32>,
    %cst_97 = arith.constant dense<0.000000e+00> : vector<2x96xf32>
    %421 = tpu.matmul %419, %141, %cst_97 {dimension_numbers = #tpu.dot_dimension_numbers<[1], [0], [0], [1], [0, 0, 1, 1], [], []>} : vector<2x32xf32>, vector<32x96xf32>, vector<2x96xf32> -> vector<2x96xf32>
    %422 = vector.extract_strided_slice %24 {offsets = [12, 0], sizes = [2, 96], strides = [1, 1]} : vector<16x96xf32> to vector<2x96xf32>
    %423 = arith.addf %421, %422 : vector<2x96xf32>
    %424 = vector.extract_strided_slice %70 {offsets = [12, 0], sizes = [2, 96], strides = [1, 1]} : vector<16x96xf32> to vector<2x96xf32>
    %425 = arith.mulf %423, %424 : vector<2x96xf32>
    %426 = arith.negf %425 : vector<2x96xf32>
    %427 = math.exp %426 : vector<2x96xf32>
    %cst_98 = arith.constant 1.000000e+00 : f32
    %428 = vector.broadcast %cst_98 : f32 to vector<2x96xf32>
    %429 = arith.addf %428, %427 : vector<2x96xf32>
    %430 = arith.divf %428, %429 : vector<2x96xf32>
    %cst_99 = arith.constant dense<0.000000e+00> : vector<2x384xf32>
    %431 = tpu.matmul %430, %142, %cst_99 {dimension_numbers = #tpu.dot_dimension_numbers<[1], [0], [0], [1], [0, 0, 1, 1], [], []>} : vector<2x96xf32>, vector<96x384xf32>, vector<2x384xf32> -> vector<2x384xf32>
    %432 = vector.broadcast %143 : vector<1x384xf32> to vector<2x384xf32>
    %433 = arith.addf %431, %432 : vector<2x384xf32>
    %434 = vector.extract_strided_slice %433 {offsets = [0, 0], sizes = [2, 128], strides = [1, 1]} : vector<2x384xf32> to vector<2x128xf32>
    %435 = vector.extract_strided_slice %433 {offsets = [0, 128], sizes = [2, 128], strides = [1, 1]} : vector<2x384xf32> to vector<2x128xf32>
    %436 = arith.mulf %434, %435 : vector<2x128xf32>
    %437 = vector.extract_strided_slice %433 {offsets = [0, 256], sizes = [2, 128], strides = [1, 1]} : vector<2x384xf32> to vector<2x128xf32>
    %438 = arith.mulf %436, %437 : vector<2x128xf32>
    %cst_100 = arith.constant dense<0.000000e+00> : vector<2x32xf32>
    %439 = tpu.matmul %438, %144, %cst_100 {dimension_numbers = #tpu.dot_dimension_numbers<[1], [0], [0], [1], [0, 0, 1, 1], [], []>} : vector<2x128xf32>, vector<128x32xf32>, vector<2x32xf32> -> vector<2x32xf32>
    %440 = vector.broadcast %145 : vector<1x32xf32> to vector<2x32xf32>
    %441 = arith.addf %439, %440 : vector<2x32xf32>
    %cst_101 = arith.constant 0.000000e+00 : f32
    %442 = vector.broadcast %cst_101 : f32 to vector<2x32xf32>
    %443 = arith.maximumf %441, %442 : vector<2x32xf32>
    %cst_102 = arith.constant dense<0.000000e+00> : vector<16x32xf32>
    %444 = tpu.matmul %417, %146, %cst_102 {dimension_numbers = #tpu.dot_dimension_numbers<[1], [0], [0], [1], [0, 0, 1, 1], [], []>} : vector<16x32xf32>, vector<32x32xf32>, vector<16x32xf32> -> vector<16x32xf32>
    %445 = vector.extract_strided_slice %140 {offsets = [96, 0], sizes = [16, 32], strides = [1, 1]} : vector<128x32xf32> to vector<16x32xf32>
    %446 = arith.addf %444, %445 : vector<16x32xf32>
    %447 = arith.negf %446 : vector<16x32xf32>
    %448 = math.exp %447 : vector<16x32xf32>
    %cst_103 = arith.constant 1.000000e+00 : f32
    %449 = vector.broadcast %cst_103 : f32 to vector<16x32xf32>
    %450 = arith.addf %449, %448 : vector<16x32xf32>
    %451 = arith.divf %449, %450 : vector<16x32xf32>
    %452 = arith.mulf %417, %451 : vector<16x32xf32>
    %453 = vector.extract_strided_slice %7 {offsets = [96, 0], sizes = [16, 32], strides = [1, 1]} : vector<128x32xf32> to vector<16x32xf32>
    %454 = vector.extract_strided_slice %443 {offsets = [0, 0], sizes = [1, 32], strides = [1, 1]} : vector<2x32xf32> to vector<1x32xf32>
    %455 = vector.shape_cast %454 : vector<1x32xf32> to vector<1x32xf32>
    %456 = vector.broadcast %455 : vector<1x32xf32> to vector<8x32xf32>
    %457 = vector.extract_strided_slice %443 {offsets = [1, 0], sizes = [1, 32], strides = [1, 1]} : vector<2x32xf32> to vector<1x32xf32>
    %458 = vector.shape_cast %457 : vector<1x32xf32> to vector<1x32xf32>
    %459 = vector.broadcast %458 : vector<1x32xf32> to vector<8x32xf32>
    %460 = tpu.concatenate %456, %459 in 0 : vector<8x32xf32>, vector<8x32xf32> -> vector<16x32xf32>
    %461 = arith.mulf %453, %460 : vector<16x32xf32>
    %462 = arith.addf %452, %461 : vector<16x32xf32>
    %463 = vector.extract_strided_slice %6 {offsets = [14, 0], sizes = [2, 16], strides = [1, 1]} : vector<16x16xf32> to vector<2x16xf32>
    %cst_104 = arith.constant dense<0.000000e+00> : vector<2x32xf32>
    %464 = tpu.matmul %463, %462, %cst_104 {dimension_numbers = #tpu.dot_dimension_numbers<[1], [0], [0], [1], [0, 0, 1, 1], [], []>} : vector<2x16xf32>, vector<16x32xf32>, vector<2x32xf32> -> vector<2x32xf32>
    %c14 = arith.constant 14 : index
    %c0_105 = arith.constant 0 : index
    %465 = vector.load %arg5[%c14, %c0_105] : memref<16x32xf32, #tpu.memory_space<vmem>>, vector<2x32xf32>
    tpu.vector_store %arg5[%c14, %c0_105], %464 {strides = array<i32>} : memref<16x32xf32, #tpu.memory_space<vmem>>, vector<2x32xf32>,
    %c0_106 = arith.constant 0 : index
    %c0_107 = arith.constant 0 : index
    %466 = vector.load %arg5[%c0_106, %c0_107] : memref<16x32xf32, #tpu.memory_space<vmem>>, vector<16x32xf32>
    %c56 = arith.constant 56 : index
    %c0_108 = arith.constant 0 : index
    %467 = vector.load %arg2[%c56, %c0_108] : memref<328x32xf32, #tpu.memory_space<vmem>>, vector<32x32xf32>
    %cst_109 = arith.constant dense<0.000000e+00> : vector<16x32xf32>
    %468 = tpu.matmul %466, %467, %cst_109 {dimension_numbers = #tpu.dot_dimension_numbers<[1], [0], [0], [1], [0, 0, 1, 1], [], []>} : vector<16x32xf32>, vector<32x32xf32>, vector<16x32xf32> -> vector<16x32xf32>
    %469 = arith.addf %468, %19 : vector<16x32xf32>
    %470 = arith.negf %469 : vector<16x32xf32>
    %471 = math.exp %470 : vector<16x32xf32>
    %cst_110 = arith.constant 1.000000e+00 : f32
    %472 = vector.broadcast %cst_110 : f32 to vector<16x32xf32>
    %473 = arith.addf %472, %471 : vector<16x32xf32>
    %474 = arith.divf %472, %473 : vector<16x32xf32>
    %cst_111 = arith.constant dense<0.000000e+00> : vector<16xf32>
    %475 = vector.multi_reduction <add>, %474, %cst_111 [1] : vector<16x32xf32> to vector<16xf32>
    %476 = vector.shape_cast %475 : vector<16xf32> to vector<16x1xf32>
    %cst_112 = arith.constant 3.125000e-02 : f32
    %477 = vector.broadcast %cst_112 : f32 to vector<16x1xf32>
    %478 = arith.mulf %476, %477 : vector<16x1xf32>
    %479 = vector.shape_cast %478 : vector<16x1xf32> to vector<16x1xf32>
    %480 = vector.broadcast %479 : vector<16x1xf32> to vector<16x128xf32>
    %c0_113 = arith.constant 0 : index
    %c0_114 = arith.constant 0 : index
    %481 = vector.load %arg4[%c0_113, %c0_114] : memref<16x128xf32, #tpu.memory_space<vmem>>, vector<16x128xf32>
    tpu.vector_store %arg4[%c0_113, %c0_114], %480 {strides = array<i32>} : memref<16x128xf32, #tpu.memory_space<vmem>>, vector<16x128xf32>,
    return
  }
}

</mosaic_0001>

<llo_original>
// kernel: squeeze.1
$region0: #{squeeze.1}
  %s0 = inlined_call_operand.vmem [shape: f32[16], index: 0, kind: input, shape index: {}]
  %s1 = inlined_call_operand.vmem [shape: f32[8,2], index: 1, kind: output, shape index: {}]
  $region1: #{squeeze.1} parent=0
    #allocation0 [shape = 'u8[4096]{0}', space=vmem, size = 0x1000, scoped, tag = 'scoped mem for input reshape']
    %s3 = sshllo.u32 0, 1
    %v4 = vld [vmem:[%s0] sm:%s3]
    %5 = vst [vmem:[#allocation0] sm:%s3] %v4
    %v6 = vld [vmem:[#allocation0] sm:$0x1]
    %vm7 = vcmask 15360
    %8 = vst.msk [vmem:[%s1] sm:$0x1] %vm7, %v6
    %v9 = vld [vmem:[#allocation0] sm:$0x1]
    %10 = vrot.lane.b32.xlu0 %v9, 126
    %v11 = vpop.permute.xlu0 %10
    %vm12 = vcmask 15360
    %s13 = scalar_lea.vmem %s1, 1
    %14 = vst.msk [vmem:[%s13] sm:$0x1] %vm12, %v11
    %v15 = vld [vmem:[#allocation0] sm:$0x1]
    %16 = vrot.lane.b32.xlu0 %v15, 124
    %v17 = vpop.permute.xlu0 %16
    %vm18 = vcmask 15360
    %s19 = scalar_lea.vmem %s1, 2
    %20 = vst.msk [vmem:[%s19] sm:$0x1] %vm18, %v17
    %v21 = vld [vmem:[#allocation0] sm:$0x1]
    %22 = vrot.lane.b32.xlu0 %v21, 122
    %v23 = vpop.permute.xlu0 %22
    %vm24 = vcmask 15360
    %s25 = scalar_lea.vmem %s1, 3
    %26 = vst.msk [vmem:[%s25] sm:$0x1] %vm24, %v23
    %v27 = vld [vmem:[#allocation0] sm:$0x1]
    %28 = vrot.lane.b32.xlu0 %v27, 120
    %v29 = vpop.permute.xlu0 %28
    %vm30 = vcmask 15360
    %s31 = scalar_lea.vmem %s1, 4
    %32 = vst.msk [vmem:[%s31] sm:$0x1] %vm30, %v29
    %v33 = vld [vmem:[#allocation0] sm:$0x1]
    %34 = vrot.lane.b32.xlu0 %v33, 118
    %v35 = vpop.permute.xlu0 %34
    %vm36 = vcmask 15360
    %s37 = scalar_lea.vmem %s1, 5
    %38 = vst.msk [vmem:[%s37] sm:$0x1] %vm36, %v35
    %v39 = vld [vmem:[#allocation0] sm:$0x1]
    %40 = vrot.lane.b32.xlu0 %v39, 116
    %v41 = vpop.permute.xlu0 %40
    %vm42 = vcmask 15360
    %s43 = scalar_lea.vmem %s1, 6
    %44 = vst.msk [vmem:[%s43] sm:$0x1] %vm42, %v41
    %v45 = vld [vmem:[#allocation0] sm:$0x1]
    %46 = vrot.lane.b32.xlu0 %v45, 114
    %v47 = vpop.permute.xlu0 %46
    %vm48 = vcmask 15360
    %s49 = scalar_lea.vmem %s1, 7
    %50 = vst.msk [vmem:[%s49] sm:$0x1] %vm48, %v47

// kernel: recurrent_forward.1
$region0: #{recurrent_forward.1}
  #allocation0 [shape = 'u32[]', space=smem, size = 0x4, offset = 0x4, fixed_abs, tag = 'smem constant byte address 0x4 - core index']
  #allocation1 [shape = 'u32[144,128]{1,0:T(1,128)}', space=vmem, size = 0x12000, scoped, tag = 'internal scratch']
  #allocation2 [shape = 'f32[16,32]{1,0:T(8,128)}', space=vmem, size = 0x2000, scoped, tag = 'scratch operand']
  %s0 = inlined_call_operand.vmem [shape: f32[16,256], index: 0, kind: input, shape index: {}]
  %s1 = inlined_call_operand.vmem [shape: f32[128,32], index: 1, kind: input, shape index: {}]
  %s2 = inlined_call_operand.vmem [shape: f32[328,32], index: 2, kind: input, shape index: {}]
  %s3 = inlined_call_operand.vmem [shape: f32[176,384], index: 3, kind: input, shape index: {}]
  %s4 = inlined_call_operand.vmem [shape: f32[16,128], index: 4, kind: output, shape index: {}]
  %s5 = sld [smem:[#allocation0]]
  $region26: #{recurrent_forward.1} parent=0
    _
  %s7 = ssub.s32 1, %s5
  %s8 = scalar_select 0, %s7, %s5
  // Predicated region
  $region2: #{recurrent_forward.1} parent=0 // pred_check
    _
  $region3: #{recurrent_forward.1} parent=0 // pred_check_branch
    %10 = sbr.rel (0) target = $region5
  $region4: #{recurrent_forward.1} parent=0 // pred_region
    _
  $region5: #{recurrent_forward.1} parent=0 // pred_fallthru
    _
  // Predicated region
  $region6: #{recurrent_forward.1} parent=0 // pred_check
    _
  $region7: #{recurrent_forward.1} parent=0 // pred_check_branch
    %12 = sbr.rel (0) target = $region9
  $region8: #{recurrent_forward.1} parent=0 // pred_region
    _
  $region9: #{recurrent_forward.1} parent=0 // pred_fallthru
    _
  // Predicated region
  $region10: #{recurrent_forward.1} parent=0 // pred_check
    _
  $region11: #{recurrent_forward.1} parent=0 // pred_check_branch
    %14 = sbr.rel (0) target = $region13
  $region12: #{recurrent_forward.1} parent=0 // pred_region
    _
  $region13: #{recurrent_forward.1} parent=0 // pred_fallthru
    _
  // Predicated region
  $region14: #{recurrent_forward.1} parent=0 // pred_check
    _
  $region15: #{recurrent_forward.1} parent=0 // pred_check_branch
    %16 = sbr.rel (0) target = $region17
  $region16: #{recurrent_forward.1} parent=0 // pred_region
    _
  $region17: #{recurrent_forward.1} parent=0 // pred_fallthru
    _
  %v17 = vld [vmem:[%s0] sm:$0xff]
  %v18 = vld [vmem:[%s0 + $0x8] sm:$0xff]
  %v19 = vld [vmem:[%s0 + $0x10] sm:$0xff]
  %v20 = vld [vmem:[%s0 + $0x18] sm:$0xff]
  %v21 = vld [vmem:[%s1] sm:$0xff]
  %v22 = vld [vmem:[%s1 + $0x8] sm:$0xff]
  %v23 = vld [vmem:[%s1 + $0x10] sm:$0xff]
  %v24 = vld [vmem:[%s1 + $0x18] sm:$0xff]
  %v25 = vld [vmem:[%s1 + $0x20] sm:$0xff]
  %v26 = vld [vmem:[%s1 + $0x28] sm:$0xff]
  %v27 = vld [vmem:[%s1 + $0x30] sm:$0xff]
  %v28 = vld [vmem:[%s1 + $0x38] sm:$0xff]
  %v29 = vld [vmem:[%s1 + $0x40] sm:$0xff]
  %v30 = vld [vmem:[%s1 + $0x48] sm:$0xff]
  %v31 = vld [vmem:[%s1 + $0x50] sm:$0xff]
  %v32 = vld [vmem:[%s1 + $0x58] sm:$0xff]
  %v33 = vld [vmem:[%s1 + $0x60] sm:$0xff]
  %v34 = vld [vmem:[%s1 + $0x68] sm:$0xff]
  %v35 = vld [vmem:[%s2 + $0x10] sm:$0xff]
  %v36 = vld [vmem:[%s2 + $0x18] sm:$0xff]
  %v37 = vld [vmem:[%s2 + $0x20] sm:$0xff]
  %v38 = vld [vmem:[%s2 + $0x28] sm:$0xff]
  %v39 = vld [vmem:[%s2 + $0x30] sm:$0x1]
  %v40 = vlaneseq
  %v41 = vshrl.u32 %v40, 7
  %v42 = vsub.s32 0, %v41
  %v43 = vrot.slane %v39, %v42
  %vm44 = vcmask 261120
  %v46 = vsel %vm44, %v17, 0
  %v49 = vsel %vm44, %v19, 0
  %51 = vmatprep.subr.mxu0 0.0
  %52 = vmatpush1.msra.mxu0 %v35
  %53 = vmatprep.subr.mxu0 0.0
  %54 = vmatpush1.msra.mxu0 %v36
  %55 = vmatprep.subr.mxu0 0.0
  %56 = vmatpush1.msra.mxu0 %v37
  %57 = vmatprep.subr.mxu0 0.0
  %58 = vmatpush1.msra.mxu0 %v38
  %59 = vmatprep.subr.mxu0 0.0
  %60 = vmatpush1.msra.mxu0 0.0
  %61 = vmatprep.subr.mxu0 0.0
  %62 = vmatpush1.msra.mxu0 0.0
  %63 = vmatprep.subr.mxu0 0.0
  %64 = vmatpush1.msra.mxu0 0.0
  %65 = vmatprep.subr.mxu0 0.0
  %66 = vmatpush1.msra.mxu0 0.0
  %67 = vmatprep.subr.mxu0 0.0
  %68 = vmatpush1.msra.mxu0 0.0
  %69 = vmatprep.subr.mxu0 0.0
  %70 = vmatpush1.msra.mxu0 0.0
  %71 = vmatprep.subr.mxu0 0.0
  %72 = vmatpush1.msra.mxu0 0.0
  %73 = vmatprep.subr.mxu0 0.0
  %74 = vmatpush1.msra.mxu0 0.0
  %75 = vmatprep.subr.mxu0 0.0
  %76 = vmatpush1.msra.mxu0 0.0
  %77 = vmatprep.subr.mxu0 0.0
  %78 = vmatpush1.msra.mxu0 0.0
  %79 = vmatprep.subr.mxu0 0.0
  %80 = vmatpush1.msra.mxu0 0.0
  %81 = vmatprep.subr.mxu0 0.0
  %82 = vmatpush1.msra.mxu0 0.0
  %83 = vmatprep.subr.mxu0 0.0
  %84 = vmatpush1.msra.mxu0 0.0
  %85 = vmatprep.subr.mxu0 0.0
  %86 = vmatpush1.msra.mxu0 0.0
  %87 = vmatprep.subr.mxu0 0.0
  %88 = vmatpush1.msra.mxu0 0.0
  %89 = vmatprep.subr.mxu0 0.0
  %90 = vmatpush1.msra.mxu0 0.0
  %91 = vmatprep.subr.mxu0 0.0
  %92 = vmatpush1.msra.mxu0 0.0
  %93 = vmatprep.subr.mxu0 0.0
  %94 = vmatpush1.msra.mxu0 0.0
  %95 = vmatprep.subr.mxu0 0.0
  %96 = vmatpush1.msra.mxu0 0.0
  %97 = vmatprep.subr.mxu0 0.0
  %98 = vmatpush1.msra.mxu0 0.0
  %99 = vmatprep.subr.mxu0 0.0
  %100 = vmatpush1.msra.mxu0 0.0
  %101 = vmatprep.subr.mxu0 0.0
  %102 = vmatpush1.msra.mxu0 0.0
  %103 = vmatprep.subr.mxu0 0.0
  %104 = vmatpush1.msra.mxu0 0.0
  %105 = vmatprep.subr.mxu0 0.0
  %106 = vmatpush1.msra.mxu0 0.0
  %107 = vmatprep.subr.mxu0 0.0
  %108 = vmatpush1.msra.mxu0 0.0
  %109 = vmatprep.subr.mxu0 0.0
  %110 = vmatpush1.msra.mxu0 0.0
  %111 = vmatprep.subr.mxu0 0.0
  %112 = vmatpush1.msra.mxu0 0.0
  %113 = vmatprep.subr.mxu0 0.0
  %114 = vmatpush1.msra.mxu0 0.0
  %115 = vmatprep.mubr.f32.mxu0 0.0
  %116 = vmatmul.mubr.f32.gmra.mrb[0].mxu0 %v46
  %v117 = vpop.f32.mrb[0].mxu0
  %v118 = vadd.f32 %v43, %v117
  %v119 = vpop.f32.mrb[0].mxu0
  %120 = vmatprep.mubr.f32.mxu0 0.0
  %121 = vmatmul.mubr.f32.gmra.mrb[0].mxu0 %v49
  %v122 = vpop.f32.mrb[0].mxu0
  %v123 = vadd.f32 %v43, %v122
  %v124 = vpop.f32.mrb[0].mxu0
  %125 = vdwg.mxu0
  %v126 = vmax.f32 %v118, 0.0
  %v127 = vmax.f32 %v123, 0.0
  %v128 = vld [vmem:[%s2 + $0x58] sm:$0xff]
  %v129 = vld [vmem:[%s2 + $0x60] sm:$0xff]
  %v130 = vld [vmem:[%s2 + $0x68] sm:$0x1]
  %v131 = vlaneseq
  %v132 = vshrl.u32 %v131, 7
  %v133 = vsub.s32 0, %v132
  %v134 = vrot.slane %v130, %v133
  %vm135 = vcmask 130048
  %v136 = vsel %vm135, %v17, 0
  %v138 = vsel %vm135, %v19, 0
  %140 = vmatprep.subr.mxu0 0.0
  %141 = vmatpush1.msra.mxu0 %v128
  %142 = vmatprep.subr.mxu0 0.0
  %143 = vmatpush1.msra.mxu0 %v129
  %144 = vmatprep.subr.mxu0 0.0
  %145 = vmatpush1.msra.mxu0 0.0
  %146 = vmatprep.subr.mxu0 0.0
  %147 = vmatpush1.msra.mxu0 0.0
  %148 = vmatprep.subr.mxu0 0.0
  %149 = vmatpush1.msra.mxu0 0.0
  %150 = vmatprep.subr.mxu0 0.0
  %151 = vmatpush1.msra.mxu0 0.0
  %152 = vmatprep.subr.mxu0 0.0
  %153 = vmatpush1.msra.mxu0 0.0
  %154 = vmatprep.subr.mxu0 0.0
  %155 = vmatpush1.msra.mxu0 0.0
  %156 = vmatprep.subr.mxu0 0.0
  %157 = vmatpush1.msra.mxu0 0.0
  %158 = vmatprep.subr.mxu0 0.0
  %159 = vmatpush1.msra.mxu0 0.0
  %160 = vmatprep.subr.mxu0 0.0
  %161 = vmatpush1.msra.mxu0 0.0
  %162 = vmatprep.subr.mxu0 0.0
  %163 = vmatpush1.msra.mxu0 0.0
  %164 = vmatprep.subr.mxu0 0.0
  %165 = vmatpush1.msra.mxu0 0.0
  %166 = vmatprep.subr.mxu0 0.0
  %167 = vmatpush1.msra.mxu0 0.0
  %168 = vmatprep.subr.mxu0 0.0
  %169 = vmatpush1.msra.mxu0 0.0
  %170 = vmatprep.subr.mxu0 0.0
  %171 = vmatpush1.msra.mxu0 0.0
  %172 = vmatprep.subr.mxu0 0.0
  %173 = vmatpush1.msra.mxu0 0.0
  %174 = vmatprep.subr.mxu0 0.0
  %175 = vmatpush1.msra.mxu0 0.0
  %176 = vmatprep.subr.mxu0 0.0
  %177 = vmatpush1.msra.mxu0 0.0
  %178 = vmatprep.subr.mxu0 0.0
  %179 = vmatpush1.msra.mxu0 0.0
  %180 = vmatprep.subr.mxu0 0.0
  %181 = vmatpush1.msra.mxu0 0.0
  %182 = vmatprep.subr.mxu0 0.0
  %183 = vmatpush1.msra.mxu0 0.0
  %184 = vmatprep.subr.mxu0 0.0
  %185 = vmatpush1.msra.mxu0 0.0
  %186 = vmatprep.subr.mxu0 0.0
  %187 = vmatpush1.msra.mxu0 0.0
  %188 = vmatprep.subr.mxu0 0.0
  %189 = vmatpush1.msra.mxu0 0.0
  %190 = vmatprep.subr.mxu0 0.0
  %191 = vmatpush1.msra.mxu0 0.0
  %192 = vmatprep.subr.mxu0 0.0
  %193 = vmatpush1.msra.mxu0 0.0
  %194 = vmatprep.subr.mxu0 0.0
  %195 = vmatpush1.msra.mxu0 0.0
  %196 = vmatprep.subr.mxu0 0.0
  %197 = vmatpush1.msra.mxu0 0.0
  %198 = vmatprep.subr.mxu0 0.0
  %199 = vmatpush1.msra.mxu0 0.0
  %200 = vmatprep.subr.mxu0 0.0
  %201 = vmatpush1.msra.mxu0 0.0
  %202 = vmatprep.subr.mxu0 0.0
  %203 = vmatpush1.msra.mxu0 0.0
  %204 = vmatprep.mubr.f32.mxu0 0.0
  %205 = vmatmul.mubr.f32.gmra.mrb[0].mxu0 %v136
  %v206 = vpop.f32.mrb[0].mxu0
  %v207 = vadd.f32 %v134, %v206
  %v208 = vpop.f32.mrb[0].mxu0
  %209 = vmatprep.mubr.f32.mxu0 0.0
  %210 = vmatmul.mubr.f32.gmra.mrb[0].mxu0 %v138
  %v211 = vpop.f32.mrb[0].mxu0
  %v212 = vadd.f32 %v134, %v211
  %v213 = vpop.f32.mrb[0].mxu0
  %214 = vdwg.mxu0
  %v215 = vld [vmem:[%s3 + $0x60] sm:$0xff]
  %v216 = vld [vmem:[%s3 + $0x78] sm:$0xff]
  %v217 = vld [vmem:[%s3 + $0x90] sm:$0xff]
  %v218 = vld [vmem:[%s3 + $0xa8] sm:$0xff]
  %v219 = vld [vmem:[%s3 + $0xc0] ss:$0 sm:$0xff]
  %v221 = vsel %vm44, %v126, 0
  %v224 = vsel %vm44, %v127, 0
  %226 = vmatprep.subr.mxu0 0.0
  %227 = vmatpush1.msra.mxu0 %v215
  %228 = vmatprep.subr.mxu0 0.0
  %229 = vmatpush1.msra.mxu0 %v216
  %230 = vmatprep.subr.mxu0 0.0
  %231 = vmatpush1.msra.mxu0 %v217
  %232 = vmatprep.subr.mxu0 0.0
  %233 = vmatpush1.msra.mxu0 %v218
  %234 = vmatprep.subr.mxu0 0.0
  %235 = vmatpush1.msra.mxu0 0.0
  %236 = vmatprep.subr.mxu0 0.0
  %237 = vmatpush1.msra.mxu0 0.0
  %238 = vmatprep.subr.mxu0 0.0
  %239 = vmatpush1.msra.mxu0 0.0
  %240 = vmatprep.subr.mxu0 0.0
  %241 = vmatpush1.msra.mxu0 0.0
  %242 = vmatprep.subr.mxu0 0.0
  %243 = vmatpush1.msra.mxu0 0.0
  %244 = vmatprep.subr.mxu0 0.0
  %245 = vmatpush1.msra.mxu0 0.0
  %246 = vmatprep.subr.mxu0 0.0
  %247 = vmatpush1.msra.mxu0 0.0
  %248 = vmatprep.subr.mxu0 0.0
  %249 = vmatpush1.msra.mxu0 0.0
  %250 = vmatprep.subr.mxu0 0.0
  %251 = vmatpush1.msra.mxu0 0.0
  %252 = vmatprep.subr.mxu0 0.0
  %253 = vmatpush1.msra.mxu0 0.0
  %254 = vmatprep.subr.mxu0 0.0
  %255 = vmatpush1.msra.mxu0 0.0
  %256 = vmatprep.subr.mxu0 0.0
  %257 = vmatpush1.msra.mxu0 0.0
  %258 = vmatprep.subr.mxu0 0.0
  %259 = vmatpush1.msra.mxu0 0.0
  %260 = vmatprep.subr.mxu0 0.0
  %261 = vmatpush1.msra.mxu0 0.0
  %262 = vmatprep.subr.mxu0 0.0
  %263 = vmatpush1.msra.mxu0 0.0
  %264 = vmatprep.subr.mxu0 0.0
  %265 = vmatpush1.msra.mxu0 0.0
  %266 = vmatprep.subr.mxu0 0.0
  %267 = vmatpush1.msra.mxu0 0.0
  %268 = vmatprep.subr.mxu0 0.0
  %269 = vmatpush1.msra.mxu0 0.0
  %270 = vmatprep.subr.mxu0 0.0
  %271 = vmatpush1.msra.mxu0 0.0
  %272 = vmatprep.subr.mxu0 0.0
  %273 = vmatpush1.msra.mxu0 0.0
  %274 = vmatprep.subr.mxu0 0.0
  %275 = vmatpush1.msra.mxu0 0.0
  %276 = vmatprep.subr.mxu0 0.0
  %277 = vmatpush1.msra.mxu0 0.0
  %278 = vmatprep.subr.mxu0 0.0
  %279 = vmatpush1.msra.mxu0 0.0
  %280 = vmatprep.subr.mxu0 0.0
  %281 = vmatpush1.msra.mxu0 0.0
  %282 = vmatprep.subr.mxu0 0.0
  %283 = vmatpush1.msra.mxu0 0.0
  %284 = vmatprep.subr.mxu0 0.0
  %285 = vmatpush1.msra.mxu0 0.0
  %286 = vmatprep.subr.mxu0 0.0
  %287 = vmatpush1.msra.mxu0 0.0
  %288 = vmatprep.subr.mxu0 0.0
  %289 = vmatpush1.msra.mxu0 0.0
  %290 = vmatprep.mubr.f32.mxu0 0.0
  %291 = vmatmul.mubr.f32.gmra.mrb[0].mxu0 %v221
  %v292 = vpop.f32.mrb[0].mxu0
  %v293 = vadd.f32 %v219, %v292
  %v294 = vpop.f32.mrb[0].mxu0
  %295 = vmatprep.mubr.f32.mxu0 0.0
  %296 = vmatmul.mubr.f32.gmra.mrb[0].mxu0 %v224
  %v297 = vpop.f32.mrb[0].mxu0
  %v298 = vadd.f32 %v219, %v297
  %v299 = vpop.f32.mrb[0].mxu0
  %300 = vdwg.mxu0
  %v301 = vsub.f32 %v17, 0.3
  %v302 = vsub.f32 %v19, 0.3
  %v303 = vmul.f32 %v301, 10.0
  %v304 = vmul.f32 %v302, 10.0
  %v305 = vxor.u32 %v303, 2147483648
  %v306 = vxor.u32 %v304, 2147483648
  %v307 = vmul.f32 %v305, 1.442695
  %v308 = vpow.pop %v307
  %v309 = vmul.f32 %v306, 1.442695
  %v310 = vpow.pop %v309
  %v311 = vadd.f32 %v308, 1.0
  %v312 = vadd.f32 %v310, 1.0
  %v313 = vrcp.pop %v311
  %v314 = vmul.f32 1.0, %v313
  %v315 = vrcp.pop %v312
  %v316 = vmul.f32 1.0, %v315
  %v317 = vmul.f32 %v314, 0.7
  %v318 = vmul.f32 %v316, 0.7
  %v319 = vadd.f32 %v317, 0.3
  %v320 = vadd.f32 %v318, 0.3
  %322 = vset.pattern.permute.xlu0 32
  %323 = vperm.xlu0 %322, %v319
  %v324 = vpop.permute.xlu0 %323
  %327 = vset.pattern.permute.xlu0 32
  %328 = vperm.xlu0 %327, %v320
  %v329 = vpop.permute.xlu0 %328
  %331 = vset.pattern.permute.xlu0 33
  %332 = vperm.xlu0 %331, %v319
  %v333 = vpop.permute.xlu0 %332
  %335 = vset.pattern.permute.xlu0 33
  %336 = vperm.xlu0 %335, %v320
  %v337 = vpop.permute.xlu0 %336
  %339 = vset.pattern.permute.xlu0 34
  %340 = vperm.xlu0 %339, %v319
  %v341 = vpop.permute.xlu0 %340
  %343 = vset.pattern.permute.xlu0 34
  %344 = vperm.xlu0 %343, %v320
  %v345 = vpop.permute.xlu0 %344
  %v347 = vsel %vm44, %v324, %v333
  %v348 = vsel %vm44, %v329, %v337
  %vm349 = vcmask 523264
  %v350 = vsel %vm349, %v347, %v341
  %v351 = vsel %vm349, %v348, %v345
  %v352 = vld [vmem:[%s2 + $0x138] sm:$0x7]
  %v353 = vld [vmem:[%s2 + $0x118] sm:$0xff]
  %v354 = vld [vmem:[%s2 + $0x120] sm:$0xff]
  %v355 = vld [vmem:[%s2 + $0x128] sm:$0xff]
  %v356 = vld [vmem:[%s2 + $0x130] sm:$0xff]
  %357 = vset.pattern.permute.xlu0 32
  %358 = vperm.xlu0 %357, %v17
  %v359 = vpop.permute.xlu0 %358
  %361 = vset.pattern.permute.xlu0 32
  %362 = vperm.xlu0 %361, %v19
  %v363 = vpop.permute.xlu0 %362
  %v365 = vlaneseq
  %v366 = vshrl.u32 %v365, 7
  %v367 = vsub.s32 0, %v366
  %v368 = vrot.slane %v352, %v367
  %v369 = vmul.f32 %v359, %v368
  %v370 = vmul.f32 %v363, %v368
  %371 = vmatprep.subr.mxu0 0.0
  %372 = vmatpush1.msra.mxu0 %v353
  %373 = vmatprep.subr.mxu0 0.0
  %374 = vmatpush1.msra.mxu0 %v354
  %375 = vmatprep.subr.mxu0 0.0
  %376 = vmatpush1.msra.mxu0 %v355
  %377 = vmatprep.subr.mxu0 0.0
  %378 = vmatpush1.msra.mxu0 %v356
  %379 = vmatprep.subr.mxu0 0.0
  %380 = vmatpush1.msra.mxu0 0.0
  %381 = vmatprep.subr.mxu0 0.0
  %382 = vmatpush1.msra.mxu0 0.0
  %383 = vmatprep.subr.mxu0 0.0
  %384 = vmatpush1.msra.mxu0 0.0
  %385 = vmatprep.subr.mxu0 0.0
  %386 = vmatpush1.msra.mxu0 0.0
  %387 = vmatprep.subr.mxu0 0.0
  %388 = vmatpush1.msra.mxu0 0.0
  %389 = vmatprep.subr.mxu0 0.0
  %390 = vmatpush1.msra.mxu0 0.0
  %391 = vmatprep.subr.mxu0 0.0
  %392 = vmatpush1.msra.mxu0 0.0
  %393 = vmatprep.subr.mxu0 0.0
  %394 = vmatpush1.msra.mxu0 0.0
  %395 = vmatprep.subr.mxu0 0.0
  %396 = vmatpush1.msra.mxu0 0.0
  %397 = vmatprep.subr.mxu0 0.0
  %398 = vmatpush1.msra.mxu0 0.0
  %399 = vmatprep.subr.mxu0 0.0
  %400 = vmatpush1.msra.mxu0 0.0
  %401 = vmatprep.subr.mxu0 0.0
  %402 = vmatpush1.msra.mxu0 0.0
  %403 = vmatprep.subr.mxu0 0.0
  %404 = vmatpush1.msra.mxu0 0.0
  %405 = vmatprep.subr.mxu0 0.0
  %406 = vmatpush1.msra.mxu0 0.0
  %407 = vmatprep.subr.mxu0 0.0
  %408 = vmatpush1.msra.mxu0 0.0
  %409 = vmatprep.subr.mxu0 0.0
  %410 = vmatpush1.msra.mxu0 0.0
  %411 = vmatprep.subr.mxu0 0.0
  %412 = vmatpush1.msra.mxu0 0.0
  %413 = vmatprep.subr.mxu0 0.0
  %414 = vmatpush1.msra.mxu0 0.0
  %415 = vmatprep.subr.mxu0 0.0
  %416 = vmatpush1.msra.mxu0 0.0
  %417 = vmatprep.subr.mxu0 0.0
  %418 = vmatpush1.msra.mxu0 0.0
  %419 = vmatprep.subr.mxu0 0.0
  %420 = vmatpush1.msra.mxu0 0.0
  %421 = vmatprep.subr.mxu0 0.0
  %422 = vmatpush1.msra.mxu0 0.0
  %423 = vmatprep.subr.mxu0 0.0
  %424 = vmatpush1.msra.mxu0 0.0
  %425 = vmatprep.subr.mxu0 0.0
  %426 = vmatpush1.msra.mxu0 0.0
  %427 = vmatprep.subr.mxu0 0.0
  %428 = vmatpush1.msra.mxu0 0.0
  %429 = vmatprep.subr.mxu0 0.0
  %430 = vmatpush1.msra.mxu0 0.0
  %431 = vmatprep.subr.mxu0 0.0
  %432 = vmatpush1.msra.mxu0 0.0
  %433 = vmatprep.subr.mxu0 0.0
  %434 = vmatpush1.msra.mxu0 0.0
  %435 = vmatprep.mubr.f32.mxu0 0.0
  %436 = vmatmul.mubr.f32.gmra.mrb[0].mxu0 %v221
  %v437 = vpop.f32.mrb[0].mxu0
  %v438 = vadd.f32 %v369, %v437
  %v439 = vpop.f32.mrb[0].mxu0
  %440 = vmatprep.mubr.f32.mxu0 0.0
  %441 = vmatmul.mubr.f32.gmra.mrb[0].mxu0 %v224
  %v442 = vpop.f32.mrb[0].mxu0
  %v443 = vadd.f32 %v370, %v442
  %v444 = vpop.f32.mrb[0].mxu0
  %445 = vdwg.mxu0
  %446 = vset.pattern.permute.xlu0 33
  %447 = vperm.xlu0 %446, %v17
  %v448 = vpop.permute.xlu0 %447
  %450 = vset.pattern.permute.xlu0 33
  %451 = vperm.xlu0 %450, %v19
  %v452 = vpop.permute.xlu0 %451
  %v454 = vlaneseq
  %v455 = vshrl.u32 %v454, 7
  %v456 = vsub.s32 1, %v455
  %v457 = vrot.slane %v352, %v456
  %v458 = vmul.f32 %v448, %v457
  %v459 = vmul.f32 %v452, %v457
  %v460 = vadd.f32 %v438, %v458
  %v461 = vadd.f32 %v443, %v459
  %462 = vset.pattern.permute.xlu0 34
  %463 = vperm.xlu0 %462, %v17
  %v464 = vpop.permute.xlu0 %463
  %466 = vset.pattern.permute.xlu0 34
  %467 = vperm.xlu0 %466, %v19
  %v468 = vpop.permute.xlu0 %467
  %v470 = vlaneseq
  %v471 = vshrl.u32 %v470, 7
  %v472 = vsub.s32 2, %v471
  %v473 = vrot.slane %v352, %v472
  %v474 = vmul.f32 %v464, %v473
  %v475 = vmul.f32 %v468, %v473
  %v476 = vadd.f32 %v460, %v474
  %v477 = vadd.f32 %v461, %v475
  %v478 = vld [vmem:[%s2 + $0x140] sm:$0x1]
  %v479 = vlaneseq
  %v480 = vshrl.u32 %v479, 7
  %v481 = vsub.s32 0, %v480
  %v482 = vrot.slane %v478, %v481
  %v483 = vadd.f32 %v476, %v482
  %v484 = vadd.f32 %v477, %v482
  %v485 = vlaneseq
  %v486 = vshrl.u32 %v485, 7
  %v487 = vsub.s32 0, %v486
  %v488 = vrot.slane %v483, %v487
  %v489 = vlaneseq
  %v490 = vshrl.u32 %v489, 7
  %v491 = vsub.s32 1, %v490
  %v492 = vrot.slane %v483, %v491
  %v493 = vlaneseq
  %v494 = vshrl.u32 %v493, 7
  %v495 = vsub.s32 2, %v494
  %v496 = vrot.slane %v483, %v495
  %v497 = vlaneseq
  %v498 = vshrl.u32 %v497, 7
  %v499 = vsub.s32 3, %v498
  %v500 = vrot.slane %v483, %v499
  %v501 = vlaneseq
  %v502 = vshrl.u32 %v501, 7
  %v503 = vsub.s32 4, %v502
  %v504 = vrot.slane %v483, %v503
  %v505 = vlaneseq
  %v506 = vshrl.u32 %v505, 7
  %v507 = vsub.s32 5, %v506
  %v508 = vrot.slane %v483, %v507
  %v509 = vlaneseq
  %v510 = vshrl.u32 %v509, 7
  %v511 = vsub.s32 6, %v510
  %v512 = vrot.slane %v483, %v511
  %v513 = vlaneseq
  %v514 = vshrl.u32 %v513, 7
  %v515 = vsub.s32 7, %v514
  %v516 = vrot.slane %v483, %v515
  %v517 = vlaneseq
  %v518 = vshrl.u32 %v517, 7
  %v519 = vsub.s32 0, %v518
  %v520 = vrot.slane %v484, %v519
  %v521 = vlaneseq
  %v522 = vshrl.u32 %v521, 7
  %v523 = vsub.s32 1, %v522
  %v524 = vrot.slane %v484, %v523
  %v525 = vlaneseq
  %v526 = vshrl.u32 %v525, 7
  %v527 = vsub.s32 2, %v526
  %v528 = vrot.slane %v484, %v527
  %v529 = vlaneseq
  %v530 = vshrl.u32 %v529, 7
  %v531 = vsub.s32 3, %v530
  %v532 = vrot.slane %v484, %v531
  %v533 = vlaneseq
  %v534 = vshrl.u32 %v533, 7
  %v535 = vsub.s32 4, %v534
  %v536 = vrot.slane %v484, %v535
  %v537 = vlaneseq
  %v538 = vshrl.u32 %v537, 7
  %v539 = vsub.s32 5, %v538
  %v540 = vrot.slane %v484, %v539
  %v541 = vld [vmem:[%s3] sm:$0xff]
  %v542 = vld [vmem:[%s3 + $0x18] sm:$0xff]
  %v543 = vld [vmem:[%s3 + $0x30] sm:$0xff]
  %v544 = vld [vmem:[%s3 + $0x48] sm:$0xff]
  %v545 = vld [vmem:[%s3 + $0xd8] sm:$0xff]
  %v546 = vld [vmem:[%s3 + $0xe0] sm:$0xff]
  %v547 = vld [vmem:[%s3 + $0xe8] sm:$0xff]
  %v548 = vld [vmem:[%s3 + $0xf0] sm:$0xff]
  %v549 = vld [vmem:[%s3 + $0xf8] sm:$0xff]
  %v550 = vld [vmem:[%s3 + $0x100] sm:$0xff]
  %v551 = vld [vmem:[%s3 + $0x108] sm:$0xff]
  %v552 = vld [vmem:[%s3 + $0x110] sm:$0xff]
  %v553 = vld [vmem:[%s3 + $0x118] sm:$0xff]
  %v554 = vld [vmem:[%s3 + $0x120] sm:$0xff]
  %v555 = vld [vmem:[%s3 + $0x128] sm:$0xff]
  %v556 = vld [vmem:[%s3 + $0x130] sm:$0xff]
  %v557 = vld [vmem:[%s3 + $0x138] sm:$0xff]
  %v558 = vld [vmem:[%s3 + $0x140] sm:$0xff]
  %v559 = vld [vmem:[%s3 + $0x148] sm:$0xff]
  %v560 = vld [vmem:[%s3 + $0x150] sm:$0xff]
  %v561 = vld [vmem:[%s3 + $0x158] sm:$0xff]
  %v562 = vld [vmem:[%s3 + $0x160] sm:$0xff]
  %v563 = vld [vmem:[%s3 + $0x168] sm:$0xff]
  %v564 = vld [vmem:[%s3 + $0x170] sm:$0xff]
  %v565 = vld [vmem:[%s3 + $0x178] sm:$0xff]
  %v566 = vld [vmem:[%s3 + $0x180] sm:$0xff]
  %v567 = vld [vmem:[%s3 + $0x188] sm:$0xff]
  %v568 = vld [vmem:[%s3 + $0x190] sm:$0xff]
  %v569 = vld [vmem:[%s3 + $0x198] sm:$0xff]
  %v570 = vld [vmem:[%s3 + $0x1a0] sm:$0xff]
  %v571 = vld [vmem:[%s3 + $0x1a8] sm:$0xff]
  %v572 = vld [vmem:[%s3 + $0x1b0] sm:$0xff]
  %v573 = vld [vmem:[%s3 + $0x1b8] sm:$0xff]
  %v574 = vld [vmem:[%s3 + $0x1c0] sm:$0xff]
  %v575 = vld [vmem:[%s3 + $0x1c8] sm:$0xff]
  %v576 = vld [vmem:[%s3 + $0x1d0] sm:$0xff]
  %v577 = vld [vmem:[%s3 + $0x1d8] sm:$0xff]
  %v578 = vld [vmem:[%s3 + $0x1e0] sm:$0xff]
  %v579 = vld [vmem:[%s3 + $0x1e8] sm:$0xff]
  %v580 = vld [vmem:[%s3 + $0x1f0] sm:$0xff]
  %s581 = scalar_lea.vmem %s3, 504
  %v582 = vld [vmem:[%s581] ss:$8 sm:$0x7]
  %v583 = vld [vmem:[%s2 + $0x70] sm:$0xff]
  %v584 = vld [vmem:[%s2 + $0x78] sm:$0xff]
  %v585 = vld [vmem:[%s2 + $0x80] sm:$0xff]
  %v586 = vld [vmem:[%s2 + $0x88] sm:$0xff]
  %v587 = vld [vmem:[%s2 + $0x90] sm:$0xff]
  %v588 = vld [vmem:[%s2 + $0x98] sm:$0xff]
  %v589 = vld [vmem:[%s2 + $0xa0] sm:$0xff]
  %v590 = vld [vmem:[%s2 + $0xa8] sm:$0xff]
  %v591 = vld [vmem:[%s2 + $0xb0] sm:$0xff]
  %v592 = vld [vmem:[%s2 + $0xb8] sm:$0xff]
  %v593 = vld [vmem:[%s2 + $0xc0] sm:$0xff]
  %v594 = vld [vmem:[%s2 + $0xc8] sm:$0xff]
  %v595 = vld [vmem:[%s2 + $0xd0] sm:$0xff]
  %v596 = vld [vmem:[%s2 + $0xd8] sm:$0xff]
  %v597 = vld [vmem:[%s2 + $0xe0] sm:$0xff]
  %v598 = vld [vmem:[%s2 + $0xe8] sm:$0xff]
  %v599 = vld [vmem:[%s2 + $0xf0] sm:$0x1]
  %v600 = vld [vmem:[%s2 + $0xf8] sm:$0xff]
  %v601 = vld [vmem:[%s2 + $0x100] sm:$0xff]
  %v602 = vld [vmem:[%s2 + $0x108] sm:$0xff]
  %v603 = vld [vmem:[%s2 + $0x110] sm:$0xff]
  %v604 = vld [vmem:[%s2] sm:$0xff]
  %v605 = vld [vmem:[%s2 + $0x8] sm:$0xff]
  %v607 = vsel %vm135, %v18, 0
  %609 = vmatprep.subr.mxu0 0.0
  %610 = vmatpush1.msra.mxu0 %v604
  %611 = vmatprep.subr.mxu0 0.0
  %612 = vmatpush1.msra.mxu0 %v605
  %613 = vmatprep.subr.mxu0 0.0
  %614 = vmatpush1.msra.mxu0 0.0
  %615 = vmatprep.subr.mxu0 0.0
  %616 = vmatpush1.msra.mxu0 0.0
  %617 = vmatprep.subr.mxu0 0.0
  %618 = vmatpush1.msra.mxu0 0.0
  %619 = vmatprep.subr.mxu0 0.0
  %620 = vmatpush1.msra.mxu0 0.0
  %621 = vmatprep.subr.mxu0 0.0
  %622 = vmatpush1.msra.mxu0 0.0
  %623 = vmatprep.subr.mxu0 0.0
  %624 = vmatpush1.msra.mxu0 0.0
  %625 = vmatprep.subr.mxu0 0.0
  %626 = vmatpush1.msra.mxu0 0.0
  %627 = vmatprep.subr.mxu0 0.0
  %628 = vmatpush1.msra.mxu0 0.0
  %629 = vmatprep.subr.mxu0 0.0
  %630 = vmatpush1.msra.mxu0 0.0
  %631 = vmatprep.subr.mxu0 0.0
  %632 = vmatpush1.msra.mxu0 0.0
  %633 = vmatprep.subr.mxu0 0.0
  %634 = vmatpush1.msra.mxu0 0.0
  %635 = vmatprep.subr.mxu0 0.0
  %636 = vmatpush1.msra.mxu0 0.0
  %637 = vmatprep.subr.mxu0 0.0
  %638 = vmatpush1.msra.mxu0 0.0
  %639 = vmatprep.subr.mxu0 0.0
  %640 = vmatpush1.msra.mxu0 0.0
  %641 = vmatprep.subr.mxu0 0.0
  %642 = vmatpush1.msra.mxu0 0.0
  %643 = vmatprep.subr.mxu0 0.0
  %644 = vmatpush1.msra.mxu0 0.0
  %645 = vmatprep.subr.mxu0 0.0
  %646 = vmatpush1.msra.mxu0 0.0
  %647 = vmatprep.subr.mxu0 0.0
  %648 = vmatpush1.msra.mxu0 0.0
  %649 = vmatprep.subr.mxu0 0.0
  %650 = vmatpush1.msra.mxu0 0.0
  %651 = vmatprep.subr.mxu0 0.0
  %652 = vmatpush1.msra.mxu0 0.0
  %653 = vmatprep.subr.mxu0 0.0
  %654 = vmatpush1.msra.mxu0 0.0
  %655 = vmatprep.subr.mxu0 0.0
  %656 = vmatpush1.msra.mxu0 0.0
  %657 = vmatprep.subr.mxu0 0.0
  %658 = vmatpush1.msra.mxu0 0.0
  %659 = vmatprep.subr.mxu0 0.0
  %660 = vmatpush1.msra.mxu0 0.0
  %661 = vmatprep.subr.mxu0 0.0
  %662 = vmatpush1.msra.mxu0 0.0
  %663 = vmatprep.subr.mxu0 0.0
  %664 = vmatpush1.msra.mxu0 0.0
  %665 = vmatprep.subr.mxu0 0.0
  %666 = vmatpush1.msra.mxu0 0.0
  %667 = vmatprep.subr.mxu0 0.0
  %668 = vmatpush1.msra.mxu0 0.0
  %669 = vmatprep.subr.mxu0 0.0
  %670 = vmatpush1.msra.mxu0 0.0
  %671 = vmatprep.subr.mxu0 0.0
  %672 = vmatpush1.msra.mxu0 0.0
  %673 = vmatprep.mubr.f32.mxu0 0.0
  %674 = vmatmul.mubr.f32.gmra.mrb[0].mxu0 %v607
  %v675 = vpop.f32.mrb[0].mxu0
  %v676 = vadd.f32 0.0, %v675
  %v677 = vpop.f32.mrb[0].mxu0
  %678 = vdwg.mxu0
  %vm679 = vcmask 254976
  %680 = vst.msk [vmem:[#allocation2] sm:$0x3] %vm679, %v676
  %v682 = vsel %vm44, %v676, 0
  %684 = vmatprep.subr.mxu0 0.0
  %685 = vmatpush1.msra.mxu0 %v541
  %686 = vmatprep.subr.mxu0 0.0
  %687 = vmatpush1.msra.mxu0 %v542
  %688 = vmatprep.subr.mxu0 0.0
  %689 = vmatpush1.msra.mxu0 %v543
  %690 = vmatprep.subr.mxu0 0.0
  %691 = vmatpush1.msra.mxu0 %v544
  %692 = vmatprep.subr.mxu0 0.0
  %693 = vmatpush1.msra.mxu0 0.0
  %694 = vmatprep.subr.mxu0 0.0
  %695 = vmatpush1.msra.mxu0 0.0
  %696 = vmatprep.subr.mxu0 0.0
  %697 = vmatpush1.msra.mxu0 0.0
  %698 = vmatprep.subr.mxu0 0.0
  %699 = vmatpush1.msra.mxu0 0.0
  %700 = vmatprep.subr.mxu0 0.0
  %701 = vmatpush1.msra.mxu0 0.0
  %702 = vmatprep.subr.mxu0 0.0
  %703 = vmatpush1.msra.mxu0 0.0
  %704 = vmatprep.subr.mxu0 0.0
  %705 = vmatpush1.msra.mxu0 0.0
  %706 = vmatprep.subr.mxu0 0.0
  %707 = vmatpush1.msra.mxu0 0.0
  %708 = vmatprep.subr.mxu0 0.0
  %709 = vmatpush1.msra.mxu0 0.0
  %710 = vmatprep.subr.mxu0 0.0
  %711 = vmatpush1.msra.mxu0 0.0
  %712 = vmatprep.subr.mxu0 0.0
  %713 = vmatpush1.msra.mxu0 0.0
  %714 = vmatprep.subr.mxu0 0.0
  %715 = vmatpush1.msra.mxu0 0.0
  %716 = vmatprep.subr.mxu0 0.0
  %717 = vmatpush1.msra.mxu0 0.0
  %718 = vmatprep.subr.mxu0 0.0
  %719 = vmatpush1.msra.mxu0 0.0
  %720 = vmatprep.subr.mxu0 0.0
  %721 = vmatpush1.msra.mxu0 0.0
  %722 = vmatprep.subr.mxu0 0.0
  %723 = vmatpush1.msra.mxu0 0.0
  %724 = vmatprep.subr.mxu0 0.0
  %725 = vmatpush1.msra.mxu0 0.0
  %726 = vmatprep.subr.mxu0 0.0
  %727 = vmatpush1.msra.mxu0 0.0
  %728 = vmatprep.subr.mxu0 0.0
  %729 = vmatpush1.msra.mxu0 0.0
  %730 = vmatprep.subr.mxu0 0.0
  %731 = vmatpush1.msra.mxu0 0.0
  %732 = vmatprep.subr.mxu0 0.0
  %733 = vmatpush1.msra.mxu0 0.0
  %734 = vmatprep.subr.mxu0 0.0
  %735 = vmatpush1.msra.mxu0 0.0
  %736 = vmatprep.subr.mxu0 0.0
  %737 = vmatpush1.msra.mxu0 0.0
  %738 = vmatprep.subr.mxu0 0.0
  %739 = vmatpush1.msra.mxu0 0.0
  %740 = vmatprep.subr.mxu0 0.0
  %741 = vmatpush1.msra.mxu0 0.0
  %742 = vmatprep.subr.mxu0 0.0
  %743 = vmatpush1.msra.mxu0 0.0
  %744 = vmatprep.subr.mxu0 0.0
  %745 = vmatpush1.msra.mxu0 0.0
  %746 = vmatprep.subr.mxu0 0.0
  %747 = vmatpush1.msra.mxu0 0.0
  %748 = vmatprep.mubr.f32.mxu0 0.0
  %749 = vmatmul.mubr.f32.gmra.mrb[0].mxu0 %v682
  %v750 = vpop.f32.mrb[0].mxu0
  %v751 = vadd.f32 %v293, %v750
  %v752 = vpop.f32.mrb[0].mxu0
  %753 = vdwg.mxu0
  %v754 = vmul.f32 %v751, %v350
  %v755 = vxor.u32 %v754, 2147483648
  %v756 = vmul.f32 %v755, 1.442695
  %v757 = vpow.pop %v756
  %v758 = vadd.f32 %v757, 1.0
  %v759 = vrcp.pop %v758
  %v760 = vmul.f32 1.0, %v759
  %v762 = vlaneseq
  %v763 = vshrl.u32 %v762, 7
  %v764 = vsub.s32 0, %v763
  %v765 = vrot.slane %v582, %v764
  %v766 = vlaneseq
  %v767 = vshrl.u32 %v766, 7
  %v768 = vsub.s32 1, %v767
  %v769 = vrot.slane %v582, %v768
  %v770 = vlaneseq
  %v771 = vshrl.u32 %v770, 7
  %v772 = vsub.s32 2, %v771
  %v773 = vrot.slane %v582, %v772
  %vm777 = vcmask 785408
  %v779 = vsel %vm777, %v760, 0
  %781 = vmatprep.subr.mxu0 %v546
  %782 = vmatpush1.msra.mxu0 %v545
  %783 = vmatprep.subr.mxu0 %v549
  %784 = vmatpush1.msra.mxu0 %v548
  %785 = vmatprep.subr.mxu0 %v552
  %786 = vmatpush1.msra.mxu0 %v551
  %787 = vmatprep.subr.mxu0 %v555
  %788 = vmatpush1.msra.mxu0 %v554
  %789 = vmatprep.subr.mxu0 %v558
  %790 = vmatpush1.msra.mxu0 %v557
  %791 = vmatprep.subr.mxu0 %v561
  %792 = vmatpush1.msra.mxu0 %v560
  %793 = vmatprep.subr.mxu0 %v564
  %794 = vmatpush1.msra.mxu0 %v563
  %795 = vmatprep.subr.mxu0 %v567
  %796 = vmatpush1.msra.mxu0 %v566
  %797 = vmatprep.subr.mxu0 %v570
  %798 = vmatpush1.msra.mxu0 %v569
  %799 = vmatprep.subr.mxu0 %v573
  %800 = vmatpush1.msra.mxu0 %v572
  %801 = vmatprep.subr.mxu0 %v576
  %802 = vmatpush1.msra.mxu0 %v575
  %803 = vmatprep.subr.mxu0 %v579
  %804 = vmatpush1.msra.mxu0 %v578
  %805 = vmatprep.subr.mxu0 0.0
  %806 = vmatpush1.msra.mxu0 0.0
  %807 = vmatprep.subr.mxu0 0.0
  %808 = vmatpush1.msra.mxu0 0.0
  %809 = vmatprep.subr.mxu0 0.0
  %810 = vmatpush1.msra.mxu0 0.0
  %811 = vmatprep.subr.mxu0 0.0
  %812 = vmatpush1.msra.mxu0 0.0
  %813 = vmatprep.subr.mxu0 0.0
  %814 = vmatpush1.msra.mxu0 0.0
  %815 = vmatprep.subr.mxu0 0.0
  %816 = vmatpush1.msra.mxu0 0.0
  %817 = vmatprep.subr.mxu0 0.0
  %818 = vmatpush1.msra.mxu0 0.0
  %819 = vmatprep.subr.mxu0 0.0
  %820 = vmatpush1.msra.mxu0 0.0
  %821 = vmatprep.subr.mxu0 0.0
  %822 = vmatpush1.msra.mxu0 0.0
  %823 = vmatprep.subr.mxu0 0.0
  %824 = vmatpush1.msra.mxu0 0.0
  %825 = vmatprep.subr.mxu0 0.0
  %826 = vmatpush1.msra.mxu0 0.0
  %827 = vmatprep.subr.mxu0 0.0
  %828 = vmatpush1.msra.mxu0 0.0
  %829 = vmatprep.subr.mxu0 0.0
  %830 = vmatpush1.msra.mxu0 0.0
  %831 = vmatprep.subr.mxu0 0.0
  %832 = vmatpush1.msra.mxu0 0.0
  %833 = vmatprep.subr.mxu0 0.0
  %834 = vmatpush1.msra.mxu0 0.0
  %835 = vmatprep.subr.mxu0 0.0
  %836 = vmatpush1.msra.mxu0 0.0
  %837 = vmatprep.subr.mxu0 0.0
  %838 = vmatpush1.msra.mxu0 0.0
  %839 = vmatprep.subr.mxu0 0.0
  %840 = vmatpush1.msra.mxu0 0.0
  %841 = vmatprep.subr.mxu0 0.0
  %842 = vmatpush1.msra.mxu0 0.0
  %843 = vmatprep.subr.mxu0 0.0
  %844 = vmatpush1.msra.mxu0 0.0
  %845 = vmatprep.mubr.f32.mxu0 0.0
  %846 = vmatmul.mubr.f32.gmra.mrb[0].mxu0 %v779
  %v847 = vpop.f32.mrb[0].mxu0
  %v848 = vadd.f32 %v765, %v847
  %v849 = vpop.f32.mrb[0].mxu0
  %v850 = vadd.f32 %v769, %v849
  %851 = vdwg.mxu0
  %852 = vmatprep.subr.mxu0 0.0
  %853 = vmatpush1.msra.mxu0 %v547
  %854 = vmatprep.subr.mxu0 0.0
  %855 = vmatpush1.msra.mxu0 %v550
  %856 = vmatprep.subr.mxu0 0.0
  %857 = vmatpush1.msra.mxu0 %v553
  %858 = vmatprep.subr.mxu0 0.0
  %859 = vmatpush1.msra.mxu0 %v556
  %860 = vmatprep.subr.mxu0 0.0
  %861 = vmatpush1.msra.mxu0 %v559
  %862 = vmatprep.subr.mxu0 0.0
  %863 = vmatpush1.msra.mxu0 %v562
  %864 = vmatprep.subr.mxu0 0.0
  %865 = vmatpush1.msra.mxu0 %v565
  %866 = vmatprep.subr.mxu0 0.0
  %867 = vmatpush1.msra.mxu0 %v568
  %868 = vmatprep.subr.mxu0 0.0
  %869 = vmatpush1.msra.mxu0 %v571
  %870 = vmatprep.subr.mxu0 0.0
  %871 = vmatpush1.msra.mxu0 %v574
  %872 = vmatprep.subr.mxu0 0.0
  %873 = vmatpush1.msra.mxu0 %v577
  %874 = vmatprep.subr.mxu0 0.0
  %875 = vmatpush1.msra.mxu0 %v580
  %876 = vmatprep.subr.mxu0 0.0
  %877 = vmatpush1.msra.mxu0 0.0
  %878 = vmatprep.subr.mxu0 0.0
  %879 = vmatpush1.msra.mxu0 0.0
  %880 = vmatprep.subr.mxu0 0.0
  %881 = vmatpush1.msra.mxu0 0.0
  %882 = vmatprep.subr.mxu0 0.0
  %883 = vmatpush1.msra.mxu0 0.0
  %884 = vmatprep.subr.mxu0 0.0
  %885 = vmatpush1.msra.mxu0 0.0
  %886 = vmatprep.subr.mxu0 0.0
  %887 = vmatpush1.msra.mxu0 0.0
  %888 = vmatprep.subr.mxu0 0.0
  %889 = vmatpush1.msra.mxu0 0.0
  %890 = vmatprep.subr.mxu0 0.0
  %891 = vmatpush1.msra.mxu0 0.0
  %892 = vmatprep.subr.mxu0 0.0
  %893 = vmatpush1.msra.mxu0 0.0
  %894 = vmatprep.subr.mxu0 0.0
  %895 = vmatpush1.msra.mxu0 0.0
  %896 = vmatprep.subr.mxu0 0.0
  %897 = vmatpush1.msra.mxu0 0.0
  %898 = vmatprep.subr.mxu0 0.0
  %899 = vmatpush1.msra.mxu0 0.0
  %900 = vmatprep.subr.mxu0 0.0
  %901 = vmatpush1.msra.mxu0 0.0
  %902 = vmatprep.subr.mxu0 0.0
  %903 = vmatpush1.msra.mxu0 0.0
  %904 = vmatprep.subr.mxu0 0.0
  %905 = vmatpush1.msra.mxu0 0.0
  %906 = vmatprep.subr.mxu0 0.0
  %907 = vmatpush1.msra.mxu0 0.0
  %908 = vmatprep.subr.mxu0 0.0
  %909 = vmatpush1.msra.mxu0 0.0
  %910 = vmatprep.subr.mxu0 0.0
  %911 = vmatpush1.msra.mxu0 0.0
  %912 = vmatprep.subr.mxu0 0.0
  %913 = vmatpush1.msra.mxu0 0.0
  %914 = vmatprep.subr.mxu0 0.0
  %915 = vmatpush1.msra.mxu0 0.0
  %916 = vmatprep.mubr.f32.mxu0 0.0
  %917 = vmatmul.mubr.f32.gmra.mrb[0].mxu0 %v779
  %v918 = vpop.f32.mrb[0].mxu0
  %v919 = vadd.f32 %v773, %v918
  %v920 = vpop.f32.mrb[0].mxu0
  %921 = vdwg.mxu0
  %v922 = vmul.f32 %v848, %v850
  %v923 = vmul.f32 %v922, %v919
  %v924 = vlaneseq
  %v925 = vshrl.u32 %v924, 7
  %v926 = vsub.s32 0, %v925
  %v927 = vrot.slane %v599, %v926
  %928 = vmatprep.subr.mxu0 0.0
  %929 = vmatpush1.msra.mxu0 %v583
  %930 = vmatprep.subr.mxu0 0.0
  %931 = vmatpush1.msra.mxu0 %v584
  %932 = vmatprep.subr.mxu0 0.0
  %933 = vmatpush1.msra.mxu0 %v585
  %934 = vmatprep.subr.mxu0 0.0
  %935 = vmatpush1.msra.mxu0 %v586
  %936 = vmatprep.subr.mxu0 0.0
  %937 = vmatpush1.msra.mxu0 %v587
  %938 = vmatprep.subr.mxu0 0.0
  %939 = vmatpush1.msra.mxu0 %v588
  %940 = vmatprep.subr.mxu0 0.0
  %941 = vmatpush1.msra.mxu0 %v589
  %942 = vmatprep.subr.mxu0 0.0
  %943 = vmatpush1.msra.mxu0 %v590
  %944 = vmatprep.subr.mxu0 0.0
  %945 = vmatpush1.msra.mxu0 %v591
  %946 = vmatprep.subr.mxu0 0.0
  %947 = vmatpush1.msra.mxu0 %v592
  %948 = vmatprep.subr.mxu0 0.0
  %949 = vmatpush1.msra.mxu0 %v593
  %950 = vmatprep.subr.mxu0 0.0
  %951 = vmatpush1.msra.mxu0 %v594
  %952 = vmatprep.subr.mxu0 0.0
  %953 = vmatpush1.msra.mxu0 %v595
  %954 = vmatprep.subr.mxu0 0.0
  %955 = vmatpush1.msra.mxu0 %v596
  %956 = vmatprep.subr.mxu0 0.0
  %957 = vmatpush1.msra.mxu0 %v597
  %958 = vmatprep.subr.mxu0 0.0
  %959 = vmatpush1.msra.mxu0 %v598
  %960 = vmatprep.subr.mxu0 0.0
  %961 = vmatpush1.msra.mxu0 0.0
  %962 = vmatprep.subr.mxu0 0.0
  %963 = vmatpush1.msra.mxu0 0.0
  %964 = vmatprep.subr.mxu0 0.0
  %965 = vmatpush1.msra.mxu0 0.0
  %966 = vmatprep.subr.mxu0 0.0
  %967 = vmatpush1.msra.mxu0 0.0
  %968 = vmatprep.subr.mxu0 0.0
  %969 = vmatpush1.msra.mxu0 0.0
  %970 = vmatprep.subr.mxu0 0.0
  %971 = vmatpush1.msra.mxu0 0.0
  %972 = vmatprep.subr.mxu0 0.0
  %973 = vmatpush1.msra.mxu0 0.0
  %974 = vmatprep.subr.mxu0 0.0
  %975 = vmatpush1.msra.mxu0 0.0
  %976 = vmatprep.subr.mxu0 0.0
  %977 = vmatpush1.msra.mxu0 0.0
  %978 = vmatprep.subr.mxu0 0.0
  %979 = vmatpush1.msra.mxu0 0.0
  %980 = vmatprep.subr.mxu0 0.0
  %981 = vmatpush1.msra.mxu0 0.0
  %982 = vmatprep.subr.mxu0 0.0
  %983 = vmatpush1.msra.mxu0 0.0
  %984 = vmatprep.subr.mxu0 0.0
  %985 = vmatpush1.msra.mxu0 0.0
  %986 = vmatprep.subr.mxu0 0.0
  %987 = vmatpush1.msra.mxu0 0.0
  %988 = vmatprep.subr.mxu0 0.0
  %989 = vmatpush1.msra.mxu0 0.0
  %990 = vmatprep.subr.mxu0 0.0
  %991 = vmatpush1.msra.mxu0 0.0
  %992 = vmatprep.mubr.f32.mxu0 0.0
  %993 = vmatmul.mubr.f32.gmra.mrb[0].mxu0 %v923
  %v994 = vpop.f32.mrb[0].mxu0
  %v995 = vadd.f32 %v927, %v994
  %v996 = vpop.f32.mrb[0].mxu0
  %997 = vdwg.mxu0
  %v998 = vmax.f32 %v995, 0.0
  %v1000 = vsel %vm44, %v604, 0
  %v1003 = vsel %vm44, %v605, 0
  %1005 = vmatprep.subr.mxu0 0.0
  %1006 = vmatpush1.msra.mxu0 %v600
  %1007 = vmatprep.subr.mxu0 0.0
  %1008 = vmatpush1.msra.mxu0 %v601
  %1009 = vmatprep.subr.mxu0 0.0
  %1010 = vmatpush1.msra.mxu0 %v602
  %1011 = vmatprep.subr.mxu0 0.0
  %1012 = vmatpush1.msra.mxu0 %v603
  %1013 = vmatprep.subr.mxu0 0.0
  %1014 = vmatpush1.msra.mxu0 0.0
  %1015 = vmatprep.subr.mxu0 0.0
  %1016 = vmatpush1.msra.mxu0 0.0
  %1017 = vmatprep.subr.mxu0 0.0
  %1018 = vmatpush1.msra.mxu0 0.0
  %1019 = vmatprep.subr.mxu0 0.0
  %1020 = vmatpush1.msra.mxu0 0.0
  %1021 = vmatprep.subr.mxu0 0.0
  %1022 = vmatpush1.msra.mxu0 0.0
  %1023 = vmatprep.subr.mxu0 0.0
  %1024 = vmatpush1.msra.mxu0 0.0
  %1025 = vmatprep.subr.mxu0 0.0
  %1026 = vmatpush1.msra.mxu0 0.0
  %1027 = vmatprep.subr.mxu0 0.0
  %1028 = vmatpush1.msra.mxu0 0.0
  %1029 = vmatprep.subr.mxu0 0.0
  %1030 = vmatpush1.msra.mxu0 0.0
  %1031 = vmatprep.subr.mxu0 0.0
  %1032 = vmatpush1.msra.mxu0 0.0
  %1033 = vmatprep.subr.mxu0 0.0
  %1034 = vmatpush1.msra.mxu0 0.0
  %1035 = vmatprep.subr.mxu0 0.0
  %1036 = vmatpush1.msra.mxu0 0.0
  %1037 = vmatprep.subr.mxu0 0.0
  %1038 = vmatpush1.msra.mxu0 0.0
  %1039 = vmatprep.subr.mxu0 0.0
  %1040 = vmatpush1.msra.mxu0 0.0
  %1041 = vmatprep.subr.mxu0 0.0
  %1042 = vmatpush1.msra.mxu0 0.0
  %1043 = vmatprep.subr.mxu0 0.0
  %1044 = vmatpush1.msra.mxu0 0.0
  %1045 = vmatprep.subr.mxu0 0.0
  %1046 = vmatpush1.msra.mxu0 0.0
  %1047 = vmatprep.subr.mxu0 0.0
  %1048 = vmatpush1.msra.mxu0 0.0
  %1049 = vmatprep.subr.mxu0 0.0
  %1050 = vmatpush1.msra.mxu0 0.0
  %1051 = vmatprep.subr.mxu0 0.0
  %1052 = vmatpush1.msra.mxu0 0.0
  %1053 = vmatprep.subr.mxu0 0.0
  %1054 = vmatpush1.msra.mxu0 0.0
  %1055 = vmatprep.subr.mxu0 0.0
  %1056 = vmatpush1.msra.mxu0 0.0
  %1057 = vmatprep.subr.mxu0 0.0
  %1058 = vmatpush1.msra.mxu0 0.0
  %1059 = vmatprep.subr.mxu0 0.0
  %1060 = vmatpush1.msra.mxu0 0.0
  %1061 = vmatprep.subr.mxu0 0.0
  %1062 = vmatpush1.msra.mxu0 0.0
  %1063 = vmatprep.subr.mxu0 0.0
  %1064 = vmatpush1.msra.mxu0 0.0
  %1065 = vmatprep.subr.mxu0 0.0
  %1066 = vmatpush1.msra.mxu0 0.0
  %1067 = vmatprep.subr.mxu0 0.0
  %1068 = vmatpush1.msra.mxu0 0.0
  %1069 = vmatprep.mubr.f32.mxu0 0.0
  %1070 = vmatmul.mubr.f32.gmra.mrb[0].mxu0 %v1000
  %v1071 = vpop.f32.mrb[0].mxu0
  %v1072 = vadd.f32 %v488, %v1071
  %v1073 = vpop.f32.mrb[0].mxu0
  %1074 = vmatprep.mubr.f32.mxu0 0.0
  %1075 = vmatmul.mubr.f32.gmra.mrb[0].mxu0 %v1003
  %v1076 = vpop.f32.mrb[0].mxu0
  %v1077 = vadd.f32 %v492, %v1076
  %v1078 = vpop.f32.mrb[0].mxu0
  %1079 = vdwg.mxu0
  %v1080 = vxor.u32 %v1072, 2147483648
  %v1081 = vxor.u32 %v1077, 2147483648
  %v1082 = vmul.f32 %v1080, 1.442695
  %v1083 = vpow.pop %v1082
  %v1084 = vmul.f32 %v1081, 1.442695
  %v1085 = vpow.pop %v1084
  %v1086 = vadd.f32 %v1083, 1.0
  %v1087 = vadd.f32 %v1085, 1.0
  %v1088 = vrcp.pop %v1086
  %v1089 = vmul.f32 1.0, %v1088
  %v1090 = vrcp.pop %v1087
  %v1091 = vmul.f32 1.0, %v1090
  %v1092 = vmul.f32 %v604, %v1089
  %v1093 = vmul.f32 %v605, %v1091
  %v1094 = vlaneseq
  %v1095 = vshrl.u32 %v1094, 7
  %v1096 = vsub.s32 0, %v1095
  %v1097 = vrot.slane %v998, %v1096
  %v1098 = vlaneseq
  %v1099 = vshrl.u32 %v1098, 7
  %v1100 = vsub.s32 1, %v1099
  %v1101 = vrot.slane %v998, %v1100
  %v1102 = vmul.f32 %v21, %v1097
  %v1103 = vmul.f32 %v22, %v1101
  %v1104 = vadd.f32 %v1092, %v1102
  %v1105 = vadd.f32 %v1093, %v1103
  %v1106 = vrot.slane %v18, 2
  %v1107 = vsel %vm135, %v1106, 0
  %1109 = vmatprep.subr.mxu0 0.0
  %1110 = vmatpush1.msra.mxu0 %v1104
  %1111 = vmatprep.subr.mxu0 0.0
  %1112 = vmatpush1.msra.mxu0 %v1105
  %1113 = vmatprep.subr.mxu0 0.0
  %1114 = vmatpush1.msra.mxu0 0.0
  %1115 = vmatprep.subr.mxu0 0.0
  %1116 = vmatpush1.msra.mxu0 0.0
  %1117 = vmatprep.subr.mxu0 0.0
  %1118 = vmatpush1.msra.mxu0 0.0
  %1119 = vmatprep.subr.mxu0 0.0
  %1120 = vmatpush1.msra.mxu0 0.0
  %1121 = vmatprep.subr.mxu0 0.0
  %1122 = vmatpush1.msra.mxu0 0.0
  %1123 = vmatprep.subr.mxu0 0.0
  %1124 = vmatpush1.msra.mxu0 0.0
  %1125 = vmatprep.subr.mxu0 0.0
  %1126 = vmatpush1.msra.mxu0 0.0
  %1127 = vmatprep.subr.mxu0 0.0
  %1128 = vmatpush1.msra.mxu0 0.0
  %1129 = vmatprep.subr.mxu0 0.0
  %1130 = vmatpush1.msra.mxu0 0.0
  %1131 = vmatprep.subr.mxu0 0.0
  %1132 = vmatpush1.msra.mxu0 0.0
  %1133 = vmatprep.subr.mxu0 0.0
  %1134 = vmatpush1.msra.mxu0 0.0
  %1135 = vmatprep.subr.mxu0 0.0
  %1136 = vmatpush1.msra.mxu0 0.0
  %1137 = vmatprep.subr.mxu0 0.0
  %1138 = vmatpush1.msra.mxu0 0.0
  %1139 = vmatprep.subr.mxu0 0.0
  %1140 = vmatpush1.msra.mxu0 0.0
  %1141 = vmatprep.subr.mxu0 0.0
  %1142 = vmatpush1.msra.mxu0 0.0
  %1143 = vmatprep.subr.mxu0 0.0
  %1144 = vmatpush1.msra.mxu0 0.0
  %1145 = vmatprep.subr.mxu0 0.0
  %1146 = vmatpush1.msra.mxu0 0.0
  %1147 = vmatprep.subr.mxu0 0.0
  %1148 = vmatpush1.msra.mxu0 0.0
  %1149 = vmatprep.subr.mxu0 0.0
  %1150 = vmatpush1.msra.mxu0 0.0
  %1151 = vmatprep.subr.mxu0 0.0
  %1152 = vmatpush1.msra.mxu0 0.0
  %1153 = vmatprep.subr.mxu0 0.0
  %1154 = vmatpush1.msra.mxu0 0.0
  %1155 = vmatprep.subr.mxu0 0.0
  %1156 = vmatpush1.msra.mxu0 0.0
  %1157 = vmatprep.subr.mxu0 0.0
  %1158 = vmatpush1.msra.mxu0 0.0
  %1159 = vmatprep.subr.mxu0 0.0
  %1160 = vmatpush1.msra.mxu0 0.0
  %1161 = vmatprep.subr.mxu0 0.0
  %1162 = vmatpush1.msra.mxu0 0.0
  %1163 = vmatprep.subr.mxu0 0.0
  %1164 = vmatpush1.msra.mxu0 0.0
  %1165 = vmatprep.subr.mxu0 0.0
  %1166 = vmatpush1.msra.mxu0 0.0
  %1167 = vmatprep.subr.mxu0 0.0
  %1168 = vmatpush1.msra.mxu0 0.0
  %1169 = vmatprep.subr.mxu0 0.0
  %1170 = vmatpush1.msra.mxu0 0.0
  %1171 = vmatprep.subr.mxu0 0.0
  %1172 = vmatpush1.msra.mxu0 0.0
  %1173 = vmatprep.mubr.f32.mxu0 0.0
  %1174 = vmatmul.mubr.f32.gmra.mrb[0].mxu0 %v1107
  %v1175 = vpop.f32.mrb[0].mxu0
  %v1176 = vadd.f32 0.0, %v1175
  %v1177 = vpop.f32.mrb[0].mxu0
  %1178 = vdwg.mxu0
  %1179 = vst.msk [vmem:[#allocation2 + $0x2] sm:$0x3] %vm679, %v1176
  %v1181 = vrot.slane %v293, 2
  %v1184 = vsel %vm44, %v1176, 0
  %1186 = vmatprep.subr.mxu0 0.0
  %1187 = vmatpush1.msra.mxu0 %v541
  %1188 = vmatprep.subr.mxu0 0.0
  %1189 = vmatpush1.msra.mxu0 %v542
  %1190 = vmatprep.subr.mxu0 0.0
  %1191 = vmatpush1.msra.mxu0 %v543
  %1192 = vmatprep.subr.mxu0 0.0
  %1193 = vmatpush1.msra.mxu0 %v544
  %1194 = vmatprep.subr.mxu0 0.0
  %1195 = vmatpush1.msra.mxu0 0.0
  %1196 = vmatprep.subr.mxu0 0.0
  %1197 = vmatpush1.msra.mxu0 0.0
  %1198 = vmatprep.subr.mxu0 0.0
  %1199 = vmatpush1.msra.mxu0 0.0
  %1200 = vmatprep.subr.mxu0 0.0
  %1201 = vmatpush1.msra.mxu0 0.0
  %1202 = vmatprep.subr.mxu0 0.0
  %1203 = vmatpush1.msra.mxu0 0.0
  %1204 = vmatprep.subr.mxu0 0.0
  %1205 = vmatpush1.msra.mxu0 0.0
  %1206 = vmatprep.subr.mxu0 0.0
  %1207 = vmatpush1.msra.mxu0 0.0
  %1208 = vmatprep.subr.mxu0 0.0
  %1209 = vmatpush1.msra.mxu0 0.0
  %1210 = vmatprep.subr.mxu0 0.0
  %1211 = vmatpush1.msra.mxu0 0.0
  %1212 = vmatprep.subr.mxu0 0.0
  %1213 = vmatpush1.msra.mxu0 0.0
  %1214 = vmatprep.subr.mxu0 0.0
  %1215 = vmatpush1.msra.mxu0 0.0
  %1216 = vmatprep.subr.mxu0 0.0
  %1217 = vmatpush1.msra.mxu0 0.0
  %1218 = vmatprep.subr.mxu0 0.0
  %1219 = vmatpush1.msra.mxu0 0.0
  %1220 = vmatprep.subr.mxu0 0.0
  %1221 = vmatpush1.msra.mxu0 0.0
  %1222 = vmatprep.subr.mxu0 0.0
  %1223 = vmatpush1.msra.mxu0 0.0
  %1224 = vmatprep.subr.mxu0 0.0
  %1225 = vmatpush1.msra.mxu0 0.0
  %1226 = vmatprep.subr.mxu0 0.0
  %1227 = vmatpush1.msra.mxu0 0.0
  %1228 = vmatprep.subr.mxu0 0.0
  %1229 = vmatpush1.msra.mxu0 0.0
  %1230 = vmatprep.subr.mxu0 0.0
  %1231 = vmatpush1.msra.mxu0 0.0
  %1232 = vmatprep.subr.mxu0 0.0
  %1233 = vmatpush1.msra.mxu0 0.0
  %1234 = vmatprep.subr.mxu0 0.0
  %1235 = vmatpush1.msra.mxu0 0.0
  %1236 = vmatprep.subr.mxu0 0.0
  %1237 = vmatpush1.msra.mxu0 0.0
  %1238 = vmatprep.subr.mxu0 0.0
  %1239 = vmatpush1.msra.mxu0 0.0
  %1240 = vmatprep.subr.mxu0 0.0
  %1241 = vmatpush1.msra.mxu0 0.0
  %1242 = vmatprep.subr.mxu0 0.0
  %1243 = vmatpush1.msra.mxu0 0.0
  %1244 = vmatprep.subr.mxu0 0.0
  %1245 = vmatpush1.msra.mxu0 0.0
  %1246 = vmatprep.subr.mxu0 0.0
  %1247 = vmatpush1.msra.mxu0 0.0
  %1248 = vmatprep.subr.mxu0 0.0
  %1249 = vmatpush1.msra.mxu0 0.0
  %1250 = vmatprep.mubr.f32.mxu0 0.0
  %1251 = vmatmul.mubr.f32.gmra.mrb[0].mxu0 %v1184
  %v1252 = vpop.f32.mrb[0].mxu0
  %v1253 = vadd.f32 %v1181, %v1252
  %v1254 = vpop.f32.mrb[0].mxu0
  %1255 = vdwg.mxu0
  %v1257 = vrot.slane %v350, 2
  %v1259 = vmul.f32 %v1253, %v1257
  %v1260 = vxor.u32 %v1259, 2147483648
  %v1261 = vmul.f32 %v1260, 1.442695
  %v1262 = vpow.pop %v1261
  %v1263 = vadd.f32 %v1262, 1.0
  %v1264 = vrcp.pop %v1263
  %v1265 = vmul.f32 1.0, %v1264
  %v1267 = vsel %vm777, %v1265, 0
  %1269 = vmatprep.subr.mxu0 %v546
  %1270 = vmatpush1.msra.mxu0 %v545
  %1271 = vmatprep.subr.mxu0 %v549
  %1272 = vmatpush1.msra.mxu0 %v548
  %1273 = vmatprep.subr.mxu0 %v552
  %1274 = vmatpush1.msra.mxu0 %v551
  %1275 = vmatprep.subr.mxu0 %v555
  %1276 = vmatpush1.msra.mxu0 %v554
  %1277 = vmatprep.subr.mxu0 %v558
  %1278 = vmatpush1.msra.mxu0 %v557
  %1279 = vmatprep.subr.mxu0 %v561
  %1280 = vmatpush1.msra.mxu0 %v560
  %1281 = vmatprep.subr.mxu0 %v564
  %1282 = vmatpush1.msra.mxu0 %v563
  %1283 = vmatprep.subr.mxu0 %v567
  %1284 = vmatpush1.msra.mxu0 %v566
  %1285 = vmatprep.subr.mxu0 %v570
  %1286 = vmatpush1.msra.mxu0 %v569
  %1287 = vmatprep.subr.mxu0 %v573
  %1288 = vmatpush1.msra.mxu0 %v572
  %1289 = vmatprep.subr.mxu0 %v576
  %1290 = vmatpush1.msra.mxu0 %v575
  %1291 = vmatprep.subr.mxu0 %v579
  %1292 = vmatpush1.msra.mxu0 %v578
  %1293 = vmatprep.subr.mxu0 0.0
  %1294 = vmatpush1.msra.mxu0 0.0
  %1295 = vmatprep.subr.mxu0 0.0
  %1296 = vmatpush1.msra.mxu0 0.0
  %1297 = vmatprep.subr.mxu0 0.0
  %1298 = vmatpush1.msra.mxu0 0.0
  %1299 = vmatprep.subr.mxu0 0.0
  %1300 = vmatpush1.msra.mxu0 0.0
  %1301 = vmatprep.subr.mxu0 0.0
  %1302 = vmatpush1.msra.mxu0 0.0
  %1303 = vmatprep.subr.mxu0 0.0
  %1304 = vmatpush1.msra.mxu0 0.0
  %1305 = vmatprep.subr.mxu0 0.0
  %1306 = vmatpush1.msra.mxu0 0.0
  %1307 = vmatprep.subr.mxu0 0.0
  %1308 = vmatpush1.msra.mxu0 0.0
  %1309 = vmatprep.subr.mxu0 0.0
  %1310 = vmatpush1.msra.mxu0 0.0
  %1311 = vmatprep.subr.mxu0 0.0
  %1312 = vmatpush1.msra.mxu0 0.0
  %1313 = vmatprep.subr.mxu0 0.0
  %1314 = vmatpush1.msra.mxu0 0.0
  %1315 = vmatprep.subr.mxu0 0.0
  %1316 = vmatpush1.msra.mxu0 0.0
  %1317 = vmatprep.subr.mxu0 0.0
  %1318 = vmatpush1.msra.mxu0 0.0
  %1319 = vmatprep.subr.mxu0 0.0
  %1320 = vmatpush1.msra.mxu0 0.0
  %1321 = vmatprep.subr.mxu0 0.0
  %1322 = vmatpush1.msra.mxu0 0.0
  %1323 = vmatprep.subr.mxu0 0.0
  %1324 = vmatpush1.msra.mxu0 0.0
  %1325 = vmatprep.subr.mxu0 0.0
  %1326 = vmatpush1.msra.mxu0 0.0
  %1327 = vmatprep.subr.mxu0 0.0
  %1328 = vmatpush1.msra.mxu0 0.0
  %1329 = vmatprep.subr.mxu0 0.0
  %1330 = vmatpush1.msra.mxu0 0.0
  %1331 = vmatprep.subr.mxu0 0.0
  %1332 = vmatpush1.msra.mxu0 0.0
  %1333 = vmatprep.mubr.f32.mxu0 0.0
  %1334 = vmatmul.mubr.f32.gmra.mrb[0].mxu0 %v1267
  %v1335 = vpop.f32.mrb[0].mxu0
  %v1336 = vadd.f32 %v765, %v1335
  %v1337 = vpop.f32.mrb[0].mxu0
  %v1338 = vadd.f32 %v769, %v1337
  %1339 = vdwg.mxu0
  %1340 = vmatprep.subr.mxu0 0.0
  %1341 = vmatpush1.msra.mxu0 %v547
  %1342 = vmatprep.subr.mxu0 0.0
  %1343 = vmatpush1.msra.mxu0 %v550
  %1344 = vmatprep.subr.mxu0 0.0
  %1345 = vmatpush1.msra.mxu0 %v553
  %1346 = vmatprep.subr.mxu0 0.0
  %1347 = vmatpush1.msra.mxu0 %v556
  %1348 = vmatprep.subr.mxu0 0.0
  %1349 = vmatpush1.msra.mxu0 %v559
  %1350 = vmatprep.subr.mxu0 0.0
  %1351 = vmatpush1.msra.mxu0 %v562
  %1352 = vmatprep.subr.mxu0 0.0
  %1353 = vmatpush1.msra.mxu0 %v565
  %1354 = vmatprep.subr.mxu0 0.0
  %1355 = vmatpush1.msra.mxu0 %v568
  %1356 = vmatprep.subr.mxu0 0.0
  %1357 = vmatpush1.msra.mxu0 %v571
  %1358 = vmatprep.subr.mxu0 0.0
  %1359 = vmatpush1.msra.mxu0 %v574
  %1360 = vmatprep.subr.mxu0 0.0
  %1361 = vmatpush1.msra.mxu0 %v577
  %1362 = vmatprep.subr.mxu0 0.0
  %1363 = vmatpush1.msra.mxu0 %v580
  %1364 = vmatprep.subr.mxu0 0.0
  %1365 = vmatpush1.msra.mxu0 0.0
  %1366 = vmatprep.subr.mxu0 0.0
  %1367 = vmatpush1.msra.mxu0 0.0
  %1368 = vmatprep.subr.mxu0 0.0
  %1369 = vmatpush1.msra.mxu0 0.0
  %1370 = vmatprep.subr.mxu0 0.0
  %1371 = vmatpush1.msra.mxu0 0.0
  %1372 = vmatprep.subr.mxu0 0.0
  %1373 = vmatpush1.msra.mxu0 0.0
  %1374 = vmatprep.subr.mxu0 0.0
  %1375 = vmatpush1.msra.mxu0 0.0
  %1376 = vmatprep.subr.mxu0 0.0
  %1377 = vmatpush1.msra.mxu0 0.0
  %1378 = vmatprep.subr.mxu0 0.0
  %1379 = vmatpush1.msra.mxu0 0.0
  %1380 = vmatprep.subr.mxu0 0.0
  %1381 = vmatpush1.msra.mxu0 0.0
  %1382 = vmatprep.subr.mxu0 0.0
  %1383 = vmatpush1.msra.mxu0 0.0
  %1384 = vmatprep.subr.mxu0 0.0
  %1385 = vmatpush1.msra.mxu0 0.0
  %1386 = vmatprep.subr.mxu0 0.0
  %1387 = vmatpush1.msra.mxu0 0.0
  %1388 = vmatprep.subr.mxu0 0.0
  %1389 = vmatpush1.msra.mxu0 0.0
  %1390 = vmatprep.subr.mxu0 0.0
  %1391 = vmatpush1.msra.mxu0 0.0
  %1392 = vmatprep.subr.mxu0 0.0
  %1393 = vmatpush1.msra.mxu0 0.0
  %1394 = vmatprep.subr.mxu0 0.0
  %1395 = vmatpush1.msra.mxu0 0.0
  %1396 = vmatprep.subr.mxu0 0.0
  %1397 = vmatpush1.msra.mxu0 0.0
  %1398 = vmatprep.subr.mxu0 0.0
  %1399 = vmatpush1.msra.mxu0 0.0
  %1400 = vmatprep.subr.mxu0 0.0
  %1401 = vmatpush1.msra.mxu0 0.0
  %1402 = vmatprep.subr.mxu0 0.0
  %1403 = vmatpush1.msra.mxu0 0.0
  %1404 = vmatprep.mubr.f32.mxu0 0.0
  %1405 = vmatmul.mubr.f32.gmra.mrb[0].mxu0 %v1267
  %v1406 = vpop.f32.mrb[0].mxu0
  %v1407 = vadd.f32 %v773, %v1406
  %v1408 = vpop.f32.mrb[0].mxu0
  %1409 = vdwg.mxu0
  %v1410 = vmul.f32 %v1336, %v1338
  %v1411 = vmul.f32 %v1410, %v1407
  %1412 = vmatprep.subr.mxu0 0.0
  %1413 = vmatpush1.msra.mxu0 %v583
  %1414 = vmatprep.subr.mxu0 0.0
  %1415 = vmatpush1.msra.mxu0 %v584
  %1416 = vmatprep.subr.mxu0 0.0
  %1417 = vmatpush1.msra.mxu0 %v585
  %1418 = vmatprep.subr.mxu0 0.0
  %1419 = vmatpush1.msra.mxu0 %v586
  %1420 = vmatprep.subr.mxu0 0.0
  %1421 = vmatpush1.msra.mxu0 %v587
  %1422 = vmatprep.subr.mxu0 0.0
  %1423 = vmatpush1.msra.mxu0 %v588
  %1424 = vmatprep.subr.mxu0 0.0
  %1425 = vmatpush1.msra.mxu0 %v589
  %1426 = vmatprep.subr.mxu0 0.0
  %1427 = vmatpush1.msra.mxu0 %v590
  %1428 = vmatprep.subr.mxu0 0.0
  %1429 = vmatpush1.msra.mxu0 %v591
  %1430 = vmatprep.subr.mxu0 0.0
  %1431 = vmatpush1.msra.mxu0 %v592
  %1432 = vmatprep.subr.mxu0 0.0
  %1433 = vmatpush1.msra.mxu0 %v593
  %1434 = vmatprep.subr.mxu0 0.0
  %1435 = vmatpush1.msra.mxu0 %v594
  %1436 = vmatprep.subr.mxu0 0.0
  %1437 = vmatpush1.msra.mxu0 %v595
  %1438 = vmatprep.subr.mxu0 0.0
  %1439 = vmatpush1.msra.mxu0 %v596
  %1440 = vmatprep.subr.mxu0 0.0
  %1441 = vmatpush1.msra.mxu0 %v597
  %1442 = vmatprep.subr.mxu0 0.0
  %1443 = vmatpush1.msra.mxu0 %v598
  %1444 = vmatprep.subr.mxu0 0.0
  %1445 = vmatpush1.msra.mxu0 0.0
  %1446 = vmatprep.subr.mxu0 0.0
  %1447 = vmatpush1.msra.mxu0 0.0
  %1448 = vmatprep.subr.mxu0 0.0
  %1449 = vmatpush1.msra.mxu0 0.0
  %1450 = vmatprep.subr.mxu0 0.0
  %1451 = vmatpush1.msra.mxu0 0.0
  %1452 = vmatprep.subr.mxu0 0.0
  %1453 = vmatpush1.msra.mxu0 0.0
  %1454 = vmatprep.subr.mxu0 0.0
  %1455 = vmatpush1.msra.mxu0 0.0
  %1456 = vmatprep.subr.mxu0 0.0
  %1457 = vmatpush1.msra.mxu0 0.0
  %1458 = vmatprep.subr.mxu0 0.0
  %1459 = vmatpush1.msra.mxu0 0.0
  %1460 = vmatprep.subr.mxu0 0.0
  %1461 = vmatpush1.msra.mxu0 0.0
  %1462 = vmatprep.subr.mxu0 0.0
  %1463 = vmatpush1.msra.mxu0 0.0
  %1464 = vmatprep.subr.mxu0 0.0
  %1465 = vmatpush1.msra.mxu0 0.0
  %1466 = vmatprep.subr.mxu0 0.0
  %1467 = vmatpush1.msra.mxu0 0.0
  %1468 = vmatprep.subr.mxu0 0.0
  %1469 = vmatpush1.msra.mxu0 0.0
  %1470 = vmatprep.subr.mxu0 0.0
  %1471 = vmatpush1.msra.mxu0 0.0
  %1472 = vmatprep.subr.mxu0 0.0
  %1473 = vmatpush1.msra.mxu0 0.0
  %1474 = vmatprep.subr.mxu0 0.0
  %1475 = vmatpush1.msra.mxu0 0.0
  %1476 = vmatprep.mubr.f32.mxu0 0.0
  %1477 = vmatmul.mubr.f32.gmra.mrb[0].mxu0 %v1411
  %v1478 = vpop.f32.mrb[0].mxu0
  %v1479 = vadd.f32 %v927, %v1478
  %v1480 = vpop.f32.mrb[0].mxu0
  %1481 = vdwg.mxu0
  %v1482 = vmax.f32 %v1479, 0.0
  %v1484 = vsel %vm44, %v1104, 0
  %v1487 = vsel %vm44, %v1105, 0
  %1489 = vmatprep.subr.mxu0 0.0
  %1490 = vmatpush1.msra.mxu0 %v600
  %1491 = vmatprep.subr.mxu0 0.0
  %1492 = vmatpush1.msra.mxu0 %v601
  %1493 = vmatprep.subr.mxu0 0.0
  %1494 = vmatpush1.msra.mxu0 %v602
  %1495 = vmatprep.subr.mxu0 0.0
  %1496 = vmatpush1.msra.mxu0 %v603
  %1497 = vmatprep.subr.mxu0 0.0
  %1498 = vmatpush1.msra.mxu0 0.0
  %1499 = vmatprep.subr.mxu0 0.0
  %1500 = vmatpush1.msra.mxu0 0.0
  %1501 = vmatprep.subr.mxu0 0.0
  %1502 = vmatpush1.msra.mxu0 0.0
  %1503 = vmatprep.subr.mxu0 0.0
  %1504 = vmatpush1.msra.mxu0 0.0
  %1505 = vmatprep.subr.mxu0 0.0
  %1506 = vmatpush1.msra.mxu0 0.0
  %1507 = vmatprep.subr.mxu0 0.0
  %1508 = vmatpush1.msra.mxu0 0.0
  %1509 = vmatprep.subr.mxu0 0.0
  %1510 = vmatpush1.msra.mxu0 0.0
  %1511 = vmatprep.subr.mxu0 0.0
  %1512 = vmatpush1.msra.mxu0 0.0
  %1513 = vmatprep.subr.mxu0 0.0
  %1514 = vmatpush1.msra.mxu0 0.0
  %1515 = vmatprep.subr.mxu0 0.0
  %1516 = vmatpush1.msra.mxu0 0.0
  %1517 = vmatprep.subr.mxu0 0.0
  %1518 = vmatpush1.msra.mxu0 0.0
  %1519 = vmatprep.subr.mxu0 0.0
  %1520 = vmatpush1.msra.mxu0 0.0
  %1521 = vmatprep.subr.mxu0 0.0
  %1522 = vmatpush1.msra.mxu0 0.0
  %1523 = vmatprep.subr.mxu0 0.0
  %1524 = vmatpush1.msra.mxu0 0.0
  %1525 = vmatprep.subr.mxu0 0.0
  %1526 = vmatpush1.msra.mxu0 0.0
  %1527 = vmatprep.subr.mxu0 0.0
  %1528 = vmatpush1.msra.mxu0 0.0
  %1529 = vmatprep.subr.mxu0 0.0
  %1530 = vmatpush1.msra.mxu0 0.0
  %1531 = vmatprep.subr.mxu0 0.0
  %1532 = vmatpush1.msra.mxu0 0.0
  %1533 = vmatprep.subr.mxu0 0.0
  %1534 = vmatpush1.msra.mxu0 0.0
  %1535 = vmatprep.subr.mxu0 0.0
  %1536 = vmatpush1.msra.mxu0 0.0
  %1537 = vmatprep.subr.mxu0 0.0
  %1538 = vmatpush1.msra.mxu0 0.0
  %1539 = vmatprep.subr.mxu0 0.0
  %1540 = vmatpush1.msra.mxu0 0.0
  %1541 = vmatprep.subr.mxu0 0.0
  %1542 = vmatpush1.msra.mxu0 0.0
  %1543 = vmatprep.subr.mxu0 0.0
  %1544 = vmatpush1.msra.mxu0 0.0
  %1545 = vmatprep.subr.mxu0 0.0
  %1546 = vmatpush1.msra.mxu0 0.0
  %1547 = vmatprep.subr.mxu0 0.0
  %1548 = vmatpush1.msra.mxu0 0.0
  %1549 = vmatprep.subr.mxu0 0.0
  %1550 = vmatpush1.msra.mxu0 0.0
  %1551 = vmatprep.subr.mxu0 0.0
  %1552 = vmatpush1.msra.mxu0 0.0
  %1553 = vmatprep.mubr.f32.mxu0 0.0
  %1554 = vmatmul.mubr.f32.gmra.mrb[0].mxu0 %v1484
  %v1555 = vpop.f32.mrb[0].mxu0
  %v1556 = vadd.f32 %v496, %v1555
  %v1557 = vpop.f32.mrb[0].mxu0
  %1558 = vmatprep.mubr.f32.mxu0 0.0
  %1559 = vmatmul.mubr.f32.gmra.mrb[0].mxu0 %v1487
  %v1560 = vpop.f32.mrb[0].mxu0
  %v1561 = vadd.f32 %v500, %v1560
  %v1562 = vpop.f32.mrb[0].mxu0
  %1563 = vdwg.mxu0
  %v1564 = vxor.u32 %v1556, 2147483648
  %v1565 = vxor.u32 %v1561, 2147483648
  %v1566 = vmul.f32 %v1564, 1.442695
  %v1567 = vpow.pop %v1566
  %v1568 = vmul.f32 %v1565, 1.442695
  %v1569 = vpow.pop %v1568
  %v1570 = vadd.f32 %v1567, 1.0
  %v1571 = vadd.f32 %v1569, 1.0
  %v1572 = vrcp.pop %v1570
  %v1573 = vmul.f32 1.0, %v1572
  %v1574 = vrcp.pop %v1571
  %v1575 = vmul.f32 1.0, %v1574
  %v1576 = vmul.f32 %v1104, %v1573
  %v1577 = vmul.f32 %v1105, %v1575
  %v1578 = vlaneseq
  %v1579 = vshrl.u32 %v1578, 7
  %v1580 = vsub.s32 0, %v1579
  %v1581 = vrot.slane %v1482, %v1580
  %v1582 = vlaneseq
  %v1583 = vshrl.u32 %v1582, 7
  %v1584 = vsub.s32 1, %v1583
  %v1585 = vrot.slane %v1482, %v1584
  %v1586 = vmul.f32 %v23, %v1581
  %v1587 = vmul.f32 %v24, %v1585
  %v1588 = vadd.f32 %v1576, %v1586
  %v1589 = vadd.f32 %v1577, %v1587
  %v1590 = vrot.slane %v18, 4
  %v1591 = vsel %vm135, %v1590, 0
  %1593 = vmatprep.subr.mxu0 0.0
  %1594 = vmatpush1.msra.mxu0 %v1588
  %1595 = vmatprep.subr.mxu0 0.0
  %1596 = vmatpush1.msra.mxu0 %v1589
  %1597 = vmatprep.subr.mxu0 0.0
  %1598 = vmatpush1.msra.mxu0 0.0
  %1599 = vmatprep.subr.mxu0 0.0
  %1600 = vmatpush1.msra.mxu0 0.0
  %1601 = vmatprep.subr.mxu0 0.0
  %1602 = vmatpush1.msra.mxu0 0.0
  %1603 = vmatprep.subr.mxu0 0.0
  %1604 = vmatpush1.msra.mxu0 0.0
  %1605 = vmatprep.subr.mxu0 0.0
  %1606 = vmatpush1.msra.mxu0 0.0
  %1607 = vmatprep.subr.mxu0 0.0
  %1608 = vmatpush1.msra.mxu0 0.0
  %1609 = vmatprep.subr.mxu0 0.0
  %1610 = vmatpush1.msra.mxu0 0.0
  %1611 = vmatprep.subr.mxu0 0.0
  %1612 = vmatpush1.msra.mxu0 0.0
  %1613 = vmatprep.subr.mxu0 0.0
  %1614 = vmatpush1.msra.mxu0 0.0
  %1615 = vmatprep.subr.mxu0 0.0
  %1616 = vmatpush1.msra.mxu0 0.0
  %1617 = vmatprep.subr.mxu0 0.0
  %1618 = vmatpush1.msra.mxu0 0.0
  %1619 = vmatprep.subr.mxu0 0.0
  %1620 = vmatpush1.msra.mxu0 0.0
  %1621 = vmatprep.subr.mxu0 0.0
  %1622 = vmatpush1.msra.mxu0 0.0
  %1623 = vmatprep.subr.mxu0 0.0
  %1624 = vmatpush1.msra.mxu0 0.0
  %1625 = vmatprep.subr.mxu0 0.0
  %1626 = vmatpush1.msra.mxu0 0.0
  %1627 = vmatprep.subr.mxu0 0.0
  %1628 = vmatpush1.msra.mxu0 0.0
  %1629 = vmatprep.subr.mxu0 0.0
  %1630 = vmatpush1.msra.mxu0 0.0
  %1631 = vmatprep.subr.mxu0 0.0
  %1632 = vmatpush1.msra.mxu0 0.0
  %1633 = vmatprep.subr.mxu0 0.0
  %1634 = vmatpush1.msra.mxu0 0.0
  %1635 = vmatprep.subr.mxu0 0.0
  %1636 = vmatpush1.msra.mxu0 0.0
  %1637 = vmatprep.subr.mxu0 0.0
  %1638 = vmatpush1.msra.mxu0 0.0
  %1639 = vmatprep.subr.mxu0 0.0
  %1640 = vmatpush1.msra.mxu0 0.0
  %1641 = vmatprep.subr.mxu0 0.0
  %1642 = vmatpush1.msra.mxu0 0.0
  %1643 = vmatprep.subr.mxu0 0.0
  %1644 = vmatpush1.msra.mxu0 0.0
  %1645 = vmatprep.subr.mxu0 0.0
  %1646 = vmatpush1.msra.mxu0 0.0
  %1647 = vmatprep.subr.mxu0 0.0
  %1648 = vmatpush1.msra.mxu0 0.0
  %1649 = vmatprep.subr.mxu0 0.0
  %1650 = vmatpush1.msra.mxu0 0.0
  %1651 = vmatprep.subr.mxu0 0.0
  %1652 = vmatpush1.msra.mxu0 0.0
  %1653 = vmatprep.subr.mxu0 0.0
  %1654 = vmatpush1.msra.mxu0 0.0
  %1655 = vmatprep.subr.mxu0 0.0
  %1656 = vmatpush1.msra.mxu0 0.0
  %1657 = vmatprep.mubr.f32.mxu0 0.0
  %1658 = vmatmul.mubr.f32.gmra.mrb[0].mxu0 %v1591
  %v1659 = vpop.f32.mrb[0].mxu0
  %v1660 = vadd.f32 0.0, %v1659
  %v1661 = vpop.f32.mrb[0].mxu0
  %1662 = vdwg.mxu0
  %1663 = vst.msk [vmem:[#allocation2 + $0x4] sm:$0x3] %vm679, %v1660
  %v1664 = vrot.slane %v293, 4
  %v1667 = vsel %vm44, %v1660, 0
  %1669 = vmatprep.subr.mxu0 0.0
  %1670 = vmatpush1.msra.mxu0 %v541
  %1671 = vmatprep.subr.mxu0 0.0
  %1672 = vmatpush1.msra.mxu0 %v542
  %1673 = vmatprep.subr.mxu0 0.0
  %1674 = vmatpush1.msra.mxu0 %v543
  %1675 = vmatprep.subr.mxu0 0.0
  %1676 = vmatpush1.msra.mxu0 %v544
  %1677 = vmatprep.subr.mxu0 0.0
  %1678 = vmatpush1.msra.mxu0 0.0
  %1679 = vmatprep.subr.mxu0 0.0
  %1680 = vmatpush1.msra.mxu0 0.0
  %1681 = vmatprep.subr.mxu0 0.0
  %1682 = vmatpush1.msra.mxu0 0.0
  %1683 = vmatprep.subr.mxu0 0.0
  %1684 = vmatpush1.msra.mxu0 0.0
  %1685 = vmatprep.subr.mxu0 0.0
  %1686 = vmatpush1.msra.mxu0 0.0
  %1687 = vmatprep.subr.mxu0 0.0
  %1688 = vmatpush1.msra.mxu0 0.0
  %1689 = vmatprep.subr.mxu0 0.0
  %1690 = vmatpush1.msra.mxu0 0.0
  %1691 = vmatprep.subr.mxu0 0.0
  %1692 = vmatpush1.msra.mxu0 0.0
  %1693 = vmatprep.subr.mxu0 0.0
  %1694 = vmatpush1.msra.mxu0 0.0
  %1695 = vmatprep.subr.mxu0 0.0
  %1696 = vmatpush1.msra.mxu0 0.0
  %1697 = vmatprep.subr.mxu0 0.0
  %1698 = vmatpush1.msra.mxu0 0.0
  %1699 = vmatprep.subr.mxu0 0.0
  %1700 = vmatpush1.msra.mxu0 0.0
  %1701 = vmatprep.subr.mxu0 0.0
  %1702 = vmatpush1.msra.mxu0 0.0
  %1703 = vmatprep.subr.mxu0 0.0
  %1704 = vmatpush1.msra.mxu0 0.0
  %1705 = vmatprep.subr.mxu0 0.0
  %1706 = vmatpush1.msra.mxu0 0.0
  %1707 = vmatprep.subr.mxu0 0.0
  %1708 = vmatpush1.msra.mxu0 0.0
  %1709 = vmatprep.subr.mxu0 0.0
  %1710 = vmatpush1.msra.mxu0 0.0
  %1711 = vmatprep.subr.mxu0 0.0
  %1712 = vmatpush1.msra.mxu0 0.0
  %1713 = vmatprep.subr.mxu0 0.0
  %1714 = vmatpush1.msra.mxu0 0.0
  %1715 = vmatprep.subr.mxu0 0.0
  %1716 = vmatpush1.msra.mxu0 0.0
  %1717 = vmatprep.subr.mxu0 0.0
  %1718 = vmatpush1.msra.mxu0 0.0
  %1719 = vmatprep.subr.mxu0 0.0
  %1720 = vmatpush1.msra.mxu0 0.0
  %1721 = vmatprep.subr.mxu0 0.0
  %1722 = vmatpush1.msra.mxu0 0.0
  %1723 = vmatprep.subr.mxu0 0.0
  %1724 = vmatpush1.msra.mxu0 0.0
  %1725 = vmatprep.subr.mxu0 0.0
  %1726 = vmatpush1.msra.mxu0 0.0
  %1727 = vmatprep.subr.mxu0 0.0
  %1728 = vmatpush1.msra.mxu0 0.0
  %1729 = vmatprep.subr.mxu0 0.0
  %1730 = vmatpush1.msra.mxu0 0.0
  %1731 = vmatprep.subr.mxu0 0.0
  %1732 = vmatpush1.msra.mxu0 0.0
  %1733 = vmatprep.mubr.f32.mxu0 0.0
  %1734 = vmatmul.mubr.f32.gmra.mrb[0].mxu0 %v1667
  %v1735 = vpop.f32.mrb[0].mxu0
  %v1736 = vadd.f32 %v1664, %v1735
  %v1737 = vpop.f32.mrb[0].mxu0
  %1738 = vdwg.mxu0
  %v1739 = vrot.slane %v350, 4
  %v1741 = vmul.f32 %v1736, %v1739
  %v1742 = vxor.u32 %v1741, 2147483648
  %v1743 = vmul.f32 %v1742, 1.442695
  %v1744 = vpow.pop %v1743
  %v1745 = vadd.f32 %v1744, 1.0
  %v1746 = vrcp.pop %v1745
  %v1747 = vmul.f32 1.0, %v1746
  %v1749 = vsel %vm777, %v1747, 0
  %1751 = vmatprep.subr.mxu0 %v546
  %1752 = vmatpush1.msra.mxu0 %v545
  %1753 = vmatprep.subr.mxu0 %v549
  %1754 = vmatpush1.msra.mxu0 %v548
  %1755 = vmatprep.subr.mxu0 %v552
  %1756 = vmatpush1.msra.mxu0 %v551
  %1757 = vmatprep.subr.mxu0 %v555
  %1758 = vmatpush1.msra.mxu0 %v554
  %1759 = vmatprep.subr.mxu0 %v558
  %1760 = vmatpush1.msra.mxu0 %v557
  %1761 = vmatprep.subr.mxu0 %v561
  %1762 = vmatpush1.msra.mxu0 %v560
  %1763 = vmatprep.subr.mxu0 %v564
  %1764 = vmatpush1.msra.mxu0 %v563
  %1765 = vmatprep.subr.mxu0 %v567
  %1766 = vmatpush1.msra.mxu0 %v566
  %1767 = vmatprep.subr.mxu0 %v570
  %1768 = vmatpush1.msra.mxu0 %v569
  %1769 = vmatprep.subr.mxu0 %v573
  %1770 = vmatpush1.msra.mxu0 %v572
  %1771 = vmatprep.subr.mxu0 %v576
  %1772 = vmatpush1.msra.mxu0 %v575
  %1773 = vmatprep.subr.mxu0 %v579
  %1774 = vmatpush1.msra.mxu0 %v578
  %1775 = vmatprep.subr.mxu0 0.0
  %1776 = vmatpush1.msra.mxu0 0.0
  %1777 = vmatprep.subr.mxu0 0.0
  %1778 = vmatpush1.msra.mxu0 0.0
  %1779 = vmatprep.subr.mxu0 0.0
  %1780 = vmatpush1.msra.mxu0 0.0
  %1781 = vmatprep.subr.mxu0 0.0
  %1782 = vmatpush1.msra.mxu0 0.0
  %1783 = vmatprep.subr.mxu0 0.0
  %1784 = vmatpush1.msra.mxu0 0.0
  %1785 = vmatprep.subr.mxu0 0.0
  %1786 = vmatpush1.msra.mxu0 0.0
  %1787 = vmatprep.subr.mxu0 0.0
  %1788 = vmatpush1.msra.mxu0 0.0
  %1789 = vmatprep.subr.mxu0 0.0
  %1790 = vmatpush1.msra.mxu0 0.0
  %1791 = vmatprep.subr.mxu0 0.0
  %1792 = vmatpush1.msra.mxu0 0.0
  %1793 = vmatprep.subr.mxu0 0.0
  %1794 = vmatpush1.msra.mxu0 0.0
  %1795 = vmatprep.subr.mxu0 0.0
  %1796 = vmatpush1.msra.mxu0 0.0
  %1797 = vmatprep.subr.mxu0 0.0
  %1798 = vmatpush1.msra.mxu0 0.0
  %1799 = vmatprep.subr.mxu0 0.0
  %1800 = vmatpush1.msra.mxu0 0.0
  %1801 = vmatprep.subr.mxu0 0.0
  %1802 = vmatpush1.msra.mxu0 0.0
  %1803 = vmatprep.subr.mxu0 0.0
  %1804 = vmatpush1.msra.mxu0 0.0
  %1805 = vmatprep.subr.mxu0 0.0
  %1806 = vmatpush1.msra.mxu0 0.0
  %1807 = vmatprep.subr.mxu0 0.0
  %1808 = vmatpush1.msra.mxu0 0.0
  %1809 = vmatprep.subr.mxu0 0.0
  %1810 = vmatpush1.msra.mxu0 0.0
  %1811 = vmatprep.subr.mxu0 0.0
  %1812 = vmatpush1.msra.mxu0 0.0
  %1813 = vmatprep.subr.mxu0 0.0
  %1814 = vmatpush1.msra.mxu0 0.0
  %1815 = vmatprep.mubr.f32.mxu0 0.0
  %1816 = vmatmul.mubr.f32.gmra.mrb[0].mxu0 %v1749
  %v1817 = vpop.f32.mrb[0].mxu0
  %v1818 = vadd.f32 %v765, %v1817
  %v1819 = vpop.f32.mrb[0].mxu0
  %v1820 = vadd.f32 %v769, %v1819
  %1821 = vdwg.mxu0
  %1822 = vmatprep.subr.mxu0 0.0
  %1823 = vmatpush1.msra.mxu0 %v547
  %1824 = vmatprep.subr.mxu0 0.0
  %1825 = vmatpush1.msra.mxu0 %v550
  %1826 = vmatprep.subr.mxu0 0.0
  %1827 = vmatpush1.msra.mxu0 %v553
  %1828 = vmatprep.subr.mxu0 0.0
  %1829 = vmatpush1.msra.mxu0 %v556
  %1830 = vmatprep.subr.mxu0 0.0
  %1831 = vmatpush1.msra.mxu0 %v559
  %1832 = vmatprep.subr.mxu0 0.0
  %1833 = vmatpush1.msra.mxu0 %v562
  %1834 = vmatprep.subr.mxu0 0.0
  %1835 = vmatpush1.msra.mxu0 %v565
  %1836 = vmatprep.subr.mxu0 0.0
  %1837 = vmatpush1.msra.mxu0 %v568
  %1838 = vmatprep.subr.mxu0 0.0
  %1839 = vmatpush1.msra.mxu0 %v571
  %1840 = vmatprep.subr.mxu0 0.0
  %1841 = vmatpush1.msra.mxu0 %v574
  %1842 = vmatprep.subr.mxu0 0.0
  %1843 = vmatpush1.msra.mxu0 %v577
  %1844 = vmatprep.subr.mxu0 0.0
  %1845 = vmatpush1.msra.mxu0 %v580
  %1846 = vmatprep.subr.mxu0 0.0
  %1847 = vmatpush1.msra.mxu0 0.0
  %1848 = vmatprep.subr.mxu0 0.0
  %1849 = vmatpush1.msra.mxu0 0.0
  %1850 = vmatprep.subr.mxu0 0.0
  %1851 = vmatpush1.msra.mxu0 0.0
  %1852 = vmatprep.subr.mxu0 0.0
  %1853 = vmatpush1.msra.mxu0 0.0
  %1854 = vmatprep.subr.mxu0 0.0
  %1855 = vmatpush1.msra.mxu0 0.0
  %1856 = vmatprep.subr.mxu0 0.0
  %1857 = vmatpush1.msra.mxu0 0.0
  %1858 = vmatprep.subr.mxu0 0.0
  %1859 = vmatpush1.msra.mxu0 0.0
  %1860 = vmatprep.subr.mxu0 0.0
  %1861 = vmatpush1.msra.mxu0 0.0
  %1862 = vmatprep.subr.mxu0 0.0
  %1863 = vmatpush1.msra.mxu0 0.0
  %1864 = vmatprep.subr.mxu0 0.0
  %1865 = vmatpush1.msra.mxu0 0.0
  %1866 = vmatprep.subr.mxu0 0.0
  %1867 = vmatpush1.msra.mxu0 0.0
  %1868 = vmatprep.subr.mxu0 0.0
  %1869 = vmatpush1.msra.mxu0 0.0
  %1870 = vmatprep.subr.mxu0 0.0
  %1871 = vmatpush1.msra.mxu0 0.0
  %1872 = vmatprep.subr.mxu0 0.0
  %1873 = vmatpush1.msra.mxu0 0.0
  %1874 = vmatprep.subr.mxu0 0.0
  %1875 = vmatpush1.msra.mxu0 0.0
  %1876 = vmatprep.subr.mxu0 0.0
  %1877 = vmatpush1.msra.mxu0 0.0
  %1878 = vmatprep.subr.mxu0 0.0
  %1879 = vmatpush1.msra.mxu0 0.0
  %1880 = vmatprep.subr.mxu0 0.0
  %1881 = vmatpush1.msra.mxu0 0.0
  %1882 = vmatprep.subr.mxu0 0.0
  %1883 = vmatpush1.msra.mxu0 0.0
  %1884 = vmatprep.subr.mxu0 0.0
  %1885 = vmatpush1.msra.mxu0 0.0
  %1886 = vmatprep.mubr.f32.mxu0 0.0
  %1887 = vmatmul.mubr.f32.gmra.mrb[0].mxu0 %v1749
  %v1888 = vpop.f32.mrb[0].mxu0
  %v1889 = vadd.f32 %v773, %v1888
  %v1890 = vpop.f32.mrb[0].mxu0
  %1891 = vdwg.mxu0
  %v1892 = vmul.f32 %v1818, %v1820
  %v1893 = vmul.f32 %v1892, %v1889
  %1894 = vmatprep.subr.mxu0 0.0
  %1895 = vmatpush1.msra.mxu0 %v583
  %1896 = vmatprep.subr.mxu0 0.0
  %1897 = vmatpush1.msra.mxu0 %v584
  %1898 = vmatprep.subr.mxu0 0.0
  %1899 = vmatpush1.msra.mxu0 %v585
  %1900 = vmatprep.subr.mxu0 0.0
  %1901 = vmatpush1.msra.mxu0 %v586
  %1902 = vmatprep.subr.mxu0 0.0
  %1903 = vmatpush1.msra.mxu0 %v587
  %1904 = vmatprep.subr.mxu0 0.0
  %1905 = vmatpush1.msra.mxu0 %v588
  %1906 = vmatprep.subr.mxu0 0.0
  %1907 = vmatpush1.msra.mxu0 %v589
  %1908 = vmatprep.subr.mxu0 0.0
  %1909 = vmatpush1.msra.mxu0 %v590
  %1910 = vmatprep.subr.mxu0 0.0
  %1911 = vmatpush1.msra.mxu0 %v591
  %1912 = vmatprep.subr.mxu0 0.0
  %1913 = vmatpush1.msra.mxu0 %v592
  %1914 = vmatprep.subr.mxu0 0.0
  %1915 = vmatpush1.msra.mxu0 %v593
  %1916 = vmatprep.subr.mxu0 0.0
  %1917 = vmatpush1.msra.mxu0 %v594
  %1918 = vmatprep.subr.mxu0 0.0
  %1919 = vmatpush1.msra.mxu0 %v595
  %1920 = vmatprep.subr.mxu0 0.0
  %1921 = vmatpush1.msra.mxu0 %v596
  %1922 = vmatprep.subr.mxu0 0.0
  %1923 = vmatpush1.msra.mxu0 %v597
  %1924 = vmatprep.subr.mxu0 0.0
  %1925 = vmatpush1.msra.mxu0 %v598
  %1926 = vmatprep.subr.mxu0 0.0
  %1927 = vmatpush1.msra.mxu0 0.0
  %1928 = vmatprep.subr.mxu0 0.0
  %1929 = vmatpush1.msra.mxu0 0.0
  %1930 = vmatprep.subr.mxu0 0.0
  %1931 = vmatpush1.msra.mxu0 0.0
  %1932 = vmatprep.subr.mxu0 0.0
  %1933 = vmatpush1.msra.mxu0 0.0
  %1934 = vmatprep.subr.mxu0 0.0
  %1935 = vmatpush1.msra.mxu0 0.0
  %1936 = vmatprep.subr.mxu0 0.0
  %1937 = vmatpush1.msra.mxu0 0.0
  %1938 = vmatprep.subr.mxu0 0.0
  %1939 = vmatpush1.msra.mxu0 0.0
  %1940 = vmatprep.subr.mxu0 0.0
  %1941 = vmatpush1.msra.mxu0 0.0
  %1942 = vmatprep.subr.mxu0 0.0
  %1943 = vmatpush1.msra.mxu0 0.0
  %1944 = vmatprep.subr.mxu0 0.0
  %1945 = vmatpush1.msra.mxu0 0.0
  %1946 = vmatprep.subr.mxu0 0.0
  %1947 = vmatpush1.msra.mxu0 0.0
  %1948 = vmatprep.subr.mxu0 0.0
  %1949 = vmatpush1.msra.mxu0 0.0
  %1950 = vmatprep.subr.mxu0 0.0
  %1951 = vmatpush1.msra.mxu0 0.0
  %1952 = vmatprep.subr.mxu0 0.0
  %1953 = vmatpush1.msra.mxu0 0.0
  %1954 = vmatprep.subr.mxu0 0.0
  %1955 = vmatpush1.msra.mxu0 0.0
  %1956 = vmatprep.subr.mxu0 0.0
  %1957 = vmatpush1.msra.mxu0 0.0
  %1958 = vmatprep.mubr.f32.mxu0 0.0
  %1959 = vmatmul.mubr.f32.gmra.mrb[0].mxu0 %v1893
  %v1960 = vpop.f32.mrb[0].mxu0
  %v1961 = vadd.f32 %v927, %v1960
  %v1962 = vpop.f32.mrb[0].mxu0
  %1963 = vdwg.mxu0
  %v1964 = vmax.f32 %v1961, 0.0
  %v1966 = vsel %vm44, %v1588, 0
  %v1969 = vsel %vm44, %v1589, 0
  %1971 = vmatprep.subr.mxu0 0.0
  %1972 = vmatpush1.msra.mxu0 %v600
  %1973 = vmatprep.subr.mxu0 0.0
  %1974 = vmatpush1.msra.mxu0 %v601
  %1975 = vmatprep.subr.mxu0 0.0
  %1976 = vmatpush1.msra.mxu0 %v602
  %1977 = vmatprep.subr.mxu0 0.0
  %1978 = vmatpush1.msra.mxu0 %v603
  %1979 = vmatprep.subr.mxu0 0.0
  %1980 = vmatpush1.msra.mxu0 0.0
  %1981 = vmatprep.subr.mxu0 0.0
  %1982 = vmatpush1.msra.mxu0 0.0
  %1983 = vmatprep.subr.mxu0 0.0
  %1984 = vmatpush1.msra.mxu0 0.0
  %1985 = vmatprep.subr.mxu0 0.0
  %1986 = vmatpush1.msra.mxu0 0.0
  %1987 = vmatprep.subr.mxu0 0.0
  %1988 = vmatpush1.msra.mxu0 0.0
  %1989 = vmatprep.subr.mxu0 0.0
  %1990 = vmatpush1.msra.mxu0 0.0
  %1991 = vmatprep.subr.mxu0 0.0
  %1992 = vmatpush1.msra.mxu0 0.0
  %1993 = vmatprep.subr.mxu0 0.0
  %1994 = vmatpush1.msra.mxu0 0.0
  %1995 = vmatprep.subr.mxu0 0.0
  %1996 = vmatpush1.msra.mxu0 0.0
  %1997 = vmatprep.subr.mxu0 0.0
  %1998 = vmatpush1.msra.mxu0 0.0
  %1999 = vmatprep.subr.mxu0 0.0
  %2000 = vmatpush1.msra.mxu0 0.0
  %2001 = vmatprep.subr.mxu0 0.0
  %2002 = vmatpush1.msra.mxu0 0.0
  %2003 = vmatprep.subr.mxu0 0.0
  %2004 = vmatpush1.msra.mxu0 0.0
  %2005 = vmatprep.subr.mxu0 0.0
  %2006 = vmatpush1.msra.mxu0 0.0
  %2007 = vmatprep.subr.mxu0 0.0
  %2008 = vmatpush1.msra.mxu0 0.0
  %2009 = vmatprep.subr.mxu0 0.0
  %2010 = vmatpush1.msra.mxu0 0.0
  %2011 = vmatprep.subr.mxu0 0.0
  %2012 = vmatpush1.msra.mxu0 0.0
  %2013 = vmatprep.subr.mxu0 0.0
  %2014 = vmatpush1.msra.mxu0 0.0
  %2015 = vmatprep.subr.mxu0 0.0
  %2016 = vmatpush1.msra.mxu0 0.0
  %2017 = vmatprep.subr.mxu0 0.0
  %2018 = vmatpush1.msra.mxu0 0.0
  %2019 = vmatprep.subr.mxu0 0.0
  %2020 = vmatpush1.msra.mxu0 0.0
  %2021 = vmatprep.subr.mxu0 0.0
  %2022 = vmatpush1.msra.mxu0 0.0
  %2023 = vmatprep.subr.mxu0 0.0
  %2024 = vmatpush1.msra.mxu0 0.0
  %2025 = vmatprep.subr.mxu0 0.0
  %2026 = vmatpush1.msra.mxu0 0.0
  %2027 = vmatprep.subr.mxu0 0.0
  %2028 = vmatpush1.msra.mxu0 0.0
  %2029 = vmatprep.subr.mxu0 0.0
  %2030 = vmatpush1.msra.mxu0 0.0
  %2031 = vmatprep.subr.mxu0 0.0
  %2032 = vmatpush1.msra.mxu0 0.0
  %2033 = vmatprep.subr.mxu0 0.0
  %2034 = vmatpush1.msra.mxu0 0.0
  %2035 = vmatprep.mubr.f32.mxu0 0.0
  %2036 = vmatmul.mubr.f32.gmra.mrb[0].mxu0 %v1966
  %v2037 = vpop.f32.mrb[0].mxu0
  %v2038 = vadd.f32 %v504, %v2037
  %v2039 = vpop.f32.mrb[0].mxu0
  %2040 = vmatprep.mubr.f32.mxu0 0.0
  %2041 = vmatmul.mubr.f32.gmra.mrb[0].mxu0 %v1969
  %v2042 = vpop.f32.mrb[0].mxu0
  %v2043 = vadd.f32 %v508, %v2042
  %v2044 = vpop.f32.mrb[0].mxu0
  %2045 = vdwg.mxu0
  %v2046 = vxor.u32 %v2038, 2147483648
  %v2047 = vxor.u32 %v2043, 2147483648
  %v2048 = vmul.f32 %v2046, 1.442695
  %v2049 = vpow.pop %v2048
  %v2050 = vmul.f32 %v2047, 1.442695
  %v2051 = vpow.pop %v2050
  %v2052 = vadd.f32 %v2049, 1.0
  %v2053 = vadd.f32 %v2051, 1.0
  %v2054 = vrcp.pop %v2052
  %v2055 = vmul.f32 1.0, %v2054
  %v2056 = vrcp.pop %v2053
  %v2057 = vmul.f32 1.0, %v2056
  %v2058 = vmul.f32 %v1588, %v2055
  %v2059 = vmul.f32 %v1589, %v2057
  %v2060 = vlaneseq
  %v2061 = vshrl.u32 %v2060, 7
  %v2062 = vsub.s32 0, %v2061
  %v2063 = vrot.slane %v1964, %v2062
  %v2064 = vlaneseq
  %v2065 = vshrl.u32 %v2064, 7
  %v2066 = vsub.s32 1, %v2065
  %v2067 = vrot.slane %v1964, %v2066
  %v2068 = vmul.f32 %v25, %v2063
  %v2069 = vmul.f32 %v26, %v2067
  %v2070 = vadd.f32 %v2058, %v2068
  %v2071 = vadd.f32 %v2059, %v2069
  %v2072 = vrot.slane %v18, 6
  %v2073 = vsel %vm135, %v2072, 0
  %2075 = vmatprep.subr.mxu0 0.0
  %2076 = vmatpush1.msra.mxu0 %v2070
  %2077 = vmatprep.subr.mxu0 0.0
  %2078 = vmatpush1.msra.mxu0 %v2071
  %2079 = vmatprep.subr.mxu0 0.0
  %2080 = vmatpush1.msra.mxu0 0.0
  %2081 = vmatprep.subr.mxu0 0.0
  %2082 = vmatpush1.msra.mxu0 0.0
  %2083 = vmatprep.subr.mxu0 0.0
  %2084 = vmatpush1.msra.mxu0 0.0
  %2085 = vmatprep.subr.mxu0 0.0
  %2086 = vmatpush1.msra.mxu0 0.0
  %2087 = vmatprep.subr.mxu0 0.0
  %2088 = vmatpush1.msra.mxu0 0.0
  %2089 = vmatprep.subr.mxu0 0.0
  %2090 = vmatpush1.msra.mxu0 0.0
  %2091 = vmatprep.subr.mxu0 0.0
  %2092 = vmatpush1.msra.mxu0 0.0
  %2093 = vmatprep.subr.mxu0 0.0
  %2094 = vmatpush1.msra.mxu0 0.0
  %2095 = vmatprep.subr.mxu0 0.0
  %2096 = vmatpush1.msra.mxu0 0.0
  %2097 = vmatprep.subr.mxu0 0.0
  %2098 = vmatpush1.msra.mxu0 0.0
  %2099 = vmatprep.subr.mxu0 0.0
  %2100 = vmatpush1.msra.mxu0 0.0
  %2101 = vmatprep.subr.mxu0 0.0
  %2102 = vmatpush1.msra.mxu0 0.0
  %2103 = vmatprep.subr.mxu0 0.0
  %2104 = vmatpush1.msra.mxu0 0.0
  %2105 = vmatprep.subr.mxu0 0.0
  %2106 = vmatpush1.msra.mxu0 0.0
  %2107 = vmatprep.subr.mxu0 0.0
  %2108 = vmatpush1.msra.mxu0 0.0
  %2109 = vmatprep.subr.mxu0 0.0
  %2110 = vmatpush1.msra.mxu0 0.0
  %2111 = vmatprep.subr.mxu0 0.0
  %2112 = vmatpush1.msra.mxu0 0.0
  %2113 = vmatprep.subr.mxu0 0.0
  %2114 = vmatpush1.msra.mxu0 0.0
  %2115 = vmatprep.subr.mxu0 0.0
  %2116 = vmatpush1.msra.mxu0 0.0
  %2117 = vmatprep.subr.mxu0 0.0
  %2118 = vmatpush1.msra.mxu0 0.0
  %2119 = vmatprep.subr.mxu0 0.0
  %2120 = vmatpush1.msra.mxu0 0.0
  %2121 = vmatprep.subr.mxu0 0.0
  %2122 = vmatpush1.msra.mxu0 0.0
  %2123 = vmatprep.subr.mxu0 0.0
  %2124 = vmatpush1.msra.mxu0 0.0
  %2125 = vmatprep.subr.mxu0 0.0
  %2126 = vmatpush1.msra.mxu0 0.0
  %2127 = vmatprep.subr.mxu0 0.0
  %2128 = vmatpush1.msra.mxu0 0.0
  %2129 = vmatprep.subr.mxu0 0.0
  %2130 = vmatpush1.msra.mxu0 0.0
  %2131 = vmatprep.subr.mxu0 0.0
  %2132 = vmatpush1.msra.mxu0 0.0
  %2133 = vmatprep.subr.mxu0 0.0
  %2134 = vmatpush1.msra.mxu0 0.0
  %2135 = vmatprep.subr.mxu0 0.0
  %2136 = vmatpush1.msra.mxu0 0.0
  %2137 = vmatprep.subr.mxu0 0.0
  %2138 = vmatpush1.msra.mxu0 0.0
  %2139 = vmatprep.mubr.f32.mxu0 0.0
  %2140 = vmatmul.mubr.f32.gmra.mrb[0].mxu0 %v2073
  %v2141 = vpop.f32.mrb[0].mxu0
  %v2142 = vadd.f32 0.0, %v2141
  %v2143 = vpop.f32.mrb[0].mxu0
  %2144 = vdwg.mxu0
  %2145 = vst.msk [vmem:[#allocation2 + $0x6] sm:$0x3] %vm679, %v2142
  %v2146 = vrot.slane %v293, 6
  %v2149 = vsel %vm44, %v2142, 0
  %2151 = vmatprep.subr.mxu0 0.0
  %2152 = vmatpush1.msra.mxu0 %v541
  %2153 = vmatprep.subr.mxu0 0.0
  %2154 = vmatpush1.msra.mxu0 %v542
  %2155 = vmatprep.subr.mxu0 0.0
  %2156 = vmatpush1.msra.mxu0 %v543
  %2157 = vmatprep.subr.mxu0 0.0
  %2158 = vmatpush1.msra.mxu0 %v544
  %2159 = vmatprep.subr.mxu0 0.0
  %2160 = vmatpush1.msra.mxu0 0.0
  %2161 = vmatprep.subr.mxu0 0.0
  %2162 = vmatpush1.msra.mxu0 0.0
  %2163 = vmatprep.subr.mxu0 0.0
  %2164 = vmatpush1.msra.mxu0 0.0
  %2165 = vmatprep.subr.mxu0 0.0
  %2166 = vmatpush1.msra.mxu0 0.0
  %2167 = vmatprep.subr.mxu0 0.0
  %2168 = vmatpush1.msra.mxu0 0.0
  %2169 = vmatprep.subr.mxu0 0.0
  %2170 = vmatpush1.msra.mxu0 0.0
  %2171 = vmatprep.subr.mxu0 0.0
  %2172 = vmatpush1.msra.mxu0 0.0
  %2173 = vmatprep.subr.mxu0 0.0
  %2174 = vmatpush1.msra.mxu0 0.0
  %2175 = vmatprep.subr.mxu0 0.0
  %2176 = vmatpush1.msra.mxu0 0.0
  %2177 = vmatprep.subr.mxu0 0.0
  %2178 = vmatpush1.msra.mxu0 0.0
  %2179 = vmatprep.subr.mxu0 0.0
  %2180 = vmatpush1.msra.mxu0 0.0
  %2181 = vmatprep.subr.mxu0 0.0
  %2182 = vmatpush1.msra.mxu0 0.0
  %2183 = vmatprep.subr.mxu0 0.0
  %2184 = vmatpush1.msra.mxu0 0.0
  %2185 = vmatprep.subr.mxu0 0.0
  %2186 = vmatpush1.msra.mxu0 0.0
  %2187 = vmatprep.subr.mxu0 0.0
  %2188 = vmatpush1.msra.mxu0 0.0
  %2189 = vmatprep.subr.mxu0 0.0
  %2190 = vmatpush1.msra.mxu0 0.0
  %2191 = vmatprep.subr.mxu0 0.0
  %2192 = vmatpush1.msra.mxu0 0.0
  %2193 = vmatprep.subr.mxu0 0.0
  %2194 = vmatpush1.msra.mxu0 0.0
  %2195 = vmatprep.subr.mxu0 0.0
  %2196 = vmatpush1.msra.mxu0 0.0
  %2197 = vmatprep.subr.mxu0 0.0
  %2198 = vmatpush1.msra.mxu0 0.0
  %2199 = vmatprep.subr.mxu0 0.0
  %2200 = vmatpush1.msra.mxu0 0.0
  %2201 = vmatprep.subr.mxu0 0.0
  %2202 = vmatpush1.msra.mxu0 0.0
  %2203 = vmatprep.subr.mxu0 0.0
  %2204 = vmatpush1.msra.mxu0 0.0
  %2205 = vmatprep.subr.mxu0 0.0
  %2206 = vmatpush1.msra.mxu0 0.0
  %2207 = vmatprep.subr.mxu0 0.0
  %2208 = vmatpush1.msra.mxu0 0.0
  %2209 = vmatprep.subr.mxu0 0.0
  %2210 = vmatpush1.msra.mxu0 0.0
  %2211 = vmatprep.subr.mxu0 0.0
  %2212 = vmatpush1.msra.mxu0 0.0
  %2213 = vmatprep.subr.mxu0 0.0
  %2214 = vmatpush1.msra.mxu0 0.0
  %2215 = vmatprep.mubr.f32.mxu0 0.0
  %2216 = vmatmul.mubr.f32.gmra.mrb[0].mxu0 %v2149
  %v2217 = vpop.f32.mrb[0].mxu0
  %v2218 = vadd.f32 %v2146, %v2217
  %v2219 = vpop.f32.mrb[0].mxu0
  %2220 = vdwg.mxu0
  %v2221 = vrot.slane %v350, 6
  %v2223 = vmul.f32 %v2218, %v2221
  %v2224 = vxor.u32 %v2223, 2147483648
  %v2225 = vmul.f32 %v2224, 1.442695
  %v2226 = vpow.pop %v2225
  %v2227 = vadd.f32 %v2226, 1.0
  %v2228 = vrcp.pop %v2227
  %v2229 = vmul.f32 1.0, %v2228
  %v2231 = vsel %vm777, %v2229, 0
  %2233 = vmatprep.subr.mxu0 %v546
  %2234 = vmatpush1.msra.mxu0 %v545
  %2235 = vmatprep.subr.mxu0 %v549
  %2236 = vmatpush1.msra.mxu0 %v548
  %2237 = vmatprep.subr.mxu0 %v552
  %2238 = vmatpush1.msra.mxu0 %v551
  %2239 = vmatprep.subr.mxu0 %v555
  %2240 = vmatpush1.msra.mxu0 %v554
  %2241 = vmatprep.subr.mxu0 %v558
  %2242 = vmatpush1.msra.mxu0 %v557
  %2243 = vmatprep.subr.mxu0 %v561
  %2244 = vmatpush1.msra.mxu0 %v560
  %2245 = vmatprep.subr.mxu0 %v564
  %2246 = vmatpush1.msra.mxu0 %v563
  %2247 = vmatprep.subr.mxu0 %v567
  %2248 = vmatpush1.msra.mxu0 %v566
  %2249 = vmatprep.subr.mxu0 %v570
  %2250 = vmatpush1.msra.mxu0 %v569
  %2251 = vmatprep.subr.mxu0 %v573
  %2252 = vmatpush1.msra.mxu0 %v572
  %2253 = vmatprep.subr.mxu0 %v576
  %2254 = vmatpush1.msra.mxu0 %v575
  %2255 = vmatprep.subr.mxu0 %v579
  %2256 = vmatpush1.msra.mxu0 %v578
  %2257 = vmatprep.subr.mxu0 0.0
  %2258 = vmatpush1.msra.mxu0 0.0
  %2259 = vmatprep.subr.mxu0 0.0
  %2260 = vmatpush1.msra.mxu0 0.0
  %2261 = vmatprep.subr.mxu0 0.0
  %2262 = vmatpush1.msra.mxu0 0.0
  %2263 = vmatprep.subr.mxu0 0.0
  %2264 = vmatpush1.msra.mxu0 0.0
  %2265 = vmatprep.subr.mxu0 0.0
  %2266 = vmatpush1.msra.mxu0 0.0
  %2267 = vmatprep.subr.mxu0 0.0
  %2268 = vmatpush1.msra.mxu0 0.0
  %2269 = vmatprep.subr.mxu0 0.0
  %2270 = vmatpush1.msra.mxu0 0.0
  %2271 = vmatprep.subr.mxu0 0.0
  %2272 = vmatpush1.msra.mxu0 0.0
  %2273 = vmatprep.subr.mxu0 0.0
  %2274 = vmatpush1.msra.mxu0 0.0
  %2275 = vmatprep.subr.mxu0 0.0
  %2276 = vmatpush1.msra.mxu0 0.0
  %2277 = vmatprep.subr.mxu0 0.0
  %2278 = vmatpush1.msra.mxu0 0.0
  %2279 = vmatprep.subr.mxu0 0.0
  %2280 = vmatpush1.msra.mxu0 0.0
  %2281 = vmatprep.subr.mxu0 0.0
  %2282 = vmatpush1.msra.mxu0 0.0
  %2283 = vmatprep.subr.mxu0 0.0
  %2284 = vmatpush1.msra.mxu0 0.0
  %2285 = vmatprep.subr.mxu0 0.0
  %2286 = vmatpush1.msra.mxu0 0.0
  %2287 = vmatprep.subr.mxu0 0.0
  %2288 = vmatpush1.msra.mxu0 0.0
  %2289 = vmatprep.subr.mxu0 0.0
  %2290 = vmatpush1.msra.mxu0 0.0
  %2291 = vmatprep.subr.mxu0 0.0
  %2292 = vmatpush1.msra.mxu0 0.0
  %2293 = vmatprep.subr.mxu0 0.0
  %2294 = vmatpush1.msra.mxu0 0.0
  %2295 = vmatprep.subr.mxu0 0.0
  %2296 = vmatpush1.msra.mxu0 0.0
  %2297 = vmatprep.mubr.f32.mxu0 0.0
  %2298 = vmatmul.mubr.f32.gmra.mrb[0].mxu0 %v2231
  %v2299 = vpop.f32.mrb[0].mxu0
  %v2300 = vadd.f32 %v765, %v2299
  %v2301 = vpop.f32.mrb[0].mxu0
  %v2302 = vadd.f32 %v769, %v2301
  %2303 = vdwg.mxu0
  %2304 = vmatprep.subr.mxu0 0.0
  %2305 = vmatpush1.msra.mxu0 %v547
  %2306 = vmatprep.subr.mxu0 0.0
  %2307 = vmatpush1.msra.mxu0 %v550
  %2308 = vmatprep.subr.mxu0 0.0
  %2309 = vmatpush1.msra.mxu0 %v553
  %2310 = vmatprep.subr.mxu0 0.0
  %2311 = vmatpush1.msra.mxu0 %v556
  %2312 = vmatprep.subr.mxu0 0.0
  %2313 = vmatpush1.msra.mxu0 %v559
  %2314 = vmatprep.subr.mxu0 0.0
  %2315 = vmatpush1.msra.mxu0 %v562
  %2316 = vmatprep.subr.mxu0 0.0
  %2317 = vmatpush1.msra.mxu0 %v565
  %2318 = vmatprep.subr.mxu0 0.0
  %2319 = vmatpush1.msra.mxu0 %v568
  %2320 = vmatprep.subr.mxu0 0.0
  %2321 = vmatpush1.msra.mxu0 %v571
  %2322 = vmatprep.subr.mxu0 0.0
  %2323 = vmatpush1.msra.mxu0 %v574
  %2324 = vmatprep.subr.mxu0 0.0
  %2325 = vmatpush1.msra.mxu0 %v577
  %2326 = vmatprep.subr.mxu0 0.0
  %2327 = vmatpush1.msra.mxu0 %v580
  %2328 = vmatprep.subr.mxu0 0.0
  %2329 = vmatpush1.msra.mxu0 0.0
  %2330 = vmatprep.subr.mxu0 0.0
  %2331 = vmatpush1.msra.mxu0 0.0
  %2332 = vmatprep.subr.mxu0 0.0
  %2333 = vmatpush1.msra.mxu0 0.0
  %2334 = vmatprep.subr.mxu0 0.0
  %2335 = vmatpush1.msra.mxu0 0.0
  %2336 = vmatprep.subr.mxu0 0.0
  %2337 = vmatpush1.msra.mxu0 0.0
  %2338 = vmatprep.subr.mxu0 0.0
  %2339 = vmatpush1.msra.mxu0 0.0
  %2340 = vmatprep.subr.mxu0 0.0
  %2341 = vmatpush1.msra.mxu0 0.0
  %2342 = vmatprep.subr.mxu0 0.0
  %2343 = vmatpush1.msra.mxu0 0.0
  %2344 = vmatprep.subr.mxu0 0.0
  %2345 = vmatpush1.msra.mxu0 0.0
  %2346 = vmatprep.subr.mxu0 0.0
  %2347 = vmatpush1.msra.mxu0 0.0
  %2348 = vmatprep.subr.mxu0 0.0
  %2349 = vmatpush1.msra.mxu0 0.0
  %2350 = vmatprep.subr.mxu0 0.0
  %2351 = vmatpush1.msra.mxu0 0.0
  %2352 = vmatprep.subr.mxu0 0.0
  %2353 = vmatpush1.msra.mxu0 0.0
  %2354 = vmatprep.subr.mxu0 0.0
  %2355 = vmatpush1.msra.mxu0 0.0
  %2356 = vmatprep.subr.mxu0 0.0
  %2357 = vmatpush1.msra.mxu0 0.0
  %2358 = vmatprep.subr.mxu0 0.0
  %2359 = vmatpush1.msra.mxu0 0.0
  %2360 = vmatprep.subr.mxu0 0.0
  %2361 = vmatpush1.msra.mxu0 0.0
  %2362 = vmatprep.subr.mxu0 0.0
  %2363 = vmatpush1.msra.mxu0 0.0
  %2364 = vmatprep.subr.mxu0 0.0
  %2365 = vmatpush1.msra.mxu0 0.0
  %2366 = vmatprep.subr.mxu0 0.0
  %2367 = vmatpush1.msra.mxu0 0.0
  %2368 = vmatprep.mubr.f32.mxu0 0.0
  %2369 = vmatmul.mubr.f32.gmra.mrb[0].mxu0 %v2231
  %v2370 = vpop.f32.mrb[0].mxu0
  %v2371 = vadd.f32 %v773, %v2370
  %v2372 = vpop.f32.mrb[0].mxu0
  %2373 = vdwg.mxu0
  %v2374 = vmul.f32 %v2300, %v2302
  %v2375 = vmul.f32 %v2374, %v2371
  %2376 = vmatprep.subr.mxu0 0.0
  %2377 = vmatpush1.msra.mxu0 %v583
  %2378 = vmatprep.subr.mxu0 0.0
  %2379 = vmatpush1.msra.mxu0 %v584
  %2380 = vmatprep.subr.mxu0 0.0
  %2381 = vmatpush1.msra.mxu0 %v585
  %2382 = vmatprep.subr.mxu0 0.0
  %2383 = vmatpush1.msra.mxu0 %v586
  %2384 = vmatprep.subr.mxu0 0.0
  %2385 = vmatpush1.msra.mxu0 %v587
  %2386 = vmatprep.subr.mxu0 0.0
  %2387 = vmatpush1.msra.mxu0 %v588
  %2388 = vmatprep.subr.mxu0 0.0
  %2389 = vmatpush1.msra.mxu0 %v589
  %2390 = vmatprep.subr.mxu0 0.0
  %2391 = vmatpush1.msra.mxu0 %v590
  %2392 = vmatprep.subr.mxu0 0.0
  %2393 = vmatpush1.msra.mxu0 %v591
  %2394 = vmatprep.subr.mxu0 0.0
  %2395 = vmatpush1.msra.mxu0 %v592
  %2396 = vmatprep.subr.mxu0 0.0
  %2397 = vmatpush1.msra.mxu0 %v593
  %2398 = vmatprep.subr.mxu0 0.0
  %2399 = vmatpush1.msra.mxu0 %v594
  %2400 = vmatprep.subr.mxu0 0.0
  %2401 = vmatpush1.msra.mxu0 %v595
  %2402 = vmatprep.subr.mxu0 0.0
  %2403 = vmatpush1.msra.mxu0 %v596
  %2404 = vmatprep.subr.mxu0 0.0
  %2405 = vmatpush1.msra.mxu0 %v597
  %2406 = vmatprep.subr.mxu0 0.0
  %2407 = vmatpush1.msra.mxu0 %v598
  %2408 = vmatprep.subr.mxu0 0.0
  %2409 = vmatpush1.msra.mxu0 0.0
  %2410 = vmatprep.subr.mxu0 0.0
  %2411 = vmatpush1.msra.mxu0 0.0
  %2412 = vmatprep.subr.mxu0 0.0
  %2413 = vmatpush1.msra.mxu0 0.0
  %2414 = vmatprep.subr.mxu0 0.0
  %2415 = vmatpush1.msra.mxu0 0.0
  %2416 = vmatprep.subr.mxu0 0.0
  %2417 = vmatpush1.msra.mxu0 0.0
  %2418 = vmatprep.subr.mxu0 0.0
  %2419 = vmatpush1.msra.mxu0 0.0
  %2420 = vmatprep.subr.mxu0 0.0
  %2421 = vmatpush1.msra.mxu0 0.0
  %2422 = vmatprep.subr.mxu0 0.0
  %2423 = vmatpush1.msra.mxu0 0.0
  %2424 = vmatprep.subr.mxu0 0.0
  %2425 = vmatpush1.msra.mxu0 0.0
  %2426 = vmatprep.subr.mxu0 0.0
  %2427 = vmatpush1.msra.mxu0 0.0
  %2428 = vmatprep.subr.mxu0 0.0
  %2429 = vmatpush1.msra.mxu0 0.0
  %2430 = vmatprep.subr.mxu0 0.0
  %2431 = vmatpush1.msra.mxu0 0.0
  %2432 = vmatprep.subr.mxu0 0.0
  %2433 = vmatpush1.msra.mxu0 0.0
  %2434 = vmatprep.subr.mxu0 0.0
  %2435 = vmatpush1.msra.mxu0 0.0
  %2436 = vmatprep.subr.mxu0 0.0
  %2437 = vmatpush1.msra.mxu0 0.0
  %2438 = vmatprep.subr.mxu0 0.0
  %2439 = vmatpush1.msra.mxu0 0.0
  %2440 = vmatprep.mubr.f32.mxu0 0.0
  %2441 = vmatmul.mubr.f32.gmra.mrb[0].mxu0 %v2375
  %v2442 = vpop.f32.mrb[0].mxu0
  %v2443 = vadd.f32 %v927, %v2442
  %v2444 = vpop.f32.mrb[0].mxu0
  %2445 = vdwg.mxu0
  %v2446 = vmax.f32 %v2443, 0.0
  %v2448 = vsel %vm44, %v2070, 0
  %v2451 = vsel %vm44, %v2071, 0
  %2453 = vmatprep.subr.mxu0 0.0
  %2454 = vmatpush1.msra.mxu0 %v600
  %2455 = vmatprep.subr.mxu0 0.0
  %2456 = vmatpush1.msra.mxu0 %v601
  %2457 = vmatprep.subr.mxu0 0.0
  %2458 = vmatpush1.msra.mxu0 %v602
  %2459 = vmatprep.subr.mxu0 0.0
  %2460 = vmatpush1.msra.mxu0 %v603
  %2461 = vmatprep.subr.mxu0 0.0
  %2462 = vmatpush1.msra.mxu0 0.0
  %2463 = vmatprep.subr.mxu0 0.0
  %2464 = vmatpush1.msra.mxu0 0.0
  %2465 = vmatprep.subr.mxu0 0.0
  %2466 = vmatpush1.msra.mxu0 0.0
  %2467 = vmatprep.subr.mxu0 0.0
  %2468 = vmatpush1.msra.mxu0 0.0
  %2469 = vmatprep.subr.mxu0 0.0
  %2470 = vmatpush1.msra.mxu0 0.0
  %2471 = vmatprep.subr.mxu0 0.0
  %2472 = vmatpush1.msra.mxu0 0.0
  %2473 = vmatprep.subr.mxu0 0.0
  %2474 = vmatpush1.msra.mxu0 0.0
  %2475 = vmatprep.subr.mxu0 0.0
  %2476 = vmatpush1.msra.mxu0 0.0
  %2477 = vmatprep.subr.mxu0 0.0
  %2478 = vmatpush1.msra.mxu0 0.0
  %2479 = vmatprep.subr.mxu0 0.0
  %2480 = vmatpush1.msra.mxu0 0.0
  %2481 = vmatprep.subr.mxu0 0.0
  %2482 = vmatpush1.msra.mxu0 0.0
  %2483 = vmatprep.subr.mxu0 0.0
  %2484 = vmatpush1.msra.mxu0 0.0
  %2485 = vmatprep.subr.mxu0 0.0
  %2486 = vmatpush1.msra.mxu0 0.0
  %2487 = vmatprep.subr.mxu0 0.0
  %2488 = vmatpush1.msra.mxu0 0.0
  %2489 = vmatprep.subr.mxu0 0.0
  %2490 = vmatpush1.msra.mxu0 0.0
  %2491 = vmatprep.subr.mxu0 0.0
  %2492 = vmatpush1.msra.mxu0 0.0
  %2493 = vmatprep.subr.mxu0 0.0
  %2494 = vmatpush1.msra.mxu0 0.0
  %2495 = vmatprep.subr.mxu0 0.0
  %2496 = vmatpush1.msra.mxu0 0.0
  %2497 = vmatprep.subr.mxu0 0.0
  %2498 = vmatpush1.msra.mxu0 0.0
  %2499 = vmatprep.subr.mxu0 0.0
  %2500 = vmatpush1.msra.mxu0 0.0
  %2501 = vmatprep.subr.mxu0 0.0
  %2502 = vmatpush1.msra.mxu0 0.0
  %2503 = vmatprep.subr.mxu0 0.0
  %2504 = vmatpush1.msra.mxu0 0.0
  %2505 = vmatprep.subr.mxu0 0.0
  %2506 = vmatpush1.msra.mxu0 0.0
  %2507 = vmatprep.subr.mxu0 0.0
  %2508 = vmatpush1.msra.mxu0 0.0
  %2509 = vmatprep.subr.mxu0 0.0
  %2510 = vmatpush1.msra.mxu0 0.0
  %2511 = vmatprep.subr.mxu0 0.0
  %2512 = vmatpush1.msra.mxu0 0.0
  %2513 = vmatprep.subr.mxu0 0.0
  %2514 = vmatpush1.msra.mxu0 0.0
  %2515 = vmatprep.subr.mxu0 0.0
  %2516 = vmatpush1.msra.mxu0 0.0
  %2517 = vmatprep.mubr.f32.mxu0 0.0
  %2518 = vmatmul.mubr.f32.gmra.mrb[0].mxu0 %v2448
  %v2519 = vpop.f32.mrb[0].mxu0
  %v2520 = vadd.f32 %v512, %v2519
  %v2521 = vpop.f32.mrb[0].mxu0
  %2522 = vmatprep.mubr.f32.mxu0 0.0
  %2523 = vmatmul.mubr.f32.gmra.mrb[0].mxu0 %v2451
  %v2524 = vpop.f32.mrb[0].mxu0
  %v2525 = vadd.f32 %v516, %v2524
  %v2526 = vpop.f32.mrb[0].mxu0
  %2527 = vdwg.mxu0
  %v2528 = vxor.u32 %v2520, 2147483648
  %v2529 = vxor.u32 %v2525, 2147483648
  %v2530 = vmul.f32 %v2528, 1.442695
  %v2531 = vpow.pop %v2530
  %v2532 = vmul.f32 %v2529, 1.442695
  %v2533 = vpow.pop %v2532
  %v2534 = vadd.f32 %v2531, 1.0
  %v2535 = vadd.f32 %v2533, 1.0
  %v2536 = vrcp.pop %v2534
  %v2537 = vmul.f32 1.0, %v2536
  %v2538 = vrcp.pop %v2535
  %v2539 = vmul.f32 1.0, %v2538
  %v2540 = vmul.f32 %v2070, %v2537
  %v2541 = vmul.f32 %v2071, %v2539
  %v2542 = vlaneseq
  %v2543 = vshrl.u32 %v2542, 7
  %v2544 = vsub.s32 0, %v2543
  %v2545 = vrot.slane %v2446, %v2544
  %v2546 = vlaneseq
  %v2547 = vshrl.u32 %v2546, 7
  %v2548 = vsub.s32 1, %v2547
  %v2549 = vrot.slane %v2446, %v2548
  %v2550 = vmul.f32 %v27, %v2545
  %v2551 = vmul.f32 %v28, %v2549
  %v2552 = vadd.f32 %v2540, %v2550
  %v2553 = vadd.f32 %v2541, %v2551
  %v2555 = vsel %vm135, %v20, 0
  %2557 = vmatprep.subr.mxu0 0.0
  %2558 = vmatpush1.msra.mxu0 %v2552
  %2559 = vmatprep.subr.mxu0 0.0
  %2560 = vmatpush1.msra.mxu0 %v2553
  %2561 = vmatprep.subr.mxu0 0.0
  %2562 = vmatpush1.msra.mxu0 0.0
  %2563 = vmatprep.subr.mxu0 0.0
  %2564 = vmatpush1.msra.mxu0 0.0
  %2565 = vmatprep.subr.mxu0 0.0
  %2566 = vmatpush1.msra.mxu0 0.0
  %2567 = vmatprep.subr.mxu0 0.0
  %2568 = vmatpush1.msra.mxu0 0.0
  %2569 = vmatprep.subr.mxu0 0.0
  %2570 = vmatpush1.msra.mxu0 0.0
  %2571 = vmatprep.subr.mxu0 0.0
  %2572 = vmatpush1.msra.mxu0 0.0
  %2573 = vmatprep.subr.mxu0 0.0
  %2574 = vmatpush1.msra.mxu0 0.0
  %2575 = vmatprep.subr.mxu0 0.0
  %2576 = vmatpush1.msra.mxu0 0.0
  %2577 = vmatprep.subr.mxu0 0.0
  %2578 = vmatpush1.msra.mxu0 0.0
  %2579 = vmatprep.subr.mxu0 0.0
  %2580 = vmatpush1.msra.mxu0 0.0
  %2581 = vmatprep.subr.mxu0 0.0
  %2582 = vmatpush1.msra.mxu0 0.0
  %2583 = vmatprep.subr.mxu0 0.0
  %2584 = vmatpush1.msra.mxu0 0.0
  %2585 = vmatprep.subr.mxu0 0.0
  %2586 = vmatpush1.msra.mxu0 0.0
  %2587 = vmatprep.subr.mxu0 0.0
  %2588 = vmatpush1.msra.mxu0 0.0
  %2589 = vmatprep.subr.mxu0 0.0
  %2590 = vmatpush1.msra.mxu0 0.0
  %2591 = vmatprep.subr.mxu0 0.0
  %2592 = vmatpush1.msra.mxu0 0.0
  %2593 = vmatprep.subr.mxu0 0.0
  %2594 = vmatpush1.msra.mxu0 0.0
  %2595 = vmatprep.subr.mxu0 0.0
  %2596 = vmatpush1.msra.mxu0 0.0
  %2597 = vmatprep.subr.mxu0 0.0
  %2598 = vmatpush1.msra.mxu0 0.0
  %2599 = vmatprep.subr.mxu0 0.0
  %2600 = vmatpush1.msra.mxu0 0.0
  %2601 = vmatprep.subr.mxu0 0.0
  %2602 = vmatpush1.msra.mxu0 0.0
  %2603 = vmatprep.subr.mxu0 0.0
  %2604 = vmatpush1.msra.mxu0 0.0
  %2605 = vmatprep.subr.mxu0 0.0
  %2606 = vmatpush1.msra.mxu0 0.0
  %2607 = vmatprep.subr.mxu0 0.0
  %2608 = vmatpush1.msra.mxu0 0.0
  %2609 = vmatprep.subr.mxu0 0.0
  %2610 = vmatpush1.msra.mxu0 0.0
  %2611 = vmatprep.subr.mxu0 0.0
  %2612 = vmatpush1.msra.mxu0 0.0
  %2613 = vmatprep.subr.mxu0 0.0
  %2614 = vmatpush1.msra.mxu0 0.0
  %2615 = vmatprep.subr.mxu0 0.0
  %2616 = vmatpush1.msra.mxu0 0.0
  %2617 = vmatprep.subr.mxu0 0.0
  %2618 = vmatpush1.msra.mxu0 0.0
  %2619 = vmatprep.subr.mxu0 0.0
  %2620 = vmatpush1.msra.mxu0 0.0
  %2621 = vmatprep.mubr.f32.mxu0 0.0
  %2622 = vmatmul.mubr.f32.gmra.mrb[0].mxu0 %v2555
  %v2623 = vpop.f32.mrb[0].mxu0
  %v2624 = vadd.f32 0.0, %v2623
  %v2625 = vpop.f32.mrb[0].mxu0
  %2626 = vdwg.mxu0
  %2627 = vst.msk [vmem:[#allocation2 + $0x8] sm:$0x3] %vm679, %v2624
  %v2629 = vsel %vm44, %v2624, 0
  %2631 = vmatprep.subr.mxu0 0.0
  %2632 = vmatpush1.msra.mxu0 %v541
  %2633 = vmatprep.subr.mxu0 0.0
  %2634 = vmatpush1.msra.mxu0 %v542
  %2635 = vmatprep.subr.mxu0 0.0
  %2636 = vmatpush1.msra.mxu0 %v543
  %2637 = vmatprep.subr.mxu0 0.0
  %2638 = vmatpush1.msra.mxu0 %v544
  %2639 = vmatprep.subr.mxu0 0.0
  %2640 = vmatpush1.msra.mxu0 0.0
  %2641 = vmatprep.subr.mxu0 0.0
  %2642 = vmatpush1.msra.mxu0 0.0
  %2643 = vmatprep.subr.mxu0 0.0
  %2644 = vmatpush1.msra.mxu0 0.0
  %2645 = vmatprep.subr.mxu0 0.0
  %2646 = vmatpush1.msra.mxu0 0.0
  %2647 = vmatprep.subr.mxu0 0.0
  %2648 = vmatpush1.msra.mxu0 0.0
  %2649 = vmatprep.subr.mxu0 0.0
  %2650 = vmatpush1.msra.mxu0 0.0
  %2651 = vmatprep.subr.mxu0 0.0
  %2652 = vmatpush1.msra.mxu0 0.0
  %2653 = vmatprep.subr.mxu0 0.0
  %2654 = vmatpush1.msra.mxu0 0.0
  %2655 = vmatprep.subr.mxu0 0.0
  %2656 = vmatpush1.msra.mxu0 0.0
  %2657 = vmatprep.subr.mxu0 0.0
  %2658 = vmatpush1.msra.mxu0 0.0
  %2659 = vmatprep.subr.mxu0 0.0
  %2660 = vmatpush1.msra.mxu0 0.0
  %2661 = vmatprep.subr.mxu0 0.0
  %2662 = vmatpush1.msra.mxu0 0.0
  %2663 = vmatprep.subr.mxu0 0.0
  %2664 = vmatpush1.msra.mxu0 0.0
  %2665 = vmatprep.subr.mxu0 0.0
  %2666 = vmatpush1.msra.mxu0 0.0
  %2667 = vmatprep.subr.mxu0 0.0
  %2668 = vmatpush1.msra.mxu0 0.0
  %2669 = vmatprep.subr.mxu0 0.0
  %2670 = vmatpush1.msra.mxu0 0.0
  %2671 = vmatprep.subr.mxu0 0.0
  %2672 = vmatpush1.msra.mxu0 0.0
  %2673 = vmatprep.subr.mxu0 0.0
  %2674 = vmatpush1.msra.mxu0 0.0
  %2675 = vmatprep.subr.mxu0 0.0
  %2676 = vmatpush1.msra.mxu0 0.0
  %2677 = vmatprep.subr.mxu0 0.0
  %2678 = vmatpush1.msra.mxu0 0.0
  %2679 = vmatprep.subr.mxu0 0.0
  %2680 = vmatpush1.msra.mxu0 0.0
  %2681 = vmatprep.subr.mxu0 0.0
  %2682 = vmatpush1.msra.mxu0 0.0
  %2683 = vmatprep.subr.mxu0 0.0
  %2684 = vmatpush1.msra.mxu0 0.0
  %2685 = vmatprep.subr.mxu0 0.0
  %2686 = vmatpush1.msra.mxu0 0.0
  %2687 = vmatprep.subr.mxu0 0.0
  %2688 = vmatpush1.msra.mxu0 0.0
  %2689 = vmatprep.subr.mxu0 0.0
  %2690 = vmatpush1.msra.mxu0 0.0
  %2691 = vmatprep.subr.mxu0 0.0
  %2692 = vmatpush1.msra.mxu0 0.0
  %2693 = vmatprep.subr.mxu0 0.0
  %2694 = vmatpush1.msra.mxu0 0.0
  %2695 = vmatprep.mubr.f32.mxu0 0.0
  %2696 = vmatmul.mubr.f32.gmra.mrb[0].mxu0 %v2629
  %v2697 = vpop.f32.mrb[0].mxu0
  %v2698 = vadd.f32 %v298, %v2697
  %v2699 = vpop.f32.mrb[0].mxu0
  %2700 = vdwg.mxu0
  %v2701 = vmul.f32 %v2698, %v351
  %v2702 = vxor.u32 %v2701, 2147483648
  %v2703 = vmul.f32 %v2702, 1.442695
  %v2704 = vpow.pop %v2703
  %v2705 = vadd.f32 %v2704, 1.0
  %v2706 = vrcp.pop %v2705
  %v2707 = vmul.f32 1.0, %v2706
  %v2709 = vsel %vm777, %v2707, 0
  %2711 = vmatprep.subr.mxu0 %v546
  %2712 = vmatpush1.msra.mxu0 %v545
  %2713 = vmatprep.subr.mxu0 %v549
  %2714 = vmatpush1.msra.mxu0 %v548
  %2715 = vmatprep.subr.mxu0 %v552
  %2716 = vmatpush1.msra.mxu0 %v551
  %2717 = vmatprep.subr.mxu0 %v555
  %2718 = vmatpush1.msra.mxu0 %v554
  %2719 = vmatprep.subr.mxu0 %v558
  %2720 = vmatpush1.msra.mxu0 %v557
  %2721 = vmatprep.subr.mxu0 %v561
  %2722 = vmatpush1.msra.mxu0 %v560
  %2723 = vmatprep.subr.mxu0 %v564
  %2724 = vmatpush1.msra.mxu0 %v563
  %2725 = vmatprep.subr.mxu0 %v567
  %2726 = vmatpush1.msra.mxu0 %v566
  %2727 = vmatprep.subr.mxu0 %v570
  %2728 = vmatpush1.msra.mxu0 %v569
  %2729 = vmatprep.subr.mxu0 %v573
  %2730 = vmatpush1.msra.mxu0 %v572
  %2731 = vmatprep.subr.mxu0 %v576
  %2732 = vmatpush1.msra.mxu0 %v575
  %2733 = vmatprep.subr.mxu0 %v579
  %2734 = vmatpush1.msra.mxu0 %v578
  %2735 = vmatprep.subr.mxu0 0.0
  %2736 = vmatpush1.msra.mxu0 0.0
  %2737 = vmatprep.subr.mxu0 0.0
  %2738 = vmatpush1.msra.mxu0 0.0
  %2739 = vmatprep.subr.mxu0 0.0
  %2740 = vmatpush1.msra.mxu0 0.0
  %2741 = vmatprep.subr.mxu0 0.0
  %2742 = vmatpush1.msra.mxu0 0.0
  %2743 = vmatprep.subr.mxu0 0.0
  %2744 = vmatpush1.msra.mxu0 0.0
  %2745 = vmatprep.subr.mxu0 0.0
  %2746 = vmatpush1.msra.mxu0 0.0
  %2747 = vmatprep.subr.mxu0 0.0
  %2748 = vmatpush1.msra.mxu0 0.0
  %2749 = vmatprep.subr.mxu0 0.0
  %2750 = vmatpush1.msra.mxu0 0.0
  %2751 = vmatprep.subr.mxu0 0.0
  %2752 = vmatpush1.msra.mxu0 0.0
  %2753 = vmatprep.subr.mxu0 0.0
  %2754 = vmatpush1.msra.mxu0 0.0
  %2755 = vmatprep.subr.mxu0 0.0
  %2756 = vmatpush1.msra.mxu0 0.0
  %2757 = vmatprep.subr.mxu0 0.0
  %2758 = vmatpush1.msra.mxu0 0.0
  %2759 = vmatprep.subr.mxu0 0.0
  %2760 = vmatpush1.msra.mxu0 0.0
  %2761 = vmatprep.subr.mxu0 0.0
  %2762 = vmatpush1.msra.mxu0 0.0
  %2763 = vmatprep.subr.mxu0 0.0
  %2764 = vmatpush1.msra.mxu0 0.0
  %2765 = vmatprep.subr.mxu0 0.0
  %2766 = vmatpush1.msra.mxu0 0.0
  %2767 = vmatprep.subr.mxu0 0.0
  %2768 = vmatpush1.msra.mxu0 0.0
  %2769 = vmatprep.subr.mxu0 0.0
  %2770 = vmatpush1.msra.mxu0 0.0
  %2771 = vmatprep.subr.mxu0 0.0
  %2772 = vmatpush1.msra.mxu0 0.0
  %2773 = vmatprep.subr.mxu0 0.0
  %2774 = vmatpush1.msra.mxu0 0.0
  %2775 = vmatprep.mubr.f32.mxu0 0.0
  %2776 = vmatmul.mubr.f32.gmra.mrb[0].mxu0 %v2709
  %v2777 = vpop.f32.mrb[0].mxu0
  %v2778 = vadd.f32 %v765, %v2777
  %v2779 = vpop.f32.mrb[0].mxu0
  %v2780 = vadd.f32 %v769, %v2779
  %2781 = vdwg.mxu0
  %2782 = vmatprep.subr.mxu0 0.0
  %2783 = vmatpush1.msra.mxu0 %v547
  %2784 = vmatprep.subr.mxu0 0.0
  %2785 = vmatpush1.msra.mxu0 %v550
  %2786 = vmatprep.subr.mxu0 0.0
  %2787 = vmatpush1.msra.mxu0 %v553
  %2788 = vmatprep.subr.mxu0 0.0
  %2789 = vmatpush1.msra.mxu0 %v556
  %2790 = vmatprep.subr.mxu0 0.0
  %2791 = vmatpush1.msra.mxu0 %v559
  %2792 = vmatprep.subr.mxu0 0.0
  %2793 = vmatpush1.msra.mxu0 %v562
  %2794 = vmatprep.subr.mxu0 0.0
  %2795 = vmatpush1.msra.mxu0 %v565
  %2796 = vmatprep.subr.mxu0 0.0
  %2797 = vmatpush1.msra.mxu0 %v568
  %2798 = vmatprep.subr.mxu0 0.0
  %2799 = vmatpush1.msra.mxu0 %v571
  %2800 = vmatprep.subr.mxu0 0.0
  %2801 = vmatpush1.msra.mxu0 %v574
  %2802 = vmatprep.subr.mxu0 0.0
  %2803 = vmatpush1.msra.mxu0 %v577
  %2804 = vmatprep.subr.mxu0 0.0
  %2805 = vmatpush1.msra.mxu0 %v580
  %2806 = vmatprep.subr.mxu0 0.0
  %2807 = vmatpush1.msra.mxu0 0.0
  %2808 = vmatprep.subr.mxu0 0.0
  %2809 = vmatpush1.msra.mxu0 0.0
  %2810 = vmatprep.subr.mxu0 0.0
  %2811 = vmatpush1.msra.mxu0 0.0
  %2812 = vmatprep.subr.mxu0 0.0
  %2813 = vmatpush1.msra.mxu0 0.0
  %2814 = vmatprep.subr.mxu0 0.0
  %2815 = vmatpush1.msra.mxu0 0.0
  %2816 = vmatprep.subr.mxu0 0.0
  %2817 = vmatpush1.msra.mxu0 0.0
  %2818 = vmatprep.subr.mxu0 0.0
  %2819 = vmatpush1.msra.mxu0 0.0
  %2820 = vmatprep.subr.mxu0 0.0
  %2821 = vmatpush1.msra.mxu0 0.0
  %2822 = vmatprep.subr.mxu0 0.0
  %2823 = vmatpush1.msra.mxu0 0.0
  %2824 = vmatprep.subr.mxu0 0.0
  %2825 = vmatpush1.msra.mxu0 0.0
  %2826 = vmatprep.subr.mxu0 0.0
  %2827 = vmatpush1.msra.mxu0 0.0
  %2828 = vmatprep.subr.mxu0 0.0
  %2829 = vmatpush1.msra.mxu0 0.0
  %2830 = vmatprep.subr.mxu0 0.0
  %2831 = vmatpush1.msra.mxu0 0.0
  %2832 = vmatprep.subr.mxu0 0.0
  %2833 = vmatpush1.msra.mxu0 0.0
  %2834 = vmatprep.subr.mxu0 0.0
  %2835 = vmatpush1.msra.mxu0 0.0
  %2836 = vmatprep.subr.mxu0 0.0
  %2837 = vmatpush1.msra.mxu0 0.0
  %2838 = vmatprep.subr.mxu0 0.0
  %2839 = vmatpush1.msra.mxu0 0.0
  %2840 = vmatprep.subr.mxu0 0.0
  %2841 = vmatpush1.msra.mxu0 0.0
  %2842 = vmatprep.subr.mxu0 0.0
  %2843 = vmatpush1.msra.mxu0 0.0
  %2844 = vmatprep.subr.mxu0 0.0
  %2845 = vmatpush1.msra.mxu0 0.0
  %2846 = vmatprep.mubr.f32.mxu0 0.0
  %2847 = vmatmul.mubr.f32.gmra.mrb[0].mxu0 %v2709
  %v2848 = vpop.f32.mrb[0].mxu0
  %v2849 = vadd.f32 %v773, %v2848
  %v2850 = vpop.f32.mrb[0].mxu0
  %2851 = vdwg.mxu0
  %v2852 = vmul.f32 %v2778, %v2780
  %v2853 = vmul.f32 %v2852, %v2849
  %2854 = vmatprep.subr.mxu0 0.0
  %2855 = vmatpush1.msra.mxu0 %v583
  %2856 = vmatprep.subr.mxu0 0.0
  %2857 = vmatpush1.msra.mxu0 %v584
  %2858 = vmatprep.subr.mxu0 0.0
  %2859 = vmatpush1.msra.mxu0 %v585
  %2860 = vmatprep.subr.mxu0 0.0
  %2861 = vmatpush1.msra.mxu0 %v586
  %2862 = vmatprep.subr.mxu0 0.0
  %2863 = vmatpush1.msra.mxu0 %v587
  %2864 = vmatprep.subr.mxu0 0.0
  %2865 = vmatpush1.msra.mxu0 %v588
  %2866 = vmatprep.subr.mxu0 0.0
  %2867 = vmatpush1.msra.mxu0 %v589
  %2868 = vmatprep.subr.mxu0 0.0
  %2869 = vmatpush1.msra.mxu0 %v590
  %2870 = vmatprep.subr.mxu0 0.0
  %2871 = vmatpush1.msra.mxu0 %v591
  %2872 = vmatprep.subr.mxu0 0.0
  %2873 = vmatpush1.msra.mxu0 %v592
  %2874 = vmatprep.subr.mxu0 0.0
  %2875 = vmatpush1.msra.mxu0 %v593
  %2876 = vmatprep.subr.mxu0 0.0
  %2877 = vmatpush1.msra.mxu0 %v594
  %2878 = vmatprep.subr.mxu0 0.0
  %2879 = vmatpush1.msra.mxu0 %v595
  %2880 = vmatprep.subr.mxu0 0.0
  %2881 = vmatpush1.msra.mxu0 %v596
  %2882 = vmatprep.subr.mxu0 0.0
  %2883 = vmatpush1.msra.mxu0 %v597
  %2884 = vmatprep.subr.mxu0 0.0
  %2885 = vmatpush1.msra.mxu0 %v598
  %2886 = vmatprep.subr.mxu0 0.0
  %2887 = vmatpush1.msra.mxu0 0.0
  %2888 = vmatprep.subr.mxu0 0.0
  %2889 = vmatpush1.msra.mxu0 0.0
  %2890 = vmatprep.subr.mxu0 0.0
  %2891 = vmatpush1.msra.mxu0 0.0
  %2892 = vmatprep.subr.mxu0 0.0
  %2893 = vmatpush1.msra.mxu0 0.0
  %2894 = vmatprep.subr.mxu0 0.0
  %2895 = vmatpush1.msra.mxu0 0.0
  %2896 = vmatprep.subr.mxu0 0.0
  %2897 = vmatpush1.msra.mxu0 0.0
  %2898 = vmatprep.subr.mxu0 0.0
  %2899 = vmatpush1.msra.mxu0 0.0
  %2900 = vmatprep.subr.mxu0 0.0
  %2901 = vmatpush1.msra.mxu0 0.0
  %2902 = vmatprep.subr.mxu0 0.0
  %2903 = vmatpush1.msra.mxu0 0.0
  %2904 = vmatprep.subr.mxu0 0.0
  %2905 = vmatpush1.msra.mxu0 0.0
  %2906 = vmatprep.subr.mxu0 0.0
  %2907 = vmatpush1.msra.mxu0 0.0
  %2908 = vmatprep.subr.mxu0 0.0
  %2909 = vmatpush1.msra.mxu0 0.0
  %2910 = vmatprep.subr.mxu0 0.0
  %2911 = vmatpush1.msra.mxu0 0.0
  %2912 = vmatprep.subr.mxu0 0.0
  %2913 = vmatpush1.msra.mxu0 0.0
  %2914 = vmatprep.subr.mxu0 0.0
  %2915 = vmatpush1.msra.mxu0 0.0
  %2916 = vmatprep.subr.mxu0 0.0
  %2917 = vmatpush1.msra.mxu0 0.0
  %2918 = vmatprep.mubr.f32.mxu0 0.0
  %2919 = vmatmul.mubr.f32.gmra.mrb[0].mxu0 %v2853
  %v2920 = vpop.f32.mrb[0].mxu0
  %v2921 = vadd.f32 %v927, %v2920
  %v2922 = vpop.f32.mrb[0].mxu0
  %2923 = vdwg.mxu0
  %v2924 = vmax.f32 %v2921, 0.0
  %v2926 = vsel %vm44, %v2552, 0
  %v2929 = vsel %vm44, %v2553, 0
  %2931 = vmatprep.subr.mxu0 0.0
  %2932 = vmatpush1.msra.mxu0 %v600
  %2933 = vmatprep.subr.mxu0 0.0
  %2934 = vmatpush1.msra.mxu0 %v601
  %2935 = vmatprep.subr.mxu0 0.0
  %2936 = vmatpush1.msra.mxu0 %v602
  %2937 = vmatprep.subr.mxu0 0.0
  %2938 = vmatpush1.msra.mxu0 %v603
  %2939 = vmatprep.subr.mxu0 0.0
  %2940 = vmatpush1.msra.mxu0 0.0
  %2941 = vmatprep.subr.mxu0 0.0
  %2942 = vmatpush1.msra.mxu0 0.0
  %2943 = vmatprep.subr.mxu0 0.0
  %2944 = vmatpush1.msra.mxu0 0.0
  %2945 = vmatprep.subr.mxu0 0.0
  %2946 = vmatpush1.msra.mxu0 0.0
  %2947 = vmatprep.subr.mxu0 0.0
  %2948 = vmatpush1.msra.mxu0 0.0
  %2949 = vmatprep.subr.mxu0 0.0
  %2950 = vmatpush1.msra.mxu0 0.0
  %2951 = vmatprep.subr.mxu0 0.0
  %2952 = vmatpush1.msra.mxu0 0.0
  %2953 = vmatprep.subr.mxu0 0.0
  %2954 = vmatpush1.msra.mxu0 0.0
  %2955 = vmatprep.subr.mxu0 0.0
  %2956 = vmatpush1.msra.mxu0 0.0
  %2957 = vmatprep.subr.mxu0 0.0
  %2958 = vmatpush1.msra.mxu0 0.0
  %2959 = vmatprep.subr.mxu0 0.0
  %2960 = vmatpush1.msra.mxu0 0.0
  %2961 = vmatprep.subr.mxu0 0.0
  %2962 = vmatpush1.msra.mxu0 0.0
  %2963 = vmatprep.subr.mxu0 0.0
  %2964 = vmatpush1.msra.mxu0 0.0
  %2965 = vmatprep.subr.mxu0 0.0
  %2966 = vmatpush1.msra.mxu0 0.0
  %2967 = vmatprep.subr.mxu0 0.0
  %2968 = vmatpush1.msra.mxu0 0.0
  %2969 = vmatprep.subr.mxu0 0.0
  %2970 = vmatpush1.msra.mxu0 0.0
  %2971 = vmatprep.subr.mxu0 0.0
  %2972 = vmatpush1.msra.mxu0 0.0
  %2973 = vmatprep.subr.mxu0 0.0
  %2974 = vmatpush1.msra.mxu0 0.0
  %2975 = vmatprep.subr.mxu0 0.0
  %2976 = vmatpush1.msra.mxu0 0.0
  %2977 = vmatprep.subr.mxu0 0.0
  %2978 = vmatpush1.msra.mxu0 0.0
  %2979 = vmatprep.subr.mxu0 0.0
  %2980 = vmatpush1.msra.mxu0 0.0
  %2981 = vmatprep.subr.mxu0 0.0
  %2982 = vmatpush1.msra.mxu0 0.0
  %2983 = vmatprep.subr.mxu0 0.0
  %2984 = vmatpush1.msra.mxu0 0.0
  %2985 = vmatprep.subr.mxu0 0.0
  %2986 = vmatpush1.msra.mxu0 0.0
  %2987 = vmatprep.subr.mxu0 0.0
  %2988 = vmatpush1.msra.mxu0 0.0
  %2989 = vmatprep.subr.mxu0 0.0
  %2990 = vmatpush1.msra.mxu0 0.0
  %2991 = vmatprep.subr.mxu0 0.0
  %2992 = vmatpush1.msra.mxu0 0.0
  %2993 = vmatprep.subr.mxu0 0.0
  %2994 = vmatpush1.msra.mxu0 0.0
  %2995 = vmatprep.mubr.f32.mxu0 0.0
  %2996 = vmatmul.mubr.f32.gmra.mrb[0].mxu0 %v2926
  %v2997 = vpop.f32.mrb[0].mxu0
  %v2998 = vadd.f32 %v520, %v2997
  %v2999 = vpop.f32.mrb[0].mxu0
  %3000 = vmatprep.mubr.f32.mxu0 0.0
  %3001 = vmatmul.mubr.f32.gmra.mrb[0].mxu0 %v2929
  %v3002 = vpop.f32.mrb[0].mxu0
  %v3003 = vadd.f32 %v524, %v3002
  %v3004 = vpop.f32.mrb[0].mxu0
  %3005 = vdwg.mxu0
  %v3006 = vxor.u32 %v2998, 2147483648
  %v3007 = vxor.u32 %v3003, 2147483648
  %v3008 = vmul.f32 %v3006, 1.442695
  %v3009 = vpow.pop %v3008
  %v3010 = vmul.f32 %v3007, 1.442695
  %v3011 = vpow.pop %v3010
  %v3012 = vadd.f32 %v3009, 1.0
  %v3013 = vadd.f32 %v3011, 1.0
  %v3014 = vrcp.pop %v3012
  %v3015 = vmul.f32 1.0, %v3014
  %v3016 = vrcp.pop %v3013
  %v3017 = vmul.f32 1.0, %v3016
  %v3018 = vmul.f32 %v2552, %v3015
  %v3019 = vmul.f32 %v2553, %v3017
  %v3020 = vlaneseq
  %v3021 = vshrl.u32 %v3020, 7
  %v3022 = vsub.s32 0, %v3021
  %v3023 = vrot.slane %v2924, %v3022
  %v3024 = vlaneseq
  %v3025 = vshrl.u32 %v3024, 7
  %v3026 = vsub.s32 1, %v3025
  %v3027 = vrot.slane %v2924, %v3026
  %v3028 = vmul.f32 %v29, %v3023
  %v3029 = vmul.f32 %v30, %v3027
  %v3030 = vadd.f32 %v3018, %v3028
  %v3031 = vadd.f32 %v3019, %v3029
  %v3032 = vrot.slane %v20, 2
  %v3033 = vsel %vm135, %v3032, 0
  %3035 = vmatprep.subr.mxu0 0.0
  %3036 = vmatpush1.msra.mxu0 %v3030
  %3037 = vmatprep.subr.mxu0 0.0
  %3038 = vmatpush1.msra.mxu0 %v3031
  %3039 = vmatprep.subr.mxu0 0.0
  %3040 = vmatpush1.msra.mxu0 0.0
  %3041 = vmatprep.subr.mxu0 0.0
  %3042 = vmatpush1.msra.mxu0 0.0
  %3043 = vmatprep.subr.mxu0 0.0
  %3044 = vmatpush1.msra.mxu0 0.0
  %3045 = vmatprep.subr.mxu0 0.0
  %3046 = vmatpush1.msra.mxu0 0.0
  %3047 = vmatprep.subr.mxu0 0.0
  %3048 = vmatpush1.msra.mxu0 0.0
  %3049 = vmatprep.subr.mxu0 0.0
  %3050 = vmatpush1.msra.mxu0 0.0
  %3051 = vmatprep.subr.mxu0 0.0
  %3052 = vmatpush1.msra.mxu0 0.0
  %3053 = vmatprep.subr.mxu0 0.0
  %3054 = vmatpush1.msra.mxu0 0.0
  %3055 = vmatprep.subr.mxu0 0.0
  %3056 = vmatpush1.msra.mxu0 0.0
  %3057 = vmatprep.subr.mxu0 0.0
  %3058 = vmatpush1.msra.mxu0 0.0
  %3059 = vmatprep.subr.mxu0 0.0
  %3060 = vmatpush1.msra.mxu0 0.0
  %3061 = vmatprep.subr.mxu0 0.0
  %3062 = vmatpush1.msra.mxu0 0.0
  %3063 = vmatprep.subr.mxu0 0.0
  %3064 = vmatpush1.msra.mxu0 0.0
  %3065 = vmatprep.subr.mxu0 0.0
  %3066 = vmatpush1.msra.mxu0 0.0
  %3067 = vmatprep.subr.mxu0 0.0
  %3068 = vmatpush1.msra.mxu0 0.0
  %3069 = vmatprep.subr.mxu0 0.0
  %3070 = vmatpush1.msra.mxu0 0.0
  %3071 = vmatprep.subr.mxu0 0.0
  %3072 = vmatpush1.msra.mxu0 0.0
  %3073 = vmatprep.subr.mxu0 0.0
  %3074 = vmatpush1.msra.mxu0 0.0
  %3075 = vmatprep.subr.mxu0 0.0
  %3076 = vmatpush1.msra.mxu0 0.0
  %3077 = vmatprep.subr.mxu0 0.0
  %3078 = vmatpush1.msra.mxu0 0.0
  %3079 = vmatprep.subr.mxu0 0.0
  %3080 = vmatpush1.msra.mxu0 0.0
  %3081 = vmatprep.subr.mxu0 0.0
  %3082 = vmatpush1.msra.mxu0 0.0
  %3083 = vmatprep.subr.mxu0 0.0
  %3084 = vmatpush1.msra.mxu0 0.0
  %3085 = vmatprep.subr.mxu0 0.0
  %3086 = vmatpush1.msra.mxu0 0.0
  %3087 = vmatprep.subr.mxu0 0.0
  %3088 = vmatpush1.msra.mxu0 0.0
  %3089 = vmatprep.subr.mxu0 0.0
  %3090 = vmatpush1.msra.mxu0 0.0
  %3091 = vmatprep.subr.mxu0 0.0
  %3092 = vmatpush1.msra.mxu0 0.0
  %3093 = vmatprep.subr.mxu0 0.0
  %3094 = vmatpush1.msra.mxu0 0.0
  %3095 = vmatprep.subr.mxu0 0.0
  %3096 = vmatpush1.msra.mxu0 0.0
  %3097 = vmatprep.subr.mxu0 0.0
  %3098 = vmatpush1.msra.mxu0 0.0
  %3099 = vmatprep.mubr.f32.mxu0 0.0
  %3100 = vmatmul.mubr.f32.gmra.mrb[0].mxu0 %v3033
  %v3101 = vpop.f32.mrb[0].mxu0
  %v3102 = vadd.f32 0.0, %v3101
  %v3103 = vpop.f32.mrb[0].mxu0
  %3104 = vdwg.mxu0
  %3105 = vst.msk [vmem:[#allocation2 + $0xa] sm:$0x3] %vm679, %v3102
  %v3107 = vrot.slane %v298, 2
  %v3110 = vsel %vm44, %v3102, 0
  %3112 = vmatprep.subr.mxu0 0.0
  %3113 = vmatpush1.msra.mxu0 %v541
  %3114 = vmatprep.subr.mxu0 0.0
  %3115 = vmatpush1.msra.mxu0 %v542
  %3116 = vmatprep.subr.mxu0 0.0
  %3117 = vmatpush1.msra.mxu0 %v543
  %3118 = vmatprep.subr.mxu0 0.0
  %3119 = vmatpush1.msra.mxu0 %v544
  %3120 = vmatprep.subr.mxu0 0.0
  %3121 = vmatpush1.msra.mxu0 0.0
  %3122 = vmatprep.subr.mxu0 0.0
  %3123 = vmatpush1.msra.mxu0 0.0
  %3124 = vmatprep.subr.mxu0 0.0
  %3125 = vmatpush1.msra.mxu0 0.0
  %3126 = vmatprep.subr.mxu0 0.0
  %3127 = vmatpush1.msra.mxu0 0.0
  %3128 = vmatprep.subr.mxu0 0.0
  %3129 = vmatpush1.msra.mxu0 0.0
  %3130 = vmatprep.subr.mxu0 0.0
  %3131 = vmatpush1.msra.mxu0 0.0
  %3132 = vmatprep.subr.mxu0 0.0
  %3133 = vmatpush1.msra.mxu0 0.0
  %3134 = vmatprep.subr.mxu0 0.0
  %3135 = vmatpush1.msra.mxu0 0.0
  %3136 = vmatprep.subr.mxu0 0.0
  %3137 = vmatpush1.msra.mxu0 0.0
  %3138 = vmatprep.subr.mxu0 0.0
  %3139 = vmatpush1.msra.mxu0 0.0
  %3140 = vmatprep.subr.mxu0 0.0
  %3141 = vmatpush1.msra.mxu0 0.0
  %3142 = vmatprep.subr.mxu0 0.0
  %3143 = vmatpush1.msra.mxu0 0.0
  %3144 = vmatprep.subr.mxu0 0.0
  %3145 = vmatpush1.msra.mxu0 0.0
  %3146 = vmatprep.subr.mxu0 0.0
  %3147 = vmatpush1.msra.mxu0 0.0
  %3148 = vmatprep.subr.mxu0 0.0
  %3149 = vmatpush1.msra.mxu0 0.0
  %3150 = vmatprep.subr.mxu0 0.0
  %3151 = vmatpush1.msra.mxu0 0.0
  %3152 = vmatprep.subr.mxu0 0.0
  %3153 = vmatpush1.msra.mxu0 0.0
  %3154 = vmatprep.subr.mxu0 0.0
  %3155 = vmatpush1.msra.mxu0 0.0
  %3156 = vmatprep.subr.mxu0 0.0
  %3157 = vmatpush1.msra.mxu0 0.0
  %3158 = vmatprep.subr.mxu0 0.0
  %3159 = vmatpush1.msra.mxu0 0.0
  %3160 = vmatprep.subr.mxu0 0.0
  %3161 = vmatpush1.msra.mxu0 0.0
  %3162 = vmatprep.subr.mxu0 0.0
  %3163 = vmatpush1.msra.mxu0 0.0
  %3164 = vmatprep.subr.mxu0 0.0
  %3165 = vmatpush1.msra.mxu0 0.0
  %3166 = vmatprep.subr.mxu0 0.0
  %3167 = vmatpush1.msra.mxu0 0.0
  %3168 = vmatprep.subr.mxu0 0.0
  %3169 = vmatpush1.msra.mxu0 0.0
  %3170 = vmatprep.subr.mxu0 0.0
  %3171 = vmatpush1.msra.mxu0 0.0
  %3172 = vmatprep.subr.mxu0 0.0
  %3173 = vmatpush1.msra.mxu0 0.0
  %3174 = vmatprep.subr.mxu0 0.0
  %3175 = vmatpush1.msra.mxu0 0.0
  %3176 = vmatprep.mubr.f32.mxu0 0.0
  %3177 = vmatmul.mubr.f32.gmra.mrb[0].mxu0 %v3110
  %v3178 = vpop.f32.mrb[0].mxu0
  %v3179 = vadd.f32 %v3107, %v3178
  %v3180 = vpop.f32.mrb[0].mxu0
  %3181 = vdwg.mxu0
  %v3183 = vrot.slane %v351, 2
  %v3185 = vmul.f32 %v3179, %v3183
  %v3186 = vxor.u32 %v3185, 2147483648
  %v3187 = vmul.f32 %v3186, 1.442695
  %v3188 = vpow.pop %v3187
  %v3189 = vadd.f32 %v3188, 1.0
  %v3190 = vrcp.pop %v3189
  %v3191 = vmul.f32 1.0, %v3190
  %v3193 = vsel %vm777, %v3191, 0
  %3195 = vmatprep.subr.mxu0 %v546
  %3196 = vmatpush1.msra.mxu0 %v545
  %3197 = vmatprep.subr.mxu0 %v549
  %3198 = vmatpush1.msra.mxu0 %v548
  %3199 = vmatprep.subr.mxu0 %v552
  %3200 = vmatpush1.msra.mxu0 %v551
  %3201 = vmatprep.subr.mxu0 %v555
  %3202 = vmatpush1.msra.mxu0 %v554
  %3203 = vmatprep.subr.mxu0 %v558
  %3204 = vmatpush1.msra.mxu0 %v557
  %3205 = vmatprep.subr.mxu0 %v561
  %3206 = vmatpush1.msra.mxu0 %v560
  %3207 = vmatprep.subr.mxu0 %v564
  %3208 = vmatpush1.msra.mxu0 %v563
  %3209 = vmatprep.subr.mxu0 %v567
  %3210 = vmatpush1.msra.mxu0 %v566
  %3211 = vmatprep.subr.mxu0 %v570
  %3212 = vmatpush1.msra.mxu0 %v569
  %3213 = vmatprep.subr.mxu0 %v573
  %3214 = vmatpush1.msra.mxu0 %v572
  %3215 = vmatprep.subr.mxu0 %v576
  %3216 = vmatpush1.msra.mxu0 %v575
  %3217 = vmatprep.subr.mxu0 %v579
  %3218 = vmatpush1.msra.mxu0 %v578
  %3219 = vmatprep.subr.mxu0 0.0
  %3220 = vmatpush1.msra.mxu0 0.0
  %3221 = vmatprep.subr.mxu0 0.0
  %3222 = vmatpush1.msra.mxu0 0.0
  %3223 = vmatprep.subr.mxu0 0.0
  %3224 = vmatpush1.msra.mxu0 0.0
  %3225 = vmatprep.subr.mxu0 0.0
  %3226 = vmatpush1.msra.mxu0 0.0
  %3227 = vmatprep.subr.mxu0 0.0
  %3228 = vmatpush1.msra.mxu0 0.0
  %3229 = vmatprep.subr.mxu0 0.0
  %3230 = vmatpush1.msra.mxu0 0.0
  %3231 = vmatprep.subr.mxu0 0.0
  %3232 = vmatpush1.msra.mxu0 0.0
  %3233 = vmatprep.subr.mxu0 0.0
  %3234 = vmatpush1.msra.mxu0 0.0
  %3235 = vmatprep.subr.mxu0 0.0
  %3236 = vmatpush1.msra.mxu0 0.0
  %3237 = vmatprep.subr.mxu0 0.0
  %3238 = vmatpush1.msra.mxu0 0.0
  %3239 = vmatprep.subr.mxu0 0.0
  %3240 = vmatpush1.msra.mxu0 0.0
  %3241 = vmatprep.subr.mxu0 0.0
  %3242 = vmatpush1.msra.mxu0 0.0
  %3243 = vmatprep.subr.mxu0 0.0
  %3244 = vmatpush1.msra.mxu0 0.0
  %3245 = vmatprep.subr.mxu0 0.0
  %3246 = vmatpush1.msra.mxu0 0.0
  %3247 = vmatprep.subr.mxu0 0.0
  %3248 = vmatpush1.msra.mxu0 0.0
  %3249 = vmatprep.subr.mxu0 0.0
  %3250 = vmatpush1.msra.mxu0 0.0
  %3251 = vmatprep.subr.mxu0 0.0
  %3252 = vmatpush1.msra.mxu0 0.0
  %3253 = vmatprep.subr.mxu0 0.0
  %3254 = vmatpush1.msra.mxu0 0.0
  %3255 = vmatprep.subr.mxu0 0.0
  %3256 = vmatpush1.msra.mxu0 0.0
  %3257 = vmatprep.subr.mxu0 0.0
  %3258 = vmatpush1.msra.mxu0 0.0
  %3259 = vmatprep.mubr.f32.mxu0 0.0
  %3260 = vmatmul.mubr.f32.gmra.mrb[0].mxu0 %v3193
  %v3261 = vpop.f32.mrb[0].mxu0
  %v3262 = vadd.f32 %v765, %v3261
  %v3263 = vpop.f32.mrb[0].mxu0
  %v3264 = vadd.f32 %v769, %v3263
  %3265 = vdwg.mxu0
  %3266 = vmatprep.subr.mxu0 0.0
  %3267 = vmatpush1.msra.mxu0 %v547
  %3268 = vmatprep.subr.mxu0 0.0
  %3269 = vmatpush1.msra.mxu0 %v550
  %3270 = vmatprep.subr.mxu0 0.0
  %3271 = vmatpush1.msra.mxu0 %v553
  %3272 = vmatprep.subr.mxu0 0.0
  %3273 = vmatpush1.msra.mxu0 %v556
  %3274 = vmatprep.subr.mxu0 0.0
  %3275 = vmatpush1.msra.mxu0 %v559
  %3276 = vmatprep.subr.mxu0 0.0
  %3277 = vmatpush1.msra.mxu0 %v562
  %3278 = vmatprep.subr.mxu0 0.0
  %3279 = vmatpush1.msra.mxu0 %v565
  %3280 = vmatprep.subr.mxu0 0.0
  %3281 = vmatpush1.msra.mxu0 %v568
  %3282 = vmatprep.subr.mxu0 0.0
  %3283 = vmatpush1.msra.mxu0 %v571
  %3284 = vmatprep.subr.mxu0 0.0
  %3285 = vmatpush1.msra.mxu0 %v574
  %3286 = vmatprep.subr.mxu0 0.0
  %3287 = vmatpush1.msra.mxu0 %v577
  %3288 = vmatprep.subr.mxu0 0.0
  %3289 = vmatpush1.msra.mxu0 %v580
  %3290 = vmatprep.subr.mxu0 0.0
  %3291 = vmatpush1.msra.mxu0 0.0
  %3292 = vmatprep.subr.mxu0 0.0
  %3293 = vmatpush1.msra.mxu0 0.0
  %3294 = vmatprep.subr.mxu0 0.0
  %3295 = vmatpush1.msra.mxu0 0.0
  %3296 = vmatprep.subr.mxu0 0.0
  %3297 = vmatpush1.msra.mxu0 0.0
  %3298 = vmatprep.subr.mxu0 0.0
  %3299 = vmatpush1.msra.mxu0 0.0
  %3300 = vmatprep.subr.mxu0 0.0
  %3301 = vmatpush1.msra.mxu0 0.0
  %3302 = vmatprep.subr.mxu0 0.0
  %3303 = vmatpush1.msra.mxu0 0.0
  %3304 = vmatprep.subr.mxu0 0.0
  %3305 = vmatpush1.msra.mxu0 0.0
  %3306 = vmatprep.subr.mxu0 0.0
  %3307 = vmatpush1.msra.mxu0 0.0
  %3308 = vmatprep.subr.mxu0 0.0
  %3309 = vmatpush1.msra.mxu0 0.0
  %3310 = vmatprep.subr.mxu0 0.0
  %3311 = vmatpush1.msra.mxu0 0.0
  %3312 = vmatprep.subr.mxu0 0.0
  %3313 = vmatpush1.msra.mxu0 0.0
  %3314 = vmatprep.subr.mxu0 0.0
  %3315 = vmatpush1.msra.mxu0 0.0
  %3316 = vmatprep.subr.mxu0 0.0
  %3317 = vmatpush1.msra.mxu0 0.0
  %3318 = vmatprep.subr.mxu0 0.0
  %3319 = vmatpush1.msra.mxu0 0.0
  %3320 = vmatprep.subr.mxu0 0.0
  %3321 = vmatpush1.msra.mxu0 0.0
  %3322 = vmatprep.subr.mxu0 0.0
  %3323 = vmatpush1.msra.mxu0 0.0
  %3324 = vmatprep.subr.mxu0 0.0
  %3325 = vmatpush1.msra.mxu0 0.0
  %3326 = vmatprep.subr.mxu0 0.0
  %3327 = vmatpush1.msra.mxu0 0.0
  %3328 = vmatprep.subr.mxu0 0.0
  %3329 = vmatpush1.msra.mxu0 0.0
  %3330 = vmatprep.mubr.f32.mxu0 0.0
  %3331 = vmatmul.mubr.f32.gmra.mrb[0].mxu0 %v3193
  %v3332 = vpop.f32.mrb[0].mxu0
  %v3333 = vadd.f32 %v773, %v3332
  %v3334 = vpop.f32.mrb[0].mxu0
  %3335 = vdwg.mxu0
  %v3336 = vmul.f32 %v3262, %v3264
  %v3337 = vmul.f32 %v3336, %v3333
  %3338 = vmatprep.subr.mxu0 0.0
  %3339 = vmatpush1.msra.mxu0 %v583
  %3340 = vmatprep.subr.mxu0 0.0
  %3341 = vmatpush1.msra.mxu0 %v584
  %3342 = vmatprep.subr.mxu0 0.0
  %3343 = vmatpush1.msra.mxu0 %v585
  %3344 = vmatprep.subr.mxu0 0.0
  %3345 = vmatpush1.msra.mxu0 %v586
  %3346 = vmatprep.subr.mxu0 0.0
  %3347 = vmatpush1.msra.mxu0 %v587
  %3348 = vmatprep.subr.mxu0 0.0
  %3349 = vmatpush1.msra.mxu0 %v588
  %3350 = vmatprep.subr.mxu0 0.0
  %3351 = vmatpush1.msra.mxu0 %v589
  %3352 = vmatprep.subr.mxu0 0.0
  %3353 = vmatpush1.msra.mxu0 %v590
  %3354 = vmatprep.subr.mxu0 0.0
  %3355 = vmatpush1.msra.mxu0 %v591
  %3356 = vmatprep.subr.mxu0 0.0
  %3357 = vmatpush1.msra.mxu0 %v592
  %3358 = vmatprep.subr.mxu0 0.0
  %3359 = vmatpush1.msra.mxu0 %v593
  %3360 = vmatprep.subr.mxu0 0.0
  %3361 = vmatpush1.msra.mxu0 %v594
  %3362 = vmatprep.subr.mxu0 0.0
  %3363 = vmatpush1.msra.mxu0 %v595
  %3364 = vmatprep.subr.mxu0 0.0
  %3365 = vmatpush1.msra.mxu0 %v596
  %3366 = vmatprep.subr.mxu0 0.0
  %3367 = vmatpush1.msra.mxu0 %v597
  %3368 = vmatprep.subr.mxu0 0.0
  %3369 = vmatpush1.msra.mxu0 %v598
  %3370 = vmatprep.subr.mxu0 0.0
  %3371 = vmatpush1.msra.mxu0 0.0
  %3372 = vmatprep.subr.mxu0 0.0
  %3373 = vmatpush1.msra.mxu0 0.0
  %3374 = vmatprep.subr.mxu0 0.0
  %3375 = vmatpush1.msra.mxu0 0.0
  %3376 = vmatprep.subr.mxu0 0.0
  %3377 = vmatpush1.msra.mxu0 0.0
  %3378 = vmatprep.subr.mxu0 0.0
  %3379 = vmatpush1.msra.mxu0 0.0
  %3380 = vmatprep.subr.mxu0 0.0
  %3381 = vmatpush1.msra.mxu0 0.0
  %3382 = vmatprep.subr.mxu0 0.0
  %3383 = vmatpush1.msra.mxu0 0.0
  %3384 = vmatprep.subr.mxu0 0.0
  %3385 = vmatpush1.msra.mxu0 0.0
  %3386 = vmatprep.subr.mxu0 0.0
  %3387 = vmatpush1.msra.mxu0 0.0
  %3388 = vmatprep.subr.mxu0 0.0
  %3389 = vmatpush1.msra.mxu0 0.0
  %3390 = vmatprep.subr.mxu0 0.0
  %3391 = vmatpush1.msra.mxu0 0.0
  %3392 = vmatprep.subr.mxu0 0.0
  %3393 = vmatpush1.msra.mxu0 0.0
  %3394 = vmatprep.subr.mxu0 0.0
  %3395 = vmatpush1.msra.mxu0 0.0
  %3396 = vmatprep.subr.mxu0 0.0
  %3397 = vmatpush1.msra.mxu0 0.0
  %3398 = vmatprep.subr.mxu0 0.0
  %3399 = vmatpush1.msra.mxu0 0.0
  %3400 = vmatprep.subr.mxu0 0.0
  %3401 = vmatpush1.msra.mxu0 0.0
  %3402 = vmatprep.mubr.f32.mxu0 0.0
  %3403 = vmatmul.mubr.f32.gmra.mrb[0].mxu0 %v3337
  %v3404 = vpop.f32.mrb[0].mxu0
  %v3405 = vadd.f32 %v927, %v3404
  %v3406 = vpop.f32.mrb[0].mxu0
  %3407 = vdwg.mxu0
  %v3408 = vmax.f32 %v3405, 0.0
  %v3410 = vsel %vm44, %v3030, 0
  %v3413 = vsel %vm44, %v3031, 0
  %3415 = vmatprep.subr.mxu0 0.0
  %3416 = vmatpush1.msra.mxu0 %v600
  %3417 = vmatprep.subr.mxu0 0.0
  %3418 = vmatpush1.msra.mxu0 %v601
  %3419 = vmatprep.subr.mxu0 0.0
  %3420 = vmatpush1.msra.mxu0 %v602
  %3421 = vmatprep.subr.mxu0 0.0
  %3422 = vmatpush1.msra.mxu0 %v603
  %3423 = vmatprep.subr.mxu0 0.0
  %3424 = vmatpush1.msra.mxu0 0.0
  %3425 = vmatprep.subr.mxu0 0.0
  %3426 = vmatpush1.msra.mxu0 0.0
  %3427 = vmatprep.subr.mxu0 0.0
  %3428 = vmatpush1.msra.mxu0 0.0
  %3429 = vmatprep.subr.mxu0 0.0
  %3430 = vmatpush1.msra.mxu0 0.0
  %3431 = vmatprep.subr.mxu0 0.0
  %3432 = vmatpush1.msra.mxu0 0.0
  %3433 = vmatprep.subr.mxu0 0.0
  %3434 = vmatpush1.msra.mxu0 0.0
  %3435 = vmatprep.subr.mxu0 0.0
  %3436 = vmatpush1.msra.mxu0 0.0
  %3437 = vmatprep.subr.mxu0 0.0
  %3438 = vmatpush1.msra.mxu0 0.0
  %3439 = vmatprep.subr.mxu0 0.0
  %3440 = vmatpush1.msra.mxu0 0.0
  %3441 = vmatprep.subr.mxu0 0.0
  %3442 = vmatpush1.msra.mxu0 0.0
  %3443 = vmatprep.subr.mxu0 0.0
  %3444 = vmatpush1.msra.mxu0 0.0
  %3445 = vmatprep.subr.mxu0 0.0
  %3446 = vmatpush1.msra.mxu0 0.0
  %3447 = vmatprep.subr.mxu0 0.0
  %3448 = vmatpush1.msra.mxu0 0.0
  %3449 = vmatprep.subr.mxu0 0.0
  %3450 = vmatpush1.msra.mxu0 0.0
  %3451 = vmatprep.subr.mxu0 0.0
  %3452 = vmatpush1.msra.mxu0 0.0
  %3453 = vmatprep.subr.mxu0 0.0
  %3454 = vmatpush1.msra.mxu0 0.0
  %3455 = vmatprep.subr.mxu0 0.0
  %3456 = vmatpush1.msra.mxu0 0.0
  %3457 = vmatprep.subr.mxu0 0.0
  %3458 = vmatpush1.msra.mxu0 0.0
  %3459 = vmatprep.subr.mxu0 0.0
  %3460 = vmatpush1.msra.mxu0 0.0
  %3461 = vmatprep.subr.mxu0 0.0
  %3462 = vmatpush1.msra.mxu0 0.0
  %3463 = vmatprep.subr.mxu0 0.0
  %3464 = vmatpush1.msra.mxu0 0.0
  %3465 = vmatprep.subr.mxu0 0.0
  %3466 = vmatpush1.msra.mxu0 0.0
  %3467 = vmatprep.subr.mxu0 0.0
  %3468 = vmatpush1.msra.mxu0 0.0
  %3469 = vmatprep.subr.mxu0 0.0
  %3470 = vmatpush1.msra.mxu0 0.0
  %3471 = vmatprep.subr.mxu0 0.0
  %3472 = vmatpush1.msra.mxu0 0.0
  %3473 = vmatprep.subr.mxu0 0.0
  %3474 = vmatpush1.msra.mxu0 0.0
  %3475 = vmatprep.subr.mxu0 0.0
  %3476 = vmatpush1.msra.mxu0 0.0
  %3477 = vmatprep.subr.mxu0 0.0
  %3478 = vmatpush1.msra.mxu0 0.0
  %3479 = vmatprep.mubr.f32.mxu0 0.0
  %3480 = vmatmul.mubr.f32.gmra.mrb[0].mxu0 %v3410
  %v3481 = vpop.f32.mrb[0].mxu0
  %v3482 = vadd.f32 %v528, %v3481
  %v3483 = vpop.f32.mrb[0].mxu0
  %3484 = vmatprep.mubr.f32.mxu0 0.0
  %3485 = vmatmul.mubr.f32.gmra.mrb[0].mxu0 %v3413
  %v3486 = vpop.f32.mrb[0].mxu0
  %v3487 = vadd.f32 %v532, %v3486
  %v3488 = vpop.f32.mrb[0].mxu0
  %3489 = vdwg.mxu0
  %v3490 = vxor.u32 %v3482, 2147483648
  %v3491 = vxor.u32 %v3487, 2147483648
  %v3492 = vmul.f32 %v3490, 1.442695
  %v3493 = vpow.pop %v3492
  %v3494 = vmul.f32 %v3491, 1.442695
  %v3495 = vpow.pop %v3494
  %v3496 = vadd.f32 %v3493, 1.0
  %v3497 = vadd.f32 %v3495, 1.0
  %v3498 = vrcp.pop %v3496
  %v3499 = vmul.f32 1.0, %v3498
  %v3500 = vrcp.pop %v3497
  %v3501 = vmul.f32 1.0, %v3500
  %v3502 = vmul.f32 %v3030, %v3499
  %v3503 = vmul.f32 %v3031, %v3501
  %v3504 = vlaneseq
  %v3505 = vshrl.u32 %v3504, 7
  %v3506 = vsub.s32 0, %v3505
  %v3507 = vrot.slane %v3408, %v3506
  %v3508 = vlaneseq
  %v3509 = vshrl.u32 %v3508, 7
  %v3510 = vsub.s32 1, %v3509
  %v3511 = vrot.slane %v3408, %v3510
  %v3512 = vmul.f32 %v31, %v3507
  %v3513 = vmul.f32 %v32, %v3511
  %v3514 = vadd.f32 %v3502, %v3512
  %v3515 = vadd.f32 %v3503, %v3513
  %v3516 = vrot.slane %v20, 4
  %v3517 = vsel %vm135, %v3516, 0
  %3519 = vmatprep.subr.mxu0 0.0
  %3520 = vmatpush1.msra.mxu0 %v3514
  %3521 = vmatprep.subr.mxu0 0.0
  %3522 = vmatpush1.msra.mxu0 %v3515
  %3523 = vmatprep.subr.mxu0 0.0
  %3524 = vmatpush1.msra.mxu0 0.0
  %3525 = vmatprep.subr.mxu0 0.0
  %3526 = vmatpush1.msra.mxu0 0.0
  %3527 = vmatprep.subr.mxu0 0.0
  %3528 = vmatpush1.msra.mxu0 0.0
  %3529 = vmatprep.subr.mxu0 0.0
  %3530 = vmatpush1.msra.mxu0 0.0
  %3531 = vmatprep.subr.mxu0 0.0
  %3532 = vmatpush1.msra.mxu0 0.0
  %3533 = vmatprep.subr.mxu0 0.0
  %3534 = vmatpush1.msra.mxu0 0.0
  %3535 = vmatprep.subr.mxu0 0.0
  %3536 = vmatpush1.msra.mxu0 0.0
  %3537 = vmatprep.subr.mxu0 0.0
  %3538 = vmatpush1.msra.mxu0 0.0
  %3539 = vmatprep.subr.mxu0 0.0
  %3540 = vmatpush1.msra.mxu0 0.0
  %3541 = vmatprep.subr.mxu0 0.0
  %3542 = vmatpush1.msra.mxu0 0.0
  %3543 = vmatprep.subr.mxu0 0.0
  %3544 = vmatpush1.msra.mxu0 0.0
  %3545 = vmatprep.subr.mxu0 0.0
  %3546 = vmatpush1.msra.mxu0 0.0
  %3547 = vmatprep.subr.mxu0 0.0
  %3548 = vmatpush1.msra.mxu0 0.0
  %3549 = vmatprep.subr.mxu0 0.0
  %3550 = vmatpush1.msra.mxu0 0.0
  %3551 = vmatprep.subr.mxu0 0.0
  %3552 = vmatpush1.msra.mxu0 0.0
  %3553 = vmatprep.subr.mxu0 0.0
  %3554 = vmatpush1.msra.mxu0 0.0
  %3555 = vmatprep.subr.mxu0 0.0
  %3556 = vmatpush1.msra.mxu0 0.0
  %3557 = vmatprep.subr.mxu0 0.0
  %3558 = vmatpush1.msra.mxu0 0.0
  %3559 = vmatprep.subr.mxu0 0.0
  %3560 = vmatpush1.msra.mxu0 0.0
  %3561 = vmatprep.subr.mxu0 0.0
  %3562 = vmatpush1.msra.mxu0 0.0
  %3563 = vmatprep.subr.mxu0 0.0
  %3564 = vmatpush1.msra.mxu0 0.0
  %3565 = vmatprep.subr.mxu0 0.0
  %3566 = vmatpush1.msra.mxu0 0.0
  %3567 = vmatprep.subr.mxu0 0.0
  %3568 = vmatpush1.msra.mxu0 0.0
  %3569 = vmatprep.subr.mxu0 0.0
  %3570 = vmatpush1.msra.mxu0 0.0
  %3571 = vmatprep.subr.mxu0 0.0
  %3572 = vmatpush1.msra.mxu0 0.0
  %3573 = vmatprep.subr.mxu0 0.0
  %3574 = vmatpush1.msra.mxu0 0.0
  %3575 = vmatprep.subr.mxu0 0.0
  %3576 = vmatpush1.msra.mxu0 0.0
  %3577 = vmatprep.subr.mxu0 0.0
  %3578 = vmatpush1.msra.mxu0 0.0
  %3579 = vmatprep.subr.mxu0 0.0
  %3580 = vmatpush1.msra.mxu0 0.0
  %3581 = vmatprep.subr.mxu0 0.0
  %3582 = vmatpush1.msra.mxu0 0.0
  %3583 = vmatprep.mubr.f32.mxu0 0.0
  %3584 = vmatmul.mubr.f32.gmra.mrb[0].mxu0 %v3517
  %v3585 = vpop.f32.mrb[0].mxu0
  %v3586 = vadd.f32 0.0, %v3585
  %v3587 = vpop.f32.mrb[0].mxu0
  %3588 = vdwg.mxu0
  %3589 = vst.msk [vmem:[#allocation2 + $0xc] sm:$0x3] %vm679, %v3586
  %v3590 = vrot.slane %v298, 4
  %v3593 = vsel %vm44, %v3586, 0
  %3595 = vmatprep.subr.mxu0 0.0
  %3596 = vmatpush1.msra.mxu0 %v541
  %3597 = vmatprep.subr.mxu0 0.0
  %3598 = vmatpush1.msra.mxu0 %v542
  %3599 = vmatprep.subr.mxu0 0.0
  %3600 = vmatpush1.msra.mxu0 %v543
  %3601 = vmatprep.subr.mxu0 0.0
  %3602 = vmatpush1.msra.mxu0 %v544
  %3603 = vmatprep.subr.mxu0 0.0
  %3604 = vmatpush1.msra.mxu0 0.0
  %3605 = vmatprep.subr.mxu0 0.0
  %3606 = vmatpush1.msra.mxu0 0.0
  %3607 = vmatprep.subr.mxu0 0.0
  %3608 = vmatpush1.msra.mxu0 0.0
  %3609 = vmatprep.subr.mxu0 0.0
  %3610 = vmatpush1.msra.mxu0 0.0
  %3611 = vmatprep.subr.mxu0 0.0
  %3612 = vmatpush1.msra.mxu0 0.0
  %3613 = vmatprep.subr.mxu0 0.0
  %3614 = vmatpush1.msra.mxu0 0.0
  %3615 = vmatprep.subr.mxu0 0.0
  %3616 = vmatpush1.msra.mxu0 0.0
  %3617 = vmatprep.subr.mxu0 0.0
  %3618 = vmatpush1.msra.mxu0 0.0
  %3619 = vmatprep.subr.mxu0 0.0
  %3620 = vmatpush1.msra.mxu0 0.0
  %3621 = vmatprep.subr.mxu0 0.0
  %3622 = vmatpush1.msra.mxu0 0.0
  %3623 = vmatprep.subr.mxu0 0.0
  %3624 = vmatpush1.msra.mxu0 0.0
  %3625 = vmatprep.subr.mxu0 0.0
  %3626 = vmatpush1.msra.mxu0 0.0
  %3627 = vmatprep.subr.mxu0 0.0
  %3628 = vmatpush1.msra.mxu0 0.0
  %3629 = vmatprep.subr.mxu0 0.0
  %3630 = vmatpush1.msra.mxu0 0.0
  %3631 = vmatprep.subr.mxu0 0.0
  %3632 = vmatpush1.msra.mxu0 0.0
  %3633 = vmatprep.subr.mxu0 0.0
  %3634 = vmatpush1.msra.mxu0 0.0
  %3635 = vmatprep.subr.mxu0 0.0
  %3636 = vmatpush1.msra.mxu0 0.0
  %3637 = vmatprep.subr.mxu0 0.0
  %3638 = vmatpush1.msra.mxu0 0.0
  %3639 = vmatprep.subr.mxu0 0.0
  %3640 = vmatpush1.msra.mxu0 0.0
  %3641 = vmatprep.subr.mxu0 0.0
  %3642 = vmatpush1.msra.mxu0 0.0
  %3643 = vmatprep.subr.mxu0 0.0
  %3644 = vmatpush1.msra.mxu0 0.0
  %3645 = vmatprep.subr.mxu0 0.0
  %3646 = vmatpush1.msra.mxu0 0.0
  %3647 = vmatprep.subr.mxu0 0.0
  %3648 = vmatpush1.msra.mxu0 0.0
  %3649 = vmatprep.subr.mxu0 0.0
  %3650 = vmatpush1.msra.mxu0 0.0
  %3651 = vmatprep.subr.mxu0 0.0
  %3652 = vmatpush1.msra.mxu0 0.0
  %3653 = vmatprep.subr.mxu0 0.0
  %3654 = vmatpush1.msra.mxu0 0.0
  %3655 = vmatprep.subr.mxu0 0.0
  %3656 = vmatpush1.msra.mxu0 0.0
  %3657 = vmatprep.subr.mxu0 0.0
  %3658 = vmatpush1.msra.mxu0 0.0
  %3659 = vmatprep.mubr.f32.mxu0 0.0
  %3660 = vmatmul.mubr.f32.gmra.mrb[0].mxu0 %v3593
  %v3661 = vpop.f32.mrb[0].mxu0
  %v3662 = vadd.f32 %v3590, %v3661
  %v3663 = vpop.f32.mrb[0].mxu0
  %3664 = vdwg.mxu0
  %v3665 = vrot.slane %v351, 4
  %v3667 = vmul.f32 %v3662, %v3665
  %v3668 = vxor.u32 %v3667, 2147483648
  %v3669 = vmul.f32 %v3668, 1.442695
  %v3670 = vpow.pop %v3669
  %v3671 = vadd.f32 %v3670, 1.0
  %v3672 = vrcp.pop %v3671
  %v3673 = vmul.f32 1.0, %v3672
  %v3675 = vsel %vm777, %v3673, 0
  %3677 = vmatprep.subr.mxu0 %v546
  %3678 = vmatpush1.msra.mxu0 %v545
  %3679 = vmatprep.subr.mxu0 %v549
  %3680 = vmatpush1.msra.mxu0 %v548
  %3681 = vmatprep.subr.mxu0 %v552
  %3682 = vmatpush1.msra.mxu0 %v551
  %3683 = vmatprep.subr.mxu0 %v555
  %3684 = vmatpush1.msra.mxu0 %v554
  %3685 = vmatprep.subr.mxu0 %v558
  %3686 = vmatpush1.msra.mxu0 %v557
  %3687 = vmatprep.subr.mxu0 %v561
  %3688 = vmatpush1.msra.mxu0 %v560
  %3689 = vmatprep.subr.mxu0 %v564
  %3690 = vmatpush1.msra.mxu0 %v563
  %3691 = vmatprep.subr.mxu0 %v567
  %3692 = vmatpush1.msra.mxu0 %v566
  %3693 = vmatprep.subr.mxu0 %v570
  %3694 = vmatpush1.msra.mxu0 %v569
  %3695 = vmatprep.subr.mxu0 %v573
  %3696 = vmatpush1.msra.mxu0 %v572
  %3697 = vmatprep.subr.mxu0 %v576
  %3698 = vmatpush1.msra.mxu0 %v575
  %3699 = vmatprep.subr.mxu0 %v579
  %3700 = vmatpush1.msra.mxu0 %v578
  %3701 = vmatprep.subr.mxu0 0.0
  %3702 = vmatpush1.msra.mxu0 0.0
  %3703 = vmatprep.subr.mxu0 0.0
  %3704 = vmatpush1.msra.mxu0 0.0
  %3705 = vmatprep.subr.mxu0 0.0
  %3706 = vmatpush1.msra.mxu0 0.0
  %3707 = vmatprep.subr.mxu0 0.0
  %3708 = vmatpush1.msra.mxu0 0.0
  %3709 = vmatprep.subr.mxu0 0.0
  %3710 = vmatpush1.msra.mxu0 0.0
  %3711 = vmatprep.subr.mxu0 0.0
  %3712 = vmatpush1.msra.mxu0 0.0
  %3713 = vmatprep.subr.mxu0 0.0
  %3714 = vmatpush1.msra.mxu0 0.0
  %3715 = vmatprep.subr.mxu0 0.0
  %3716 = vmatpush1.msra.mxu0 0.0
  %3717 = vmatprep.subr.mxu0 0.0
  %3718 = vmatpush1.msra.mxu0 0.0
  %3719 = vmatprep.subr.mxu0 0.0
  %3720 = vmatpush1.msra.mxu0 0.0
  %3721 = vmatprep.subr.mxu0 0.0
  %3722 = vmatpush1.msra.mxu0 0.0
  %3723 = vmatprep.subr.mxu0 0.0
  %3724 = vmatpush1.msra.mxu0 0.0
  %3725 = vmatprep.subr.mxu0 0.0
  %3726 = vmatpush1.msra.mxu0 0.0
  %3727 = vmatprep.subr.mxu0 0.0
  %3728 = vmatpush1.msra.mxu0 0.0
  %3729 = vmatprep.subr.mxu0 0.0
  %3730 = vmatpush1.msra.mxu0 0.0
  %3731 = vmatprep.subr.mxu0 0.0
  %3732 = vmatpush1.msra.mxu0 0.0
  %3733 = vmatprep.subr.mxu0 0.0
  %3734 = vmatpush1.msra.mxu0 0.0
  %3735 = vmatprep.subr.mxu0 0.0
  %3736 = vmatpush1.msra.mxu0 0.0
  %3737 = vmatprep.subr.mxu0 0.0
  %3738 = vmatpush1.msra.mxu0 0.0
  %3739 = vmatprep.subr.mxu0 0.0
  %3740 = vmatpush1.msra.mxu0 0.0
  %3741 = vmatprep.mubr.f32.mxu0 0.0
  %3742 = vmatmul.mubr.f32.gmra.mrb[0].mxu0 %v3675
  %v3743 = vpop.f32.mrb[0].mxu0
  %v3744 = vadd.f32 %v765, %v3743
  %v3745 = vpop.f32.mrb[0].mxu0
  %v3746 = vadd.f32 %v769, %v3745
  %3747 = vdwg.mxu0
  %3748 = vmatprep.subr.mxu0 0.0
  %3749 = vmatpush1.msra.mxu0 %v547
  %3750 = vmatprep.subr.mxu0 0.0
  %3751 = vmatpush1.msra.mxu0 %v550
  %3752 = vmatprep.subr.mxu0 0.0
  %3753 = vmatpush1.msra.mxu0 %v553
  %3754 = vmatprep.subr.mxu0 0.0
  %3755 = vmatpush1.msra.mxu0 %v556
  %3756 = vmatprep.subr.mxu0 0.0
  %3757 = vmatpush1.msra.mxu0 %v559
  %3758 = vmatprep.subr.mxu0 0.0
  %3759 = vmatpush1.msra.mxu0 %v562
  %3760 = vmatprep.subr.mxu0 0.0
  %3761 = vmatpush1.msra.mxu0 %v565
  %3762 = vmatprep.subr.mxu0 0.0
  %3763 = vmatpush1.msra.mxu0 %v568
  %3764 = vmatprep.subr.mxu0 0.0
  %3765 = vmatpush1.msra.mxu0 %v571
  %3766 = vmatprep.subr.mxu0 0.0
  %3767 = vmatpush1.msra.mxu0 %v574
  %3768 = vmatprep.subr.mxu0 0.0
  %3769 = vmatpush1.msra.mxu0 %v577
  %3770 = vmatprep.subr.mxu0 0.0
  %3771 = vmatpush1.msra.mxu0 %v580
  %3772 = vmatprep.subr.mxu0 0.0
  %3773 = vmatpush1.msra.mxu0 0.0
  %3774 = vmatprep.subr.mxu0 0.0
  %3775 = vmatpush1.msra.mxu0 0.0
  %3776 = vmatprep.subr.mxu0 0.0
  %3777 = vmatpush1.msra.mxu0 0.0
  %3778 = vmatprep.subr.mxu0 0.0
  %3779 = vmatpush1.msra.mxu0 0.0
  %3780 = vmatprep.subr.mxu0 0.0
  %3781 = vmatpush1.msra.mxu0 0.0
  %3782 = vmatprep.subr.mxu0 0.0
  %3783 = vmatpush1.msra.mxu0 0.0
  %3784 = vmatprep.subr.mxu0 0.0
  %3785 = vmatpush1.msra.mxu0 0.0
  %3786 = vmatprep.subr.mxu0 0.0
  %3787 = vmatpush1.msra.mxu0 0.0
  %3788 = vmatprep.subr.mxu0 0.0
  %3789 = vmatpush1.msra.mxu0 0.0
  %3790 = vmatprep.subr.mxu0 0.0
  %3791 = vmatpush1.msra.mxu0 0.0
  %3792 = vmatprep.subr.mxu0 0.0
  %3793 = vmatpush1.msra.mxu0 0.0
  %3794 = vmatprep.subr.mxu0 0.0
  %3795 = vmatpush1.msra.mxu0 0.0
  %3796 = vmatprep.subr.mxu0 0.0
  %3797 = vmatpush1.msra.mxu0 0.0
  %3798 = vmatprep.subr.mxu0 0.0
  %3799 = vmatpush1.msra.mxu0 0.0
  %3800 = vmatprep.subr.mxu0 0.0
  %3801 = vmatpush1.msra.mxu0 0.0
  %3802 = vmatprep.subr.mxu0 0.0
  %3803 = vmatpush1.msra.mxu0 0.0
  %3804 = vmatprep.subr.mxu0 0.0
  %3805 = vmatpush1.msra.mxu0 0.0
  %3806 = vmatprep.subr.mxu0 0.0
  %3807 = vmatpush1.msra.mxu0 0.0
  %3808 = vmatprep.subr.mxu0 0.0
  %3809 = vmatpush1.msra.mxu0 0.0
  %3810 = vmatprep.subr.mxu0 0.0
  %3811 = vmatpush1.msra.mxu0 0.0
  %3812 = vmatprep.mubr.f32.mxu0 0.0
  %3813 = vmatmul.mubr.f32.gmra.mrb[0].mxu0 %v3675
  %v3814 = vpop.f32.mrb[0].mxu0
  %v3815 = vadd.f32 %v773, %v3814
  %v3816 = vpop.f32.mrb[0].mxu0
  %3817 = vdwg.mxu0
  %v3818 = vmul.f32 %v3744, %v3746
  %v3819 = vmul.f32 %v3818, %v3815
  %3820 = vmatprep.subr.mxu0 0.0
  %3821 = vmatpush1.msra.mxu0 %v583
  %3822 = vmatprep.subr.mxu0 0.0
  %3823 = vmatpush1.msra.mxu0 %v584
  %3824 = vmatprep.subr.mxu0 0.0
  %3825 = vmatpush1.msra.mxu0 %v585
  %3826 = vmatprep.subr.mxu0 0.0
  %3827 = vmatpush1.msra.mxu0 %v586
  %3828 = vmatprep.subr.mxu0 0.0
  %3829 = vmatpush1.msra.mxu0 %v587
  %3830 = vmatprep.subr.mxu0 0.0
  %3831 = vmatpush1.msra.mxu0 %v588
  %3832 = vmatprep.subr.mxu0 0.0
  %3833 = vmatpush1.msra.mxu0 %v589
  %3834 = vmatprep.subr.mxu0 0.0
  %3835 = vmatpush1.msra.mxu0 %v590
  %3836 = vmatprep.subr.mxu0 0.0
  %3837 = vmatpush1.msra.mxu0 %v591
  %3838 = vmatprep.subr.mxu0 0.0
  %3839 = vmatpush1.msra.mxu0 %v592
  %3840 = vmatprep.subr.mxu0 0.0
  %3841 = vmatpush1.msra.mxu0 %v593
  %3842 = vmatprep.subr.mxu0 0.0
  %3843 = vmatpush1.msra.mxu0 %v594
  %3844 = vmatprep.subr.mxu0 0.0
  %3845 = vmatpush1.msra.mxu0 %v595
  %3846 = vmatprep.subr.mxu0 0.0
  %3847 = vmatpush1.msra.mxu0 %v596
  %3848 = vmatprep.subr.mxu0 0.0
  %3849 = vmatpush1.msra.mxu0 %v597
  %3850 = vmatprep.subr.mxu0 0.0
  %3851 = vmatpush1.msra.mxu0 %v598
  %3852 = vmatprep.subr.mxu0 0.0
  %3853 = vmatpush1.msra.mxu0 0.0
  %3854 = vmatprep.subr.mxu0 0.0
  %3855 = vmatpush1.msra.mxu0 0.0
  %3856 = vmatprep.subr.mxu0 0.0
  %3857 = vmatpush1.msra.mxu0 0.0
  %3858 = vmatprep.subr.mxu0 0.0
  %3859 = vmatpush1.msra.mxu0 0.0
  %3860 = vmatprep.subr.mxu0 0.0
  %3861 = vmatpush1.msra.mxu0 0.0
  %3862 = vmatprep.subr.mxu0 0.0
  %3863 = vmatpush1.msra.mxu0 0.0
  %3864 = vmatprep.subr.mxu0 0.0
  %3865 = vmatpush1.msra.mxu0 0.0
  %3866 = vmatprep.subr.mxu0 0.0
  %3867 = vmatpush1.msra.mxu0 0.0
  %3868 = vmatprep.subr.mxu0 0.0
  %3869 = vmatpush1.msra.mxu0 0.0
  %3870 = vmatprep.subr.mxu0 0.0
  %3871 = vmatpush1.msra.mxu0 0.0
  %3872 = vmatprep.subr.mxu0 0.0
  %3873 = vmatpush1.msra.mxu0 0.0
  %3874 = vmatprep.subr.mxu0 0.0
  %3875 = vmatpush1.msra.mxu0 0.0
  %3876 = vmatprep.subr.mxu0 0.0
  %3877 = vmatpush1.msra.mxu0 0.0
  %3878 = vmatprep.subr.mxu0 0.0
  %3879 = vmatpush1.msra.mxu0 0.0
  %3880 = vmatprep.subr.mxu0 0.0
  %3881 = vmatpush1.msra.mxu0 0.0
  %3882 = vmatprep.subr.mxu0 0.0
  %3883 = vmatpush1.msra.mxu0 0.0
  %3884 = vmatprep.mubr.f32.mxu0 0.0
  %3885 = vmatmul.mubr.f32.gmra.mrb[0].mxu0 %v3819
  %v3886 = vpop.f32.mrb[0].mxu0
  %v3887 = vadd.f32 %v927, %v3886
  %v3888 = vpop.f32.mrb[0].mxu0
  %3889 = vdwg.mxu0
  %v3890 = vmax.f32 %v3887, 0.0
  %v3892 = vsel %vm44, %v3514, 0
  %v3895 = vsel %vm44, %v3515, 0
  %3897 = vmatprep.subr.mxu0 0.0
  %3898 = vmatpush1.msra.mxu0 %v600
  %3899 = vmatprep.subr.mxu0 0.0
  %3900 = vmatpush1.msra.mxu0 %v601
  %3901 = vmatprep.subr.mxu0 0.0
  %3902 = vmatpush1.msra.mxu0 %v602
  %3903 = vmatprep.subr.mxu0 0.0
  %3904 = vmatpush1.msra.mxu0 %v603
  %3905 = vmatprep.subr.mxu0 0.0
  %3906 = vmatpush1.msra.mxu0 0.0
  %3907 = vmatprep.subr.mxu0 0.0
  %3908 = vmatpush1.msra.mxu0 0.0
  %3909 = vmatprep.subr.mxu0 0.0
  %3910 = vmatpush1.msra.mxu0 0.0
  %3911 = vmatprep.subr.mxu0 0.0
  %3912 = vmatpush1.msra.mxu0 0.0
  %3913 = vmatprep.subr.mxu0 0.0
  %3914 = vmatpush1.msra.mxu0 0.0
  %3915 = vmatprep.subr.mxu0 0.0
  %3916 = vmatpush1.msra.mxu0 0.0
  %3917 = vmatprep.subr.mxu0 0.0
  %3918 = vmatpush1.msra.mxu0 0.0
  %3919 = vmatprep.subr.mxu0 0.0
  %3920 = vmatpush1.msra.mxu0 0.0
  %3921 = vmatprep.subr.mxu0 0.0
  %3922 = vmatpush1.msra.mxu0 0.0
  %3923 = vmatprep.subr.mxu0 0.0
  %3924 = vmatpush1.msra.mxu0 0.0
  %3925 = vmatprep.subr.mxu0 0.0
  %3926 = vmatpush1.msra.mxu0 0.0
  %3927 = vmatprep.subr.mxu0 0.0
  %3928 = vmatpush1.msra.mxu0 0.0
  %3929 = vmatprep.subr.mxu0 0.0
  %3930 = vmatpush1.msra.mxu0 0.0
  %3931 = vmatprep.subr.mxu0 0.0
  %3932 = vmatpush1.msra.mxu0 0.0
  %3933 = vmatprep.subr.mxu0 0.0
  %3934 = vmatpush1.msra.mxu0 0.0
  %3935 = vmatprep.subr.mxu0 0.0
  %3936 = vmatpush1.msra.mxu0 0.0
  %3937 = vmatprep.subr.mxu0 0.0
  %3938 = vmatpush1.msra.mxu0 0.0
  %3939 = vmatprep.subr.mxu0 0.0
  %3940 = vmatpush1.msra.mxu0 0.0
  %3941 = vmatprep.subr.mxu0 0.0
  %3942 = vmatpush1.msra.mxu0 0.0
  %3943 = vmatprep.subr.mxu0 0.0
  %3944 = vmatpush1.msra.mxu0 0.0
  %3945 = vmatprep.subr.mxu0 0.0
  %3946 = vmatpush1.msra.mxu0 0.0
  %3947 = vmatprep.subr.mxu0 0.0
  %3948 = vmatpush1.msra.mxu0 0.0
  %3949 = vmatprep.subr.mxu0 0.0
  %3950 = vmatpush1.msra.mxu0 0.0
  %3951 = vmatprep.subr.mxu0 0.0
  %3952 = vmatpush1.msra.mxu0 0.0
  %3953 = vmatprep.subr.mxu0 0.0
  %3954 = vmatpush1.msra.mxu0 0.0
  %3955 = vmatprep.subr.mxu0 0.0
  %3956 = vmatpush1.msra.mxu0 0.0
  %3957 = vmatprep.subr.mxu0 0.0
  %3958 = vmatpush1.msra.mxu0 0.0
  %3959 = vmatprep.subr.mxu0 0.0
  %3960 = vmatpush1.msra.mxu0 0.0
  %3961 = vmatprep.mubr.f32.mxu0 0.0
  %3962 = vmatmul.mubr.f32.gmra.mrb[0].mxu0 %v3892
  %v3963 = vpop.f32.mrb[0].mxu0
  %v3964 = vadd.f32 %v536, %v3963
  %v3965 = vpop.f32.mrb[0].mxu0
  %3966 = vmatprep.mubr.f32.mxu0 0.0
  %3967 = vmatmul.mubr.f32.gmra.mrb[0].mxu0 %v3895
  %v3968 = vpop.f32.mrb[0].mxu0
  %v3969 = vadd.f32 %v540, %v3968
  %v3970 = vpop.f32.mrb[0].mxu0
  %3971 = vdwg.mxu0
  %v3972 = vxor.u32 %v3964, 2147483648
  %v3973 = vxor.u32 %v3969, 2147483648
  %v3974 = vmul.f32 %v3972, 1.442695
  %v3975 = vpow.pop %v3974
  %v3976 = vmul.f32 %v3973, 1.442695
  %v3977 = vpow.pop %v3976
  %v3978 = vadd.f32 %v3975, 1.0
  %v3979 = vadd.f32 %v3977, 1.0
  %v3980 = vrcp.pop %v3978
  %v3981 = vmul.f32 1.0, %v3980
  %v3982 = vrcp.pop %v3979
  %v3983 = vmul.f32 1.0, %v3982
  %v3984 = vmul.f32 %v3514, %v3981
  %v3985 = vmul.f32 %v3515, %v3983
  %v3986 = vlaneseq
  %v3987 = vshrl.u32 %v3986, 7
  %v3988 = vsub.s32 0, %v3987
  %v3989 = vrot.slane %v3890, %v3988
  %v3990 = vlaneseq
  %v3991 = vshrl.u32 %v3990, 7
  %v3992 = vsub.s32 1, %v3991
  %v3993 = vrot.slane %v3890, %v3992
  %v3994 = vmul.f32 %v33, %v3989
  %v3995 = vmul.f32 %v34, %v3993
  %v3996 = vadd.f32 %v3984, %v3994
  %v3997 = vadd.f32 %v3985, %v3995
  %v3998 = vrot.slane %v20, 6
  %v3999 = vsel %vm135, %v3998, 0
  %4001 = vmatprep.subr.mxu0 0.0
  %4002 = vmatpush1.msra.mxu0 %v3996
  %4003 = vmatprep.subr.mxu0 0.0
  %4004 = vmatpush1.msra.mxu0 %v3997
  %4005 = vmatprep.subr.mxu0 0.0
  %4006 = vmatpush1.msra.mxu0 0.0
  %4007 = vmatprep.subr.mxu0 0.0
  %4008 = vmatpush1.msra.mxu0 0.0
  %4009 = vmatprep.subr.mxu0 0.0
  %4010 = vmatpush1.msra.mxu0 0.0
  %4011 = vmatprep.subr.mxu0 0.0
  %4012 = vmatpush1.msra.mxu0 0.0
  %4013 = vmatprep.subr.mxu0 0.0
  %4014 = vmatpush1.msra.mxu0 0.0
  %4015 = vmatprep.subr.mxu0 0.0
  %4016 = vmatpush1.msra.mxu0 0.0
  %4017 = vmatprep.subr.mxu0 0.0
  %4018 = vmatpush1.msra.mxu0 0.0
  %4019 = vmatprep.subr.mxu0 0.0
  %4020 = vmatpush1.msra.mxu0 0.0
  %4021 = vmatprep.subr.mxu0 0.0
  %4022 = vmatpush1.msra.mxu0 0.0
  %4023 = vmatprep.subr.mxu0 0.0
  %4024 = vmatpush1.msra.mxu0 0.0
  %4025 = vmatprep.subr.mxu0 0.0
  %4026 = vmatpush1.msra.mxu0 0.0
  %4027 = vmatprep.subr.mxu0 0.0
  %4028 = vmatpush1.msra.mxu0 0.0
  %4029 = vmatprep.subr.mxu0 0.0
  %4030 = vmatpush1.msra.mxu0 0.0
  %4031 = vmatprep.subr.mxu0 0.0
  %4032 = vmatpush1.msra.mxu0 0.0
  %4033 = vmatprep.subr.mxu0 0.0
  %4034 = vmatpush1.msra.mxu0 0.0
  %4035 = vmatprep.subr.mxu0 0.0
  %4036 = vmatpush1.msra.mxu0 0.0
  %4037 = vmatprep.subr.mxu0 0.0
  %4038 = vmatpush1.msra.mxu0 0.0
  %4039 = vmatprep.subr.mxu0 0.0
  %4040 = vmatpush1.msra.mxu0 0.0
  %4041 = vmatprep.subr.mxu0 0.0
  %4042 = vmatpush1.msra.mxu0 0.0
  %4043 = vmatprep.subr.mxu0 0.0
  %4044 = vmatpush1.msra.mxu0 0.0
  %4045 = vmatprep.subr.mxu0 0.0
  %4046 = vmatpush1.msra.mxu0 0.0
  %4047 = vmatprep.subr.mxu0 0.0
  %4048 = vmatpush1.msra.mxu0 0.0
  %4049 = vmatprep.subr.mxu0 0.0
  %4050 = vmatpush1.msra.mxu0 0.0
  %4051 = vmatprep.subr.mxu0 0.0
  %4052 = vmatpush1.msra.mxu0 0.0
  %4053 = vmatprep.subr.mxu0 0.0
  %4054 = vmatpush1.msra.mxu0 0.0
  %4055 = vmatprep.subr.mxu0 0.0
  %4056 = vmatpush1.msra.mxu0 0.0
  %4057 = vmatprep.subr.mxu0 0.0
  %4058 = vmatpush1.msra.mxu0 0.0
  %4059 = vmatprep.subr.mxu0 0.0
  %4060 = vmatpush1.msra.mxu0 0.0
  %4061 = vmatprep.subr.mxu0 0.0
  %4062 = vmatpush1.msra.mxu0 0.0
  %4063 = vmatprep.subr.mxu0 0.0
  %4064 = vmatpush1.msra.mxu0 0.0
  %4065 = vmatprep.mubr.f32.mxu0 0.0
  %4066 = vmatmul.mubr.f32.gmra.mrb[0].mxu0 %v3999
  %v4067 = vpop.f32.mrb[0].mxu0
  %v4068 = vadd.f32 0.0, %v4067
  %v4069 = vpop.f32.mrb[0].mxu0
  %4070 = vdwg.mxu0
  %4071 = vst.msk [vmem:[#allocation2 + $0xe] sm:$0x3] %vm679, %v4068
  %v4072 = vld [vmem:[#allocation2] sm:$0xff]
  %v4073 = vld [vmem:[#allocation2 + $0x8] sm:$0xff]
  %v4074 = vld [vmem:[%s2 + $0x38] sm:$0xff]
  %v4075 = vld [vmem:[%s2 + $0x40] sm:$0xff]
  %v4076 = vld [vmem:[%s2 + $0x48] sm:$0xff]
  %v4077 = vld [vmem:[%s2 + $0x50] sm:$0xff]
  %v4079 = vsel %vm44, %v4072, 0
  %v4082 = vsel %vm44, %v4073, 0
  %4084 = vmatprep.subr.mxu0 0.0
  %4085 = vmatpush1.msra.mxu0 %v4074
  %4086 = vmatprep.subr.mxu0 0.0
  %4087 = vmatpush1.msra.mxu0 %v4075
  %4088 = vmatprep.subr.mxu0 0.0
  %4089 = vmatpush1.msra.mxu0 %v4076
  %4090 = vmatprep.subr.mxu0 0.0
  %4091 = vmatpush1.msra.mxu0 %v4077
  %4092 = vmatprep.subr.mxu0 0.0
  %4093 = vmatpush1.msra.mxu0 0.0
  %4094 = vmatprep.subr.mxu0 0.0
  %4095 = vmatpush1.msra.mxu0 0.0
  %4096 = vmatprep.subr.mxu0 0.0
  %4097 = vmatpush1.msra.mxu0 0.0
  %4098 = vmatprep.subr.mxu0 0.0
  %4099 = vmatpush1.msra.mxu0 0.0
  %4100 = vmatprep.subr.mxu0 0.0
  %4101 = vmatpush1.msra.mxu0 0.0
  %4102 = vmatprep.subr.mxu0 0.0
  %4103 = vmatpush1.msra.mxu0 0.0
  %4104 = vmatprep.subr.mxu0 0.0
  %4105 = vmatpush1.msra.mxu0 0.0
  %4106 = vmatprep.subr.mxu0 0.0
  %4107 = vmatpush1.msra.mxu0 0.0
  %4108 = vmatprep.subr.mxu0 0.0
  %4109 = vmatpush1.msra.mxu0 0.0
  %4110 = vmatprep.subr.mxu0 0.0
  %4111 = vmatpush1.msra.mxu0 0.0
  %4112 = vmatprep.subr.mxu0 0.0
  %4113 = vmatpush1.msra.mxu0 0.0
  %4114 = vmatprep.subr.mxu0 0.0
  %4115 = vmatpush1.msra.mxu0 0.0
  %4116 = vmatprep.subr.mxu0 0.0
  %4117 = vmatpush1.msra.mxu0 0.0
  %4118 = vmatprep.subr.mxu0 0.0
  %4119 = vmatpush1.msra.mxu0 0.0
  %4120 = vmatprep.subr.mxu0 0.0
  %4121 = vmatpush1.msra.mxu0 0.0
  %4122 = vmatprep.subr.mxu0 0.0
  %4123 = vmatpush1.msra.mxu0 0.0
  %4124 = vmatprep.subr.mxu0 0.0
  %4125 = vmatpush1.msra.mxu0 0.0
  %4126 = vmatprep.subr.mxu0 0.0
  %4127 = vmatpush1.msra.mxu0 0.0
  %4128 = vmatprep.subr.mxu0 0.0
  %4129 = vmatpush1.msra.mxu0 0.0
  %4130 = vmatprep.subr.mxu0 0.0
  %4131 = vmatpush1.msra.mxu0 0.0
  %4132 = vmatprep.subr.mxu0 0.0
  %4133 = vmatpush1.msra.mxu0 0.0
  %4134 = vmatprep.subr.mxu0 0.0
  %4135 = vmatpush1.msra.mxu0 0.0
  %4136 = vmatprep.subr.mxu0 0.0
  %4137 = vmatpush1.msra.mxu0 0.0
  %4138 = vmatprep.subr.mxu0 0.0
  %4139 = vmatpush1.msra.mxu0 0.0
  %4140 = vmatprep.subr.mxu0 0.0
  %4141 = vmatpush1.msra.mxu0 0.0
  %4142 = vmatprep.subr.mxu0 0.0
  %4143 = vmatpush1.msra.mxu0 0.0
  %4144 = vmatprep.subr.mxu0 0.0
  %4145 = vmatpush1.msra.mxu0 0.0
  %4146 = vmatprep.subr.mxu0 0.0
  %4147 = vmatpush1.msra.mxu0 0.0
  %4148 = vmatprep.mubr.f32.mxu0 0.0
  %4149 = vmatmul.mubr.f32.gmra.mrb[0].mxu0 %v4079
  %v4150 = vpop.f32.mrb[0].mxu0
  %v4151 = vadd.f32 %v207, %v4150
  %v4152 = vpop.f32.mrb[0].mxu0
  %4153 = vmatprep.mubr.f32.mxu0 0.0
  %4154 = vmatmul.mubr.f32.gmra.mrb[0].mxu0 %v4082
  %v4155 = vpop.f32.mrb[0].mxu0
  %v4156 = vadd.f32 %v212, %v4155
  %v4157 = vpop.f32.mrb[0].mxu0
  %4158 = vdwg.mxu0
  %v4159 = vxor.u32 %v4151, 2147483648
  %v4160 = vxor.u32 %v4156, 2147483648
  %v4161 = vmul.f32 %v4159, 1.442695
  %v4162 = vpow.pop %v4161
  %v4163 = vmul.f32 %v4160, 1.442695
  %v4164 = vpow.pop %v4163
  %v4165 = vadd.f32 %v4162, 1.0
  %v4166 = vadd.f32 %v4164, 1.0
  %v4167 = vrcp.pop %v4165
  %v4168 = vmul.f32 1.0, %v4167
  %v4169 = vrcp.pop %v4166
  %v4170 = vmul.f32 1.0, %v4169
  %v4171 = vsel %vm44, %v4168, 0.0
  %4172 = vadd.xlane.f32.xlu0 %v4171
  %v4173 = vpop.xlane.xlu0 %4172
  %v4174 = vsel %vm44, %v4170, 0.0
  %4175 = vadd.xlane.f32.xlu0 %v4174
  %v4176 = vpop.xlane.xlu0 %4175
  %v4177 = vmul.f32 %v4173, 0.03125
  %v4178 = vmul.f32 %v4176, 0.03125
  %4179 = vst [vmem:[%s4] sm:$0xff] %v4177
  %4180 = vst [vmem:[%s4 + $0x8] sm:$0xff] %v4178
  // Predicated region
  $region18: #{recurrent_forward.1} parent=0 // pred_check
    _
  $region19: #{recurrent_forward.1} parent=0 // pred_check_branch
    %4182 = sbr.rel (0) target = $region21
  $region20: #{recurrent_forward.1} parent=0 // pred_region
    _
  $region21: #{recurrent_forward.1} parent=0 // pred_fallthru
    _
  // Predicated region
  $region22: #{recurrent_forward.1} parent=0 // pred_check
    _
  $region23: #{recurrent_forward.1} parent=0 // pred_check_branch
    %4184 = sbr.rel (0) target = $region25
  $region24: #{recurrent_forward.1} parent=0 // pred_region
    _
  $region25: #{recurrent_forward.1} parent=0 // pred_fallthru
    _

</llo_original>
